<compile_context>
chip_gen: v5e
topology: v5e:2x2
jax: 0.10.0
libtpu: 0.0.40
codegen_flags: <defaults>
</compile_context>

<pallas_src>
import numpy as np
import jax
import jax.numpy as jnp
from jax.experimental import pallas as pl
from jax.experimental.pallas import tpu as pltpu


def _least_factors(a, b):
    l = int(np.lcm(a, b))
    return l // a, l // b


def _round_up(x, m):
    return ((x + m - 1) // m) * m


def _build_contraction_t(factor, in_channels, out_channels, in_spatio, out_spatio):
    """Fold the lcm-repeat + factor-weighted block reduction into one matrix.

    Returns Wt of shape (out_ch*out_sp, in_ch*in_sp) such that
        out[b, oc, os] = sum_k Wt[oc*out_sp + os, k] * flow(x)[b, k]
    reproduces   sum(factor * flow(repeat(x)).view(...), dim=(1, 3)).
    """
    in_ch_f, out_ch_f = _least_factors(in_channels, out_channels)
    in_sp_f, out_sp_f = _least_factors(in_spatio, out_spatio)
    R = out_ch_f * out_channels          # = lcm(in_channels, out_channels)
    C = out_sp_f * out_spatio            # = lcm(in_spatio, out_spatio)
    f2d = factor.reshape(R, C).astype(jnp.float32)

    r = np.arange(R)
    c = np.arange(C)
    # Expanded row r reads input channel r // in_ch_f and feeds output channel
    # r % out_channels; same structure for the spatio axis.
    ic = (r // in_ch_f)[:, None]
    oc = (r % out_channels)[:, None]
    isp = (c // in_sp_f)[None, :]
    osp = (c % out_spatio)[None, :]

    W = jnp.zeros((in_channels, in_spatio, out_channels, out_spatio), jnp.float32)
    W = W.at[ic, isp, oc, osp].add(f2d)
    K = in_channels * in_spatio
    N = out_channels * out_spatio
    return W.reshape(K, N).T             # (N, K)


def make_flow_kernel(num_steps, num_points):
    P = num_points
    half_p = 0.5 * float(P)
    max_b = float(P - 2)
    inv_steps = 1.0 / float(num_steps)

    def kernel(coeff_ref, bias_ref, velo_ref, dvelo_ref, ang_ref, dang_ref,
               x_ref, wt_ref, o_ref):
        coeff = coeff_ref[0]
        bias = bias_ref[0]
        d = x_ref[...]                                    # (K, TB) f32, batch on lanes

        def flow_step(d_in):
            d2 = jnp.tanh(d_in * coeff + bias)            # EUP
            pos = (1.0 + d2) * half_p                     # in [0, P]
            beg = jnp.floor(pos)
            b = jnp.minimum(beg, max_b)                   # clamp covers PyTorch's end==P fixup
            w = pos - b                                   # interp weight (reaches [1,2) in top bin)
            # Delta-table gather: shared-mask select cascade over the P-1 bins,
            # selecting the 4 raw table values, then one FMA pair.
            v0, dv = velo_ref[0], dvelo_ref[0]
            a0, da = ang_ref[0], dang_ref[0]
            for p in range(1, P - 1):
                m = b == float(p)
                v0 = jnp.where(m, velo_ref[p], v0)
                dv = jnp.where(m, dvelo_ref[p], dv)
                a0 = jnp.where(m, ang_ref[p], a0)
                da = jnp.where(m, dang_ref[p], da)
            v = v0 + w * dv
            a = a0 + w * da
            # pos == P exactly -> PyTorch's index logic degenerates to a zero step.
            v = jnp.where(beg < float(P), v, 0.0)
            return v * (jnp.cos(a) + d2 * jnp.sin(a))

        for _ in range(num_steps):
            d = d + flow_step(d) * inv_steps

        # Fused lcm-repeat + factor reduction: one MXU matmul against the
        # resident transposed contraction matrix. out (N_pad, TB) = Wt @ d.
        o_ref[...] = jnp.dot(wt_ref[...], d, preferred_element_type=jnp.float32)

    return kernel


def init_flow_params(key, in_channels, out_channels, in_spatio, out_spatio,
                     num_points=17):
    _, out_ch_f = _least_factors(in_channels, out_channels)
    _, out_sp_f = _least_factors(in_spatio, out_spatio)
    k1, k2, k3, k4, k5 = jax.random.split(key, 5)
    return dict(
        angles=2.0 * jax.random.uniform(k1, (num_points,), jnp.float32) * jnp.pi,
        velo=jax.random.uniform(k2, (num_points,), jnp.float32),
        factor=jax.random.uniform(
            k3, (1, out_ch_f, out_channels, out_sp_f, out_spatio), jnp.float32),
        coeff=2.0 * jax.random.uniform(k4, (1,), jnp.float32) - 1.0,
        bias=2.0 * jax.random.uniform(k5, (1,), jnp.float32) - 1.0,
    )


def flow_forward(x, params, *, in_channels, out_channels, in_spatio, out_spatio,
                 num_steps=3, num_points=17):
    K = in_channels * in_spatio
    N = out_channels * out_spatio
    x2 = x.reshape(-1, K).astype(jnp.float32)      # unique (pre-repeat) values only
    B = x2.shape[0]

    Wt = _build_contraction_t(params["factor"], in_channels, out_channels,
                              in_spatio, out_spatio)            # (N, K)
    N_pad = _round_up(N, 8)                                      # sublane-aligned MXU output
    if N_pad != N:
        Wt = jnp.pad(Wt, ((0, N_pad - N), (0, 0)))

    # Batch on the lane axis: lane-dense elementwise flow regardless of K and a
    # lane-dense output slab (unmasked vst). TB is a multiple of 128; 256 keeps
    # per-step overhead amortized while the double-buffered blocks + resident
    # Wt stay well inside v7x's 64 MiB VMEM for moderate K, N.
    # (For the rare K >> B >= 128 case a batch-on-sublane layout would win; the
    #  batch axis is the scaling one for this module, so we keep one path.)
    TB = min(256, _round_up(B, 128))
    B_pad = _round_up(B, TB)
    xT = x2.T                                                    # (K, B) — layout plumbing
    if B_pad != B:
        xT = jnp.pad(xT, ((0, 0), (0, B_pad - B)))

    velo = params["velo"].astype(jnp.float32)
    angles = params["angles"].astype(jnp.float32)
    velo_b, dvelo = velo[:-1], velo[1:] - velo[:-1]              # (P-1,)
    ang_b, dang = angles[:-1], angles[1:] - angles[:-1]          # (P-1,)
    coeff = params["coeff"].astype(jnp.float32)
    bias = params["bias"].astype(jnp.float32)

    kernel = make_flow_kernel(num_steps, num_points)
    smem_specs = [pl.BlockSpec(memory_space=pltpu.MemorySpace.SMEM)
                  for _ in range(6)]
    out = pl.pallas_call(
        kernel,
        out_shape=jax.ShapeDtypeStruct((N_pad, B_pad), jnp.float32),
        grid=(B_pad // TB,),
        in_specs=smem_specs + [
            pl.BlockSpec((K, TB), lambda i: (0, i)),             # flow inputs, batch on lanes
            pl.BlockSpec((N_pad, K), lambda i: (0, 0)),          # contraction matrix (resident)
        ],
        out_specs=pl.BlockSpec((N_pad, TB), lambda i: (0, i)),
        compiler_params=pltpu.CompilerParams(
            dimension_semantics=("parallel",)),   # batch blocks independent -> v7x 2-TC sharding
    )(coeff, bias, velo_b, dvelo, ang_b, dang, xT, Wt)

    return out[:N, :B].T.reshape(B, out_channels, out_spatio)


def flow_reference(x, params, *, in_channels, out_channels, in_spatio, out_spatio,
                   num_steps=3, num_points=17):
    # Pure-JAX transliteration of the PyTorch forward, for correctness checking.
    in_ch_f, out_ch_f = _least_factors(in_channels, out_channels)
    in_sp_f, out_sp_f = _least_factors(in_spatio, out_spatio)
    x = x.reshape(-1, in_channels, in_spatio).astype(jnp.float32)
    B = x.shape[0]
    d = jnp.repeat(jnp.repeat(x, in_ch_f, axis=1), in_sp_f, axis=2)
    coeff, bias = params["coeff"], params["bias"]
    velo, angles = params["velo"], params["angles"]
    for _ in range(num_steps):
        d2 = jnp.tanh(d * coeff + bias)
        pos = (1.0 + d2) / 2.0 * num_points
        beg = jnp.floor(pos).astype(jnp.int32)
        end = jnp.floor(pos + 1.0).astype(jnp.int32)
        lt = (end < num_points).astype(jnp.int32)
        eq = (end == num_points).astype(jnp.int32)
        beg = beg * lt + (beg - 1) * eq
        end = end * lt + (end - 1) * eq
        v = (end - pos) * velo[beg] + (pos - beg) * velo[end]
        a = (end - pos) * angles[beg] + (pos - beg) * angles[end]
        step = v * jnp.cos(a) + d2 * v * jnp.sin(a)
        d = d + step / float(num_steps)
    d5 = d.reshape(B, out_ch_f, out_channels, out_sp_f, out_spatio)
    return jnp.sum(params["factor"] * d5, axis=(1, 3))


if __name__ == "__main__":
    key = jax.random.PRNGKey(0)
    configs = [
        dict(B=4, in_channels=4, out_channels=6, in_spatio=3, out_spatio=4),
        dict(B=3, in_channels=8, out_channels=4, in_spatio=1, out_spatio=1),
    ]
    for cfg in configs:
        key, kp, kx = jax.random.split(key, 3)
        params = init_flow_params(kp, cfg["in_channels"], cfg["out_channels"],
                                  cfg["in_spatio"], cfg["out_spatio"])
        x = jax.random.normal(
            kx, (cfg["B"], cfg["in_channels"], cfg["in_spatio"]), jnp.float32)

        out = flow_forward(x, params,
                           in_channels=cfg["in_channels"],
                           out_channels=cfg["out_channels"],
                           in_spatio=cfg["in_spatio"],
                           out_spatio=cfg["out_spatio"])
        out = jax.block_until_ready(out)

        ref = flow_reference(x, params,
                             in_channels=cfg["in_channels"],
                             out_channels=cfg["out_channels"],
                             in_spatio=cfg["in_spatio"],
                             out_spatio=cfg["out_spatio"])
        np.testing.assert_allclose(np.asarray(out), np.asarray(ref),
                                   rtol=1e-4, atol=1e-4)
    print("KERNEL_OK")
</pallas_src>

<mosaic_0001>
module attributes {stable_mosaic.version = 11 : i64} {
  func.func @kernel(%arg0: i32, %arg1: memref<1xf32, #tpu.memory_space<smem>>, %arg2: memref<1xf32, #tpu.memory_space<smem>>, %arg3: memref<16xf32, #tpu.memory_space<smem>>, %arg4: memref<16xf32, #tpu.memory_space<smem>>, %arg5: memref<16xf32, #tpu.memory_space<smem>>, %arg6: memref<16xf32, #tpu.memory_space<smem>>, %arg7: memref<12x128xf32, #tpu.memory_space<vmem>>, %arg8: memref<24x12xf32, #tpu.memory_space<vmem>>, %arg9: memref<24x128xf32, #tpu.memory_space<vmem>>) attributes {dimension_semantics = [#tpu.dimension_semantics<parallel>], iteration_bounds = array<i64: 1>, scalar_prefetch = 0 : i64, scratch_operands = 0 : i64, tpu.core_type = #tpu.core_type<tc>, window_params = [{transform_indices = @transform_0, window_bounds = array<i64: 1>}, {transform_indices = @transform_1, window_bounds = array<i64: 1>}, {transform_indices = @transform_2, window_bounds = array<i64: 16>}, {transform_indices = @transform_3, window_bounds = array<i64: 16>}, {transform_indices = @transform_4, window_bounds = array<i64: 16>}, {transform_indices = @transform_5, window_bounds = array<i64: 16>}, {transform_indices = @transform_6, window_bounds = array<i64: 12, 128>}, {pipeline_mode = #tpu.pipeline_mode<synchronous>, transform_indices = @transform_7, window_bounds = array<i64: 24, 12>}, {transform_indices = @transform_8, window_bounds = array<i64: 24, 128>}]} {
    %c0 = arith.constant 0 : index
    %0 = memref.load %arg1[%c0] : memref<1xf32, #tpu.memory_space<smem>>
    %c0_0 = arith.constant 0 : index
    %1 = memref.load %arg2[%c0_0] : memref<1xf32, #tpu.memory_space<smem>>
    %c0_1 = arith.constant 0 : index
    %c0_2 = arith.constant 0 : index
    %2 = vector.load %arg7[%c0_1, %c0_2] : memref<12x128xf32, #tpu.memory_space<vmem>>, vector<12x128xf32>
    %3 = vector.broadcast %0 : f32 to vector<12x128xf32>
    %4 = arith.mulf %2, %3 : vector<12x128xf32>
    %5 = vector.broadcast %1 : f32 to vector<12x128xf32>
    %6 = arith.addf %4, %5 : vector<12x128xf32>
    %7 = math.tanh %6 : vector<12x128xf32>
    %cst = arith.constant 1.000000e+00 : f32
    %8 = vector.broadcast %cst : f32 to vector<12x128xf32>
    %9 = arith.addf %8, %7 : vector<12x128xf32>
    %cst_3 = arith.constant 8.500000e+00 : f32
    %10 = vector.broadcast %cst_3 : f32 to vector<12x128xf32>
    %11 = arith.mulf %9, %10 : vector<12x128xf32>
    %12 = math.floor %11 : vector<12x128xf32>
    %cst_4 = arith.constant 1.500000e+01 : f32
    %13 = vector.broadcast %cst_4 : f32 to vector<12x128xf32>
    %14 = arith.minimumf %12, %13 : vector<12x128xf32>
    %15 = arith.subf %11, %14 : vector<12x128xf32>
    %c0_5 = arith.constant 0 : index
    %16 = memref.load %arg3[%c0_5] : memref<16xf32, #tpu.memory_space<smem>>
    %c0_6 = arith.constant 0 : index
    %17 = memref.load %arg4[%c0_6] : memref<16xf32, #tpu.memory_space<smem>>
    %c0_7 = arith.constant 0 : index
    %18 = memref.load %arg5[%c0_7] : memref<16xf32, #tpu.memory_space<smem>>
    %c0_8 = arith.constant 0 : index
    %19 = memref.load %arg6[%c0_8] : memref<16xf32, #tpu.memory_space<smem>>
    %cst_9 = arith.constant 1.000000e+00 : f32
    %20 = vector.broadcast %cst_9 : f32 to vector<12x128xf32>
    %21 = arith.cmpf oeq, %14, %20 : vector<12x128xf32>
    %c1 = arith.constant 1 : index
    %22 = memref.load %arg3[%c1] : memref<16xf32, #tpu.memory_space<smem>>
    %23 = vector.broadcast %22 : f32 to vector<12x128xf32>
    %24 = vector.broadcast %16 : f32 to vector<12x128xf32>
    %25 = arith.select %21, %23, %24 : vector<12x128xi1>, vector<12x128xf32>
    %c1_10 = arith.constant 1 : index
    %26 = memref.load %arg4[%c1_10] : memref<16xf32, #tpu.memory_space<smem>>
    %27 = vector.broadcast %26 : f32 to vector<12x128xf32>
    %28 = vector.broadcast %17 : f32 to vector<12x128xf32>
    %29 = arith.select %21, %27, %28 : vector<12x128xi1>, vector<12x128xf32>
    %c1_11 = arith.constant 1 : index
    %30 = memref.load %arg5[%c1_11] : memref<16xf32, #tpu.memory_space<smem>>
    %31 = vector.broadcast %30 : f32 to vector<12x128xf32>
    %32 = vector.broadcast %18 : f32 to vector<12x128xf32>
    %33 = arith.select %21, %31, %32 : vector<12x128xi1>, vector<12x128xf32>
    %c1_12 = arith.constant 1 : index
    %34 = memref.load %arg6[%c1_12] : memref<16xf32, #tpu.memory_space<smem>>
    %35 = vector.broadcast %34 : f32 to vector<12x128xf32>
    %36 = vector.broadcast %19 : f32 to vector<12x128xf32>
    %37 = arith.select %21, %35, %36 : vector<12x128xi1>, vector<12x128xf32>
    %cst_13 = arith.constant 2.000000e+00 : f32
    %38 = vector.broadcast %cst_13 : f32 to vector<12x128xf32>
    %39 = arith.cmpf oeq, %14, %38 : vector<12x128xf32>
    %c2 = arith.constant 2 : index
    %40 = memref.load %arg3[%c2] : memref<16xf32, #tpu.memory_space<smem>>
    %41 = vector.broadcast %40 : f32 to vector<12x128xf32>
    %42 = arith.select %39, %41, %25 : vector<12x128xi1>, vector<12x128xf32>
    %c2_14 = arith.constant 2 : index
    %43 = memref.load %arg4[%c2_14] : memref<16xf32, #tpu.memory_space<smem>>
    %44 = vector.broadcast %43 : f32 to vector<12x128xf32>
    %45 = arith.select %39, %44, %29 : vector<12x128xi1>, vector<12x128xf32>
    %c2_15 = arith.constant 2 : index
    %46 = memref.load %arg5[%c2_15] : memref<16xf32, #tpu.memory_space<smem>>
    %47 = vector.broadcast %46 : f32 to vector<12x128xf32>
    %48 = arith.select %39, %47, %33 : vector<12x128xi1>, vector<12x128xf32>
    %c2_16 = arith.constant 2 : index
    %49 = memref.load %arg6[%c2_16] : memref<16xf32, #tpu.memory_space<smem>>
    %50 = vector.broadcast %49 : f32 to vector<12x128xf32>
    %51 = arith.select %39, %50, %37 : vector<12x128xi1>, vector<12x128xf32>
    %cst_17 = arith.constant 3.000000e+00 : f32
    %52 = vector.broadcast %cst_17 : f32 to vector<12x128xf32>
    %53 = arith.cmpf oeq, %14, %52 : vector<12x128xf32>
    %c3 = arith.constant 3 : index
    %54 = memref.load %arg3[%c3] : memref<16xf32, #tpu.memory_space<smem>>
    %55 = vector.broadcast %54 : f32 to vector<12x128xf32>
    %56 = arith.select %53, %55, %42 : vector<12x128xi1>, vector<12x128xf32>
    %c3_18 = arith.constant 3 : index
    %57 = memref.load %arg4[%c3_18] : memref<16xf32, #tpu.memory_space<smem>>
    %58 = vector.broadcast %57 : f32 to vector<12x128xf32>
    %59 = arith.select %53, %58, %45 : vector<12x128xi1>, vector<12x128xf32>
    %c3_19 = arith.constant 3 : index
    %60 = memref.load %arg5[%c3_19] : memref<16xf32, #tpu.memory_space<smem>>
    %61 = vector.broadcast %60 : f32 to vector<12x128xf32>
    %62 = arith.select %53, %61, %48 : vector<12x128xi1>, vector<12x128xf32>
    %c3_20 = arith.constant 3 : index
    %63 = memref.load %arg6[%c3_20] : memref<16xf32, #tpu.memory_space<smem>>
    %64 = vector.broadcast %63 : f32 to vector<12x128xf32>
    %65 = arith.select %53, %64, %51 : vector<12x128xi1>, vector<12x128xf32>
    %cst_21 = arith.constant 4.000000e+00 : f32
    %66 = vector.broadcast %cst_21 : f32 to vector<12x128xf32>
    %67 = arith.cmpf oeq, %14, %66 : vector<12x128xf32>
    %c4 = arith.constant 4 : index
    %68 = memref.load %arg3[%c4] : memref<16xf32, #tpu.memory_space<smem>>
    %69 = vector.broadcast %68 : f32 to vector<12x128xf32>
    %70 = arith.select %67, %69, %56 : vector<12x128xi1>, vector<12x128xf32>
    %c4_22 = arith.constant 4 : index
    %71 = memref.load %arg4[%c4_22] : memref<16xf32, #tpu.memory_space<smem>>
    %72 = vector.broadcast %71 : f32 to vector<12x128xf32>
    %73 = arith.select %67, %72, %59 : vector<12x128xi1>, vector<12x128xf32>
    %c4_23 = arith.constant 4 : index
    %74 = memref.load %arg5[%c4_23] : memref<16xf32, #tpu.memory_space<smem>>
    %75 = vector.broadcast %74 : f32 to vector<12x128xf32>
    %76 = arith.select %67, %75, %62 : vector<12x128xi1>, vector<12x128xf32>
    %c4_24 = arith.constant 4 : index
    %77 = memref.load %arg6[%c4_24] : memref<16xf32, #tpu.memory_space<smem>>
    %78 = vector.broadcast %77 : f32 to vector<12x128xf32>
    %79 = arith.select %67, %78, %65 : vector<12x128xi1>, vector<12x128xf32>
    %cst_25 = arith.constant 5.000000e+00 : f32
    %80 = vector.broadcast %cst_25 : f32 to vector<12x128xf32>
    %81 = arith.cmpf oeq, %14, %80 : vector<12x128xf32>
    %c5 = arith.constant 5 : index
    %82 = memref.load %arg3[%c5] : memref<16xf32, #tpu.memory_space<smem>>
    %83 = vector.broadcast %82 : f32 to vector<12x128xf32>
    %84 = arith.select %81, %83, %70 : vector<12x128xi1>, vector<12x128xf32>
    %c5_26 = arith.constant 5 : index
    %85 = memref.load %arg4[%c5_26] : memref<16xf32, #tpu.memory_space<smem>>
    %86 = vector.broadcast %85 : f32 to vector<12x128xf32>
    %87 = arith.select %81, %86, %73 : vector<12x128xi1>, vector<12x128xf32>
    %c5_27 = arith.constant 5 : index
    %88 = memref.load %arg5[%c5_27] : memref<16xf32, #tpu.memory_space<smem>>
    %89 = vector.broadcast %88 : f32 to vector<12x128xf32>
    %90 = arith.select %81, %89, %76 : vector<12x128xi1>, vector<12x128xf32>
    %c5_28 = arith.constant 5 : index
    %91 = memref.load %arg6[%c5_28] : memref<16xf32, #tpu.memory_space<smem>>
    %92 = vector.broadcast %91 : f32 to vector<12x128xf32>
    %93 = arith.select %81, %92, %79 : vector<12x128xi1>, vector<12x128xf32>
    %cst_29 = arith.constant 6.000000e+00 : f32
    %94 = vector.broadcast %cst_29 : f32 to vector<12x128xf32>
    %95 = arith.cmpf oeq, %14, %94 : vector<12x128xf32>
    %c6 = arith.constant 6 : index
    %96 = memref.load %arg3[%c6] : memref<16xf32, #tpu.memory_space<smem>>
    %97 = vector.broadcast %96 : f32 to vector<12x128xf32>
    %98 = arith.select %95, %97, %84 : vector<12x128xi1>, vector<12x128xf32>
    %c6_30 = arith.constant 6 : index
    %99 = memref.load %arg4[%c6_30] : memref<16xf32, #tpu.memory_space<smem>>
    %100 = vector.broadcast %99 : f32 to vector<12x128xf32>
    %101 = arith.select %95, %100, %87 : vector<12x128xi1>, vector<12x128xf32>
    %c6_31 = arith.constant 6 : index
    %102 = memref.load %arg5[%c6_31] : memref<16xf32, #tpu.memory_space<smem>>
    %103 = vector.broadcast %102 : f32 to vector<12x128xf32>
    %104 = arith.select %95, %103, %90 : vector<12x128xi1>, vector<12x128xf32>
    %c6_32 = arith.constant 6 : index
    %105 = memref.load %arg6[%c6_32] : memref<16xf32, #tpu.memory_space<smem>>
    %106 = vector.broadcast %105 : f32 to vector<12x128xf32>
    %107 = arith.select %95, %106, %93 : vector<12x128xi1>, vector<12x128xf32>
    %cst_33 = arith.constant 7.000000e+00 : f32
    %108 = vector.broadcast %cst_33 : f32 to vector<12x128xf32>
    %109 = arith.cmpf oeq, %14, %108 : vector<12x128xf32>
    %c7 = arith.constant 7 : index
    %110 = memref.load %arg3[%c7] : memref<16xf32, #tpu.memory_space<smem>>
    %111 = vector.broadcast %110 : f32 to vector<12x128xf32>
    %112 = arith.select %109, %111, %98 : vector<12x128xi1>, vector<12x128xf32>
    %c7_34 = arith.constant 7 : index
    %113 = memref.load %arg4[%c7_34] : memref<16xf32, #tpu.memory_space<smem>>
    %114 = vector.broadcast %113 : f32 to vector<12x128xf32>
    %115 = arith.select %109, %114, %101 : vector<12x128xi1>, vector<12x128xf32>
    %c7_35 = arith.constant 7 : index
    %116 = memref.load %arg5[%c7_35] : memref<16xf32, #tpu.memory_space<smem>>
    %117 = vector.broadcast %116 : f32 to vector<12x128xf32>
    %118 = arith.select %109, %117, %104 : vector<12x128xi1>, vector<12x128xf32>
    %c7_36 = arith.constant 7 : index
    %119 = memref.load %arg6[%c7_36] : memref<16xf32, #tpu.memory_space<smem>>
    %120 = vector.broadcast %119 : f32 to vector<12x128xf32>
    %121 = arith.select %109, %120, %107 : vector<12x128xi1>, vector<12x128xf32>
    %cst_37 = arith.constant 8.000000e+00 : f32
    %122 = vector.broadcast %cst_37 : f32 to vector<12x128xf32>
    %123 = arith.cmpf oeq, %14, %122 : vector<12x128xf32>
    %c8 = arith.constant 8 : index
    %124 = memref.load %arg3[%c8] : memref<16xf32, #tpu.memory_space<smem>>
    %125 = vector.broadcast %124 : f32 to vector<12x128xf32>
    %126 = arith.select %123, %125, %112 : vector<12x128xi1>, vector<12x128xf32>
    %c8_38 = arith.constant 8 : index
    %127 = memref.load %arg4[%c8_38] : memref<16xf32, #tpu.memory_space<smem>>
    %128 = vector.broadcast %127 : f32 to vector<12x128xf32>
    %129 = arith.select %123, %128, %115 : vector<12x128xi1>, vector<12x128xf32>
    %c8_39 = arith.constant 8 : index
    %130 = memref.load %arg5[%c8_39] : memref<16xf32, #tpu.memory_space<smem>>
    %131 = vector.broadcast %130 : f32 to vector<12x128xf32>
    %132 = arith.select %123, %131, %118 : vector<12x128xi1>, vector<12x128xf32>
    %c8_40 = arith.constant 8 : index
    %133 = memref.load %arg6[%c8_40] : memref<16xf32, #tpu.memory_space<smem>>
    %134 = vector.broadcast %133 : f32 to vector<12x128xf32>
    %135 = arith.select %123, %134, %121 : vector<12x128xi1>, vector<12x128xf32>
    %cst_41 = arith.constant 9.000000e+00 : f32
    %136 = vector.broadcast %cst_41 : f32 to vector<12x128xf32>
    %137 = arith.cmpf oeq, %14, %136 : vector<12x128xf32>
    %c9 = arith.constant 9 : index
    %138 = memref.load %arg3[%c9] : memref<16xf32, #tpu.memory_space<smem>>
    %139 = vector.broadcast %138 : f32 to vector<12x128xf32>
    %140 = arith.select %137, %139, %126 : vector<12x128xi1>, vector<12x128xf32>
    %c9_42 = arith.constant 9 : index
    %141 = memref.load %arg4[%c9_42] : memref<16xf32, #tpu.memory_space<smem>>
    %142 = vector.broadcast %141 : f32 to vector<12x128xf32>
    %143 = arith.select %137, %142, %129 : vector<12x128xi1>, vector<12x128xf32>
    %c9_43 = arith.constant 9 : index
    %144 = memref.load %arg5[%c9_43] : memref<16xf32, #tpu.memory_space<smem>>
    %145 = vector.broadcast %144 : f32 to vector<12x128xf32>
    %146 = arith.select %137, %145, %132 : vector<12x128xi1>, vector<12x128xf32>
    %c9_44 = arith.constant 9 : index
    %147 = memref.load %arg6[%c9_44] : memref<16xf32, #tpu.memory_space<smem>>
    %148 = vector.broadcast %147 : f32 to vector<12x128xf32>
    %149 = arith.select %137, %148, %135 : vector<12x128xi1>, vector<12x128xf32>
    %cst_45 = arith.constant 1.000000e+01 : f32
    %150 = vector.broadcast %cst_45 : f32 to vector<12x128xf32>
    %151 = arith.cmpf oeq, %14, %150 : vector<12x128xf32>
    %c10 = arith.constant 10 : index
    %152 = memref.load %arg3[%c10] : memref<16xf32, #tpu.memory_space<smem>>
    %153 = vector.broadcast %152 : f32 to vector<12x128xf32>
    %154 = arith.select %151, %153, %140 : vector<12x128xi1>, vector<12x128xf32>
    %c10_46 = arith.constant 10 : index
    %155 = memref.load %arg4[%c10_46] : memref<16xf32, #tpu.memory_space<smem>>
    %156 = vector.broadcast %155 : f32 to vector<12x128xf32>
    %157 = arith.select %151, %156, %143 : vector<12x128xi1>, vector<12x128xf32>
    %c10_47 = arith.constant 10 : index
    %158 = memref.load %arg5[%c10_47] : memref<16xf32, #tpu.memory_space<smem>>
    %159 = vector.broadcast %158 : f32 to vector<12x128xf32>
    %160 = arith.select %151, %159, %146 : vector<12x128xi1>, vector<12x128xf32>
    %c10_48 = arith.constant 10 : index
    %161 = memref.load %arg6[%c10_48] : memref<16xf32, #tpu.memory_space<smem>>
    %162 = vector.broadcast %161 : f32 to vector<12x128xf32>
    %163 = arith.select %151, %162, %149 : vector<12x128xi1>, vector<12x128xf32>
    %cst_49 = arith.constant 1.100000e+01 : f32
    %164 = vector.broadcast %cst_49 : f32 to vector<12x128xf32>
    %165 = arith.cmpf oeq, %14, %164 : vector<12x128xf32>
    %c11 = arith.constant 11 : index
    %166 = memref.load %arg3[%c11] : memref<16xf32, #tpu.memory_space<smem>>
    %167 = vector.broadcast %166 : f32 to vector<12x128xf32>
    %168 = arith.select %165, %167, %154 : vector<12x128xi1>, vector<12x128xf32>
    %c11_50 = arith.constant 11 : index
    %169 = memref.load %arg4[%c11_50] : memref<16xf32, #tpu.memory_space<smem>>
    %170 = vector.broadcast %169 : f32 to vector<12x128xf32>
    %171 = arith.select %165, %170, %157 : vector<12x128xi1>, vector<12x128xf32>
    %c11_51 = arith.constant 11 : index
    %172 = memref.load %arg5[%c11_51] : memref<16xf32, #tpu.memory_space<smem>>
    %173 = vector.broadcast %172 : f32 to vector<12x128xf32>
    %174 = arith.select %165, %173, %160 : vector<12x128xi1>, vector<12x128xf32>
    %c11_52 = arith.constant 11 : index
    %175 = memref.load %arg6[%c11_52] : memref<16xf32, #tpu.memory_space<smem>>
    %176 = vector.broadcast %175 : f32 to vector<12x128xf32>
    %177 = arith.select %165, %176, %163 : vector<12x128xi1>, vector<12x128xf32>
    %cst_53 = arith.constant 1.200000e+01 : f32
    %178 = vector.broadcast %cst_53 : f32 to vector<12x128xf32>
    %179 = arith.cmpf oeq, %14, %178 : vector<12x128xf32>
    %c12 = arith.constant 12 : index
    %180 = memref.load %arg3[%c12] : memref<16xf32, #tpu.memory_space<smem>>
    %181 = vector.broadcast %180 : f32 to vector<12x128xf32>
    %182 = arith.select %179, %181, %168 : vector<12x128xi1>, vector<12x128xf32>
    %c12_54 = arith.constant 12 : index
    %183 = memref.load %arg4[%c12_54] : memref<16xf32, #tpu.memory_space<smem>>
    %184 = vector.broadcast %183 : f32 to vector<12x128xf32>
    %185 = arith.select %179, %184, %171 : vector<12x128xi1>, vector<12x128xf32>
    %c12_55 = arith.constant 12 : index
    %186 = memref.load %arg5[%c12_55] : memref<16xf32, #tpu.memory_space<smem>>
    %187 = vector.broadcast %186 : f32 to vector<12x128xf32>
    %188 = arith.select %179, %187, %174 : vector<12x128xi1>, vector<12x128xf32>
    %c12_56 = arith.constant 12 : index
    %189 = memref.load %arg6[%c12_56] : memref<16xf32, #tpu.memory_space<smem>>
    %190 = vector.broadcast %189 : f32 to vector<12x128xf32>
    %191 = arith.select %179, %190, %177 : vector<12x128xi1>, vector<12x128xf32>
    %cst_57 = arith.constant 1.300000e+01 : f32
    %192 = vector.broadcast %cst_57 : f32 to vector<12x128xf32>
    %193 = arith.cmpf oeq, %14, %192 : vector<12x128xf32>
    %c13 = arith.constant 13 : index
    %194 = memref.load %arg3[%c13] : memref<16xf32, #tpu.memory_space<smem>>
    %195 = vector.broadcast %194 : f32 to vector<12x128xf32>
    %196 = arith.select %193, %195, %182 : vector<12x128xi1>, vector<12x128xf32>
    %c13_58 = arith.constant 13 : index
    %197 = memref.load %arg4[%c13_58] : memref<16xf32, #tpu.memory_space<smem>>
    %198 = vector.broadcast %197 : f32 to vector<12x128xf32>
    %199 = arith.select %193, %198, %185 : vector<12x128xi1>, vector<12x128xf32>
    %c13_59 = arith.constant 13 : index
    %200 = memref.load %arg5[%c13_59] : memref<16xf32, #tpu.memory_space<smem>>
    %201 = vector.broadcast %200 : f32 to vector<12x128xf32>
    %202 = arith.select %193, %201, %188 : vector<12x128xi1>, vector<12x128xf32>
    %c13_60 = arith.constant 13 : index
    %203 = memref.load %arg6[%c13_60] : memref<16xf32, #tpu.memory_space<smem>>
    %204 = vector.broadcast %203 : f32 to vector<12x128xf32>
    %205 = arith.select %193, %204, %191 : vector<12x128xi1>, vector<12x128xf32>
    %cst_61 = arith.constant 1.400000e+01 : f32
    %206 = vector.broadcast %cst_61 : f32 to vector<12x128xf32>
    %207 = arith.cmpf oeq, %14, %206 : vector<12x128xf32>
    %c14 = arith.constant 14 : index
    %208 = memref.load %arg3[%c14] : memref<16xf32, #tpu.memory_space<smem>>
    %209 = vector.broadcast %208 : f32 to vector<12x128xf32>
    %210 = arith.select %207, %209, %196 : vector<12x128xi1>, vector<12x128xf32>
    %c14_62 = arith.constant 14 : index
    %211 = memref.load %arg4[%c14_62] : memref<16xf32, #tpu.memory_space<smem>>
    %212 = vector.broadcast %211 : f32 to vector<12x128xf32>
    %213 = arith.select %207, %212, %199 : vector<12x128xi1>, vector<12x128xf32>
    %c14_63 = arith.constant 14 : index
    %214 = memref.load %arg5[%c14_63] : memref<16xf32, #tpu.memory_space<smem>>
    %215 = vector.broadcast %214 : f32 to vector<12x128xf32>
    %216 = arith.select %207, %215, %202 : vector<12x128xi1>, vector<12x128xf32>
    %c14_64 = arith.constant 14 : index
    %217 = memref.load %arg6[%c14_64] : memref<16xf32, #tpu.memory_space<smem>>
    %218 = vector.broadcast %217 : f32 to vector<12x128xf32>
    %219 = arith.select %207, %218, %205 : vector<12x128xi1>, vector<12x128xf32>
    %cst_65 = arith.constant 1.500000e+01 : f32
    %220 = vector.broadcast %cst_65 : f32 to vector<12x128xf32>
    %221 = arith.cmpf oeq, %14, %220 : vector<12x128xf32>
    %c15 = arith.constant 15 : index
    %222 = memref.load %arg3[%c15] : memref<16xf32, #tpu.memory_space<smem>>
    %223 = vector.broadcast %222 : f32 to vector<12x128xf32>
    %224 = arith.select %221, %223, %210 : vector<12x128xi1>, vector<12x128xf32>
    %c15_66 = arith.constant 15 : index
    %225 = memref.load %arg4[%c15_66] : memref<16xf32, #tpu.memory_space<smem>>
    %226 = vector.broadcast %225 : f32 to vector<12x128xf32>
    %227 = arith.select %221, %226, %213 : vector<12x128xi1>, vector<12x128xf32>
    %c15_67 = arith.constant 15 : index
    %228 = memref.load %arg5[%c15_67] : memref<16xf32, #tpu.memory_space<smem>>
    %229 = vector.broadcast %228 : f32 to vector<12x128xf32>
    %230 = arith.select %221, %229, %216 : vector<12x128xi1>, vector<12x128xf32>
    %c15_68 = arith.constant 15 : index
    %231 = memref.load %arg6[%c15_68] : memref<16xf32, #tpu.memory_space<smem>>
    %232 = vector.broadcast %231 : f32 to vector<12x128xf32>
    %233 = arith.select %221, %232, %219 : vector<12x128xi1>, vector<12x128xf32>
    %234 = arith.mulf %15, %227 : vector<12x128xf32>
    %235 = arith.addf %224, %234 : vector<12x128xf32>
    %236 = arith.mulf %15, %233 : vector<12x128xf32>
    %237 = arith.addf %230, %236 : vector<12x128xf32>
    %cst_69 = arith.constant 1.700000e+01 : f32
    %238 = vector.broadcast %cst_69 : f32 to vector<12x128xf32>
    %239 = arith.cmpf olt, %12, %238 : vector<12x128xf32>
    %cst_70 = arith.constant 0.000000e+00 : f32
    %240 = vector.broadcast %cst_70 : f32 to vector<12x128xf32>
    %241 = arith.select %239, %235, %240 : vector<12x128xi1>, vector<12x128xf32>
    %242 = math.cos %237 : vector<12x128xf32>
    %243 = math.sin %237 : vector<12x128xf32>
    %244 = arith.mulf %7, %243 : vector<12x128xf32>
    %245 = arith.addf %242, %244 : vector<12x128xf32>
    %246 = arith.mulf %241, %245 : vector<12x128xf32>
    %cst_71 = arith.constant 0.333333343 : f32
    %247 = vector.broadcast %cst_71 : f32 to vector<12x128xf32>
    %248 = arith.mulf %246, %247 : vector<12x128xf32>
    %249 = arith.addf %2, %248 : vector<12x128xf32>
    %250 = vector.broadcast %0 : f32 to vector<12x128xf32>
    %251 = arith.mulf %249, %250 : vector<12x128xf32>
    %252 = vector.broadcast %1 : f32 to vector<12x128xf32>
    %253 = arith.addf %251, %252 : vector<12x128xf32>
    %254 = math.tanh %253 : vector<12x128xf32>
    %cst_72 = arith.constant 1.000000e+00 : f32
    %255 = vector.broadcast %cst_72 : f32 to vector<12x128xf32>
    %256 = arith.addf %255, %254 : vector<12x128xf32>
    %cst_73 = arith.constant 8.500000e+00 : f32
    %257 = vector.broadcast %cst_73 : f32 to vector<12x128xf32>
    %258 = arith.mulf %256, %257 : vector<12x128xf32>
    %259 = math.floor %258 : vector<12x128xf32>
    %cst_74 = arith.constant 1.500000e+01 : f32
    %260 = vector.broadcast %cst_74 : f32 to vector<12x128xf32>
    %261 = arith.minimumf %259, %260 : vector<12x128xf32>
    %262 = arith.subf %258, %261 : vector<12x128xf32>
    %c0_75 = arith.constant 0 : index
    %263 = memref.load %arg3[%c0_75] : memref<16xf32, #tpu.memory_space<smem>>
    %c0_76 = arith.constant 0 : index
    %264 = memref.load %arg4[%c0_76] : memref<16xf32, #tpu.memory_space<smem>>
    %c0_77 = arith.constant 0 : index
    %265 = memref.load %arg5[%c0_77] : memref<16xf32, #tpu.memory_space<smem>>
    %c0_78 = arith.constant 0 : index
    %266 = memref.load %arg6[%c0_78] : memref<16xf32, #tpu.memory_space<smem>>
    %cst_79 = arith.constant 1.000000e+00 : f32
    %267 = vector.broadcast %cst_79 : f32 to vector<12x128xf32>
    %268 = arith.cmpf oeq, %261, %267 : vector<12x128xf32>
    %c1_80 = arith.constant 1 : index
    %269 = memref.load %arg3[%c1_80] : memref<16xf32, #tpu.memory_space<smem>>
    %270 = vector.broadcast %269 : f32 to vector<12x128xf32>
    %271 = vector.broadcast %263 : f32 to vector<12x128xf32>
    %272 = arith.select %268, %270, %271 : vector<12x128xi1>, vector<12x128xf32>
    %c1_81 = arith.constant 1 : index
    %273 = memref.load %arg4[%c1_81] : memref<16xf32, #tpu.memory_space<smem>>
    %274 = vector.broadcast %273 : f32 to vector<12x128xf32>
    %275 = vector.broadcast %264 : f32 to vector<12x128xf32>
    %276 = arith.select %268, %274, %275 : vector<12x128xi1>, vector<12x128xf32>
    %c1_82 = arith.constant 1 : index
    %277 = memref.load %arg5[%c1_82] : memref<16xf32, #tpu.memory_space<smem>>
    %278 = vector.broadcast %277 : f32 to vector<12x128xf32>
    %279 = vector.broadcast %265 : f32 to vector<12x128xf32>
    %280 = arith.select %268, %278, %279 : vector<12x128xi1>, vector<12x128xf32>
    %c1_83 = arith.constant 1 : index
    %281 = memref.load %arg6[%c1_83] : memref<16xf32, #tpu.memory_space<smem>>
    %282 = vector.broadcast %281 : f32 to vector<12x128xf32>
    %283 = vector.broadcast %266 : f32 to vector<12x128xf32>
    %284 = arith.select %268, %282, %283 : vector<12x128xi1>, vector<12x128xf32>
    %cst_84 = arith.constant 2.000000e+00 : f32
    %285 = vector.broadcast %cst_84 : f32 to vector<12x128xf32>
    %286 = arith.cmpf oeq, %261, %285 : vector<12x128xf32>
    %c2_85 = arith.constant 2 : index
    %287 = memref.load %arg3[%c2_85] : memref<16xf32, #tpu.memory_space<smem>>
    %288 = vector.broadcast %287 : f32 to vector<12x128xf32>
    %289 = arith.select %286, %288, %272 : vector<12x128xi1>, vector<12x128xf32>
    %c2_86 = arith.constant 2 : index
    %290 = memref.load %arg4[%c2_86] : memref<16xf32, #tpu.memory_space<smem>>
    %291 = vector.broadcast %290 : f32 to vector<12x128xf32>
    %292 = arith.select %286, %291, %276 : vector<12x128xi1>, vector<12x128xf32>
    %c2_87 = arith.constant 2 : index
    %293 = memref.load %arg5[%c2_87] : memref<16xf32, #tpu.memory_space<smem>>
    %294 = vector.broadcast %293 : f32 to vector<12x128xf32>
    %295 = arith.select %286, %294, %280 : vector<12x128xi1>, vector<12x128xf32>
    %c2_88 = arith.constant 2 : index
    %296 = memref.load %arg6[%c2_88] : memref<16xf32, #tpu.memory_space<smem>>
    %297 = vector.broadcast %296 : f32 to vector<12x128xf32>
    %298 = arith.select %286, %297, %284 : vector<12x128xi1>, vector<12x128xf32>
    %cst_89 = arith.constant 3.000000e+00 : f32
    %299 = vector.broadcast %cst_89 : f32 to vector<12x128xf32>
    %300 = arith.cmpf oeq, %261, %299 : vector<12x128xf32>
    %c3_90 = arith.constant 3 : index
    %301 = memref.load %arg3[%c3_90] : memref<16xf32, #tpu.memory_space<smem>>
    %302 = vector.broadcast %301 : f32 to vector<12x128xf32>
    %303 = arith.select %300, %302, %289 : vector<12x128xi1>, vector<12x128xf32>
    %c3_91 = arith.constant 3 : index
    %304 = memref.load %arg4[%c3_91] : memref<16xf32, #tpu.memory_space<smem>>
    %305 = vector.broadcast %304 : f32 to vector<12x128xf32>
    %306 = arith.select %300, %305, %292 : vector<12x128xi1>, vector<12x128xf32>
    %c3_92 = arith.constant 3 : index
    %307 = memref.load %arg5[%c3_92] : memref<16xf32, #tpu.memory_space<smem>>
    %308 = vector.broadcast %307 : f32 to vector<12x128xf32>
    %309 = arith.select %300, %308, %295 : vector<12x128xi1>, vector<12x128xf32>
    %c3_93 = arith.constant 3 : index
    %310 = memref.load %arg6[%c3_93] : memref<16xf32, #tpu.memory_space<smem>>
    %311 = vector.broadcast %310 : f32 to vector<12x128xf32>
    %312 = arith.select %300, %311, %298 : vector<12x128xi1>, vector<12x128xf32>
    %cst_94 = arith.constant 4.000000e+00 : f32
    %313 = vector.broadcast %cst_94 : f32 to vector<12x128xf32>
    %314 = arith.cmpf oeq, %261, %313 : vector<12x128xf32>
    %c4_95 = arith.constant 4 : index
    %315 = memref.load %arg3[%c4_95] : memref<16xf32, #tpu.memory_space<smem>>
    %316 = vector.broadcast %315 : f32 to vector<12x128xf32>
    %317 = arith.select %314, %316, %303 : vector<12x128xi1>, vector<12x128xf32>
    %c4_96 = arith.constant 4 : index
    %318 = memref.load %arg4[%c4_96] : memref<16xf32, #tpu.memory_space<smem>>
    %319 = vector.broadcast %318 : f32 to vector<12x128xf32>
    %320 = arith.select %314, %319, %306 : vector<12x128xi1>, vector<12x128xf32>
    %c4_97 = arith.constant 4 : index
    %321 = memref.load %arg5[%c4_97] : memref<16xf32, #tpu.memory_space<smem>>
    %322 = vector.broadcast %321 : f32 to vector<12x128xf32>
    %323 = arith.select %314, %322, %309 : vector<12x128xi1>, vector<12x128xf32>
    %c4_98 = arith.constant 4 : index
    %324 = memref.load %arg6[%c4_98] : memref<16xf32, #tpu.memory_space<smem>>
    %325 = vector.broadcast %324 : f32 to vector<12x128xf32>
    %326 = arith.select %314, %325, %312 : vector<12x128xi1>, vector<12x128xf32>
    %cst_99 = arith.constant 5.000000e+00 : f32
    %327 = vector.broadcast %cst_99 : f32 to vector<12x128xf32>
    %328 = arith.cmpf oeq, %261, %327 : vector<12x128xf32>
    %c5_100 = arith.constant 5 : index
    %329 = memref.load %arg3[%c5_100] : memref<16xf32, #tpu.memory_space<smem>>
    %330 = vector.broadcast %329 : f32 to vector<12x128xf32>
    %331 = arith.select %328, %330, %317 : vector<12x128xi1>, vector<12x128xf32>
    %c5_101 = arith.constant 5 : index
    %332 = memref.load %arg4[%c5_101] : memref<16xf32, #tpu.memory_space<smem>>
    %333 = vector.broadcast %332 : f32 to vector<12x128xf32>
    %334 = arith.select %328, %333, %320 : vector<12x128xi1>, vector<12x128xf32>
    %c5_102 = arith.constant 5 : index
    %335 = memref.load %arg5[%c5_102] : memref<16xf32, #tpu.memory_space<smem>>
    %336 = vector.broadcast %335 : f32 to vector<12x128xf32>
    %337 = arith.select %328, %336, %323 : vector<12x128xi1>, vector<12x128xf32>
    %c5_103 = arith.constant 5 : index
    %338 = memref.load %arg6[%c5_103] : memref<16xf32, #tpu.memory_space<smem>>
    %339 = vector.broadcast %338 : f32 to vector<12x128xf32>
    %340 = arith.select %328, %339, %326 : vector<12x128xi1>, vector<12x128xf32>
    %cst_104 = arith.constant 6.000000e+00 : f32
    %341 = vector.broadcast %cst_104 : f32 to vector<12x128xf32>
    %342 = arith.cmpf oeq, %261, %341 : vector<12x128xf32>
    %c6_105 = arith.constant 6 : index
    %343 = memref.load %arg3[%c6_105] : memref<16xf32, #tpu.memory_space<smem>>
    %344 = vector.broadcast %343 : f32 to vector<12x128xf32>
    %345 = arith.select %342, %344, %331 : vector<12x128xi1>, vector<12x128xf32>
    %c6_106 = arith.constant 6 : index
    %346 = memref.load %arg4[%c6_106] : memref<16xf32, #tpu.memory_space<smem>>
    %347 = vector.broadcast %346 : f32 to vector<12x128xf32>
    %348 = arith.select %342, %347, %334 : vector<12x128xi1>, vector<12x128xf32>
    %c6_107 = arith.constant 6 : index
    %349 = memref.load %arg5[%c6_107] : memref<16xf32, #tpu.memory_space<smem>>
    %350 = vector.broadcast %349 : f32 to vector<12x128xf32>
    %351 = arith.select %342, %350, %337 : vector<12x128xi1>, vector<12x128xf32>
    %c6_108 = arith.constant 6 : index
    %352 = memref.load %arg6[%c6_108] : memref<16xf32, #tpu.memory_space<smem>>
    %353 = vector.broadcast %352 : f32 to vector<12x128xf32>
    %354 = arith.select %342, %353, %340 : vector<12x128xi1>, vector<12x128xf32>
    %cst_109 = arith.constant 7.000000e+00 : f32
    %355 = vector.broadcast %cst_109 : f32 to vector<12x128xf32>
    %356 = arith.cmpf oeq, %261, %355 : vector<12x128xf32>
    %c7_110 = arith.constant 7 : index
    %357 = memref.load %arg3[%c7_110] : memref<16xf32, #tpu.memory_space<smem>>
    %358 = vector.broadcast %357 : f32 to vector<12x128xf32>
    %359 = arith.select %356, %358, %345 : vector<12x128xi1>, vector<12x128xf32>
    %c7_111 = arith.constant 7 : index
    %360 = memref.load %arg4[%c7_111] : memref<16xf32, #tpu.memory_space<smem>>
    %361 = vector.broadcast %360 : f32 to vector<12x128xf32>
    %362 = arith.select %356, %361, %348 : vector<12x128xi1>, vector<12x128xf32>
    %c7_112 = arith.constant 7 : index
    %363 = memref.load %arg5[%c7_112] : memref<16xf32, #tpu.memory_space<smem>>
    %364 = vector.broadcast %363 : f32 to vector<12x128xf32>
    %365 = arith.select %356, %364, %351 : vector<12x128xi1>, vector<12x128xf32>
    %c7_113 = arith.constant 7 : index
    %366 = memref.load %arg6[%c7_113] : memref<16xf32, #tpu.memory_space<smem>>
    %367 = vector.broadcast %366 : f32 to vector<12x128xf32>
    %368 = arith.select %356, %367, %354 : vector<12x128xi1>, vector<12x128xf32>
    %cst_114 = arith.constant 8.000000e+00 : f32
    %369 = vector.broadcast %cst_114 : f32 to vector<12x128xf32>
    %370 = arith.cmpf oeq, %261, %369 : vector<12x128xf32>
    %c8_115 = arith.constant 8 : index
    %371 = memref.load %arg3[%c8_115] : memref<16xf32, #tpu.memory_space<smem>>
    %372 = vector.broadcast %371 : f32 to vector<12x128xf32>
    %373 = arith.select %370, %372, %359 : vector<12x128xi1>, vector<12x128xf32>
    %c8_116 = arith.constant 8 : index
    %374 = memref.load %arg4[%c8_116] : memref<16xf32, #tpu.memory_space<smem>>
    %375 = vector.broadcast %374 : f32 to vector<12x128xf32>
    %376 = arith.select %370, %375, %362 : vector<12x128xi1>, vector<12x128xf32>
    %c8_117 = arith.constant 8 : index
    %377 = memref.load %arg5[%c8_117] : memref<16xf32, #tpu.memory_space<smem>>
    %378 = vector.broadcast %377 : f32 to vector<12x128xf32>
    %379 = arith.select %370, %378, %365 : vector<12x128xi1>, vector<12x128xf32>
    %c8_118 = arith.constant 8 : index
    %380 = memref.load %arg6[%c8_118] : memref<16xf32, #tpu.memory_space<smem>>
    %381 = vector.broadcast %380 : f32 to vector<12x128xf32>
    %382 = arith.select %370, %381, %368 : vector<12x128xi1>, vector<12x128xf32>
    %cst_119 = arith.constant 9.000000e+00 : f32
    %383 = vector.broadcast %cst_119 : f32 to vector<12x128xf32>
    %384 = arith.cmpf oeq, %261, %383 : vector<12x128xf32>
    %c9_120 = arith.constant 9 : index
    %385 = memref.load %arg3[%c9_120] : memref<16xf32, #tpu.memory_space<smem>>
    %386 = vector.broadcast %385 : f32 to vector<12x128xf32>
    %387 = arith.select %384, %386, %373 : vector<12x128xi1>, vector<12x128xf32>
    %c9_121 = arith.constant 9 : index
    %388 = memref.load %arg4[%c9_121] : memref<16xf32, #tpu.memory_space<smem>>
    %389 = vector.broadcast %388 : f32 to vector<12x128xf32>
    %390 = arith.select %384, %389, %376 : vector<12x128xi1>, vector<12x128xf32>
    %c9_122 = arith.constant 9 : index
    %391 = memref.load %arg5[%c9_122] : memref<16xf32, #tpu.memory_space<smem>>
    %392 = vector.broadcast %391 : f32 to vector<12x128xf32>
    %393 = arith.select %384, %392, %379 : vector<12x128xi1>, vector<12x128xf32>
    %c9_123 = arith.constant 9 : index
    %394 = memref.load %arg6[%c9_123] : memref<16xf32, #tpu.memory_space<smem>>
    %395 = vector.broadcast %394 : f32 to vector<12x128xf32>
    %396 = arith.select %384, %395, %382 : vector<12x128xi1>, vector<12x128xf32>
    %cst_124 = arith.constant 1.000000e+01 : f32
    %397 = vector.broadcast %cst_124 : f32 to vector<12x128xf32>
    %398 = arith.cmpf oeq, %261, %397 : vector<12x128xf32>
    %c10_125 = arith.constant 10 : index
    %399 = memref.load %arg3[%c10_125] : memref<16xf32, #tpu.memory_space<smem>>
    %400 = vector.broadcast %399 : f32 to vector<12x128xf32>
    %401 = arith.select %398, %400, %387 : vector<12x128xi1>, vector<12x128xf32>
    %c10_126 = arith.constant 10 : index
    %402 = memref.load %arg4[%c10_126] : memref<16xf32, #tpu.memory_space<smem>>
    %403 = vector.broadcast %402 : f32 to vector<12x128xf32>
    %404 = arith.select %398, %403, %390 : vector<12x128xi1>, vector<12x128xf32>
    %c10_127 = arith.constant 10 : index
    %405 = memref.load %arg5[%c10_127] : memref<16xf32, #tpu.memory_space<smem>>
    %406 = vector.broadcast %405 : f32 to vector<12x128xf32>
    %407 = arith.select %398, %406, %393 : vector<12x128xi1>, vector<12x128xf32>
    %c10_128 = arith.constant 10 : index
    %408 = memref.load %arg6[%c10_128] : memref<16xf32, #tpu.memory_space<smem>>
    %409 = vector.broadcast %408 : f32 to vector<12x128xf32>
    %410 = arith.select %398, %409, %396 : vector<12x128xi1>, vector<12x128xf32>
    %cst_129 = arith.constant 1.100000e+01 : f32
    %411 = vector.broadcast %cst_129 : f32 to vector<12x128xf32>
    %412 = arith.cmpf oeq, %261, %411 : vector<12x128xf32>
    %c11_130 = arith.constant 11 : index
    %413 = memref.load %arg3[%c11_130] : memref<16xf32, #tpu.memory_space<smem>>
    %414 = vector.broadcast %413 : f32 to vector<12x128xf32>
    %415 = arith.select %412, %414, %401 : vector<12x128xi1>, vector<12x128xf32>
    %c11_131 = arith.constant 11 : index
    %416 = memref.load %arg4[%c11_131] : memref<16xf32, #tpu.memory_space<smem>>
    %417 = vector.broadcast %416 : f32 to vector<12x128xf32>
    %418 = arith.select %412, %417, %404 : vector<12x128xi1>, vector<12x128xf32>
    %c11_132 = arith.constant 11 : index
    %419 = memref.load %arg5[%c11_132] : memref<16xf32, #tpu.memory_space<smem>>
    %420 = vector.broadcast %419 : f32 to vector<12x128xf32>
    %421 = arith.select %412, %420, %407 : vector<12x128xi1>, vector<12x128xf32>
    %c11_133 = arith.constant 11 : index
    %422 = memref.load %arg6[%c11_133] : memref<16xf32, #tpu.memory_space<smem>>
    %423 = vector.broadcast %422 : f32 to vector<12x128xf32>
    %424 = arith.select %412, %423, %410 : vector<12x128xi1>, vector<12x128xf32>
    %cst_134 = arith.constant 1.200000e+01 : f32
    %425 = vector.broadcast %cst_134 : f32 to vector<12x128xf32>
    %426 = arith.cmpf oeq, %261, %425 : vector<12x128xf32>
    %c12_135 = arith.constant 12 : index
    %427 = memref.load %arg3[%c12_135] : memref<16xf32, #tpu.memory_space<smem>>
    %428 = vector.broadcast %427 : f32 to vector<12x128xf32>
    %429 = arith.select %426, %428, %415 : vector<12x128xi1>, vector<12x128xf32>
    %c12_136 = arith.constant 12 : index
    %430 = memref.load %arg4[%c12_136] : memref<16xf32, #tpu.memory_space<smem>>
    %431 = vector.broadcast %430 : f32 to vector<12x128xf32>
    %432 = arith.select %426, %431, %418 : vector<12x128xi1>, vector<12x128xf32>
    %c12_137 = arith.constant 12 : index
    %433 = memref.load %arg5[%c12_137] : memref<16xf32, #tpu.memory_space<smem>>
    %434 = vector.broadcast %433 : f32 to vector<12x128xf32>
    %435 = arith.select %426, %434, %421 : vector<12x128xi1>, vector<12x128xf32>
    %c12_138 = arith.constant 12 : index
    %436 = memref.load %arg6[%c12_138] : memref<16xf32, #tpu.memory_space<smem>>
    %437 = vector.broadcast %436 : f32 to vector<12x128xf32>
    %438 = arith.select %426, %437, %424 : vector<12x128xi1>, vector<12x128xf32>
    %cst_139 = arith.constant 1.300000e+01 : f32
    %439 = vector.broadcast %cst_139 : f32 to vector<12x128xf32>
    %440 = arith.cmpf oeq, %261, %439 : vector<12x128xf32>
    %c13_140 = arith.constant 13 : index
    %441 = memref.load %arg3[%c13_140] : memref<16xf32, #tpu.memory_space<smem>>
    %442 = vector.broadcast %441 : f32 to vector<12x128xf32>
    %443 = arith.select %440, %442, %429 : vector<12x128xi1>, vector<12x128xf32>
    %c13_141 = arith.constant 13 : index
    %444 = memref.load %arg4[%c13_141] : memref<16xf32, #tpu.memory_space<smem>>
    %445 = vector.broadcast %444 : f32 to vector<12x128xf32>
    %446 = arith.select %440, %445, %432 : vector<12x128xi1>, vector<12x128xf32>
    %c13_142 = arith.constant 13 : index
    %447 = memref.load %arg5[%c13_142] : memref<16xf32, #tpu.memory_space<smem>>
    %448 = vector.broadcast %447 : f32 to vector<12x128xf32>
    %449 = arith.select %440, %448, %435 : vector<12x128xi1>, vector<12x128xf32>
    %c13_143 = arith.constant 13 : index
    %450 = memref.load %arg6[%c13_143] : memref<16xf32, #tpu.memory_space<smem>>
    %451 = vector.broadcast %450 : f32 to vector<12x128xf32>
    %452 = arith.select %440, %451, %438 : vector<12x128xi1>, vector<12x128xf32>
    %cst_144 = arith.constant 1.400000e+01 : f32
    %453 = vector.broadcast %cst_144 : f32 to vector<12x128xf32>
    %454 = arith.cmpf oeq, %261, %453 : vector<12x128xf32>
    %c14_145 = arith.constant 14 : index
    %455 = memref.load %arg3[%c14_145] : memref<16xf32, #tpu.memory_space<smem>>
    %456 = vector.broadcast %455 : f32 to vector<12x128xf32>
    %457 = arith.select %454, %456, %443 : vector<12x128xi1>, vector<12x128xf32>
    %c14_146 = arith.constant 14 : index
    %458 = memref.load %arg4[%c14_146] : memref<16xf32, #tpu.memory_space<smem>>
    %459 = vector.broadcast %458 : f32 to vector<12x128xf32>
    %460 = arith.select %454, %459, %446 : vector<12x128xi1>, vector<12x128xf32>
    %c14_147 = arith.constant 14 : index
    %461 = memref.load %arg5[%c14_147] : memref<16xf32, #tpu.memory_space<smem>>
    %462 = vector.broadcast %461 : f32 to vector<12x128xf32>
    %463 = arith.select %454, %462, %449 : vector<12x128xi1>, vector<12x128xf32>
    %c14_148 = arith.constant 14 : index
    %464 = memref.load %arg6[%c14_148] : memref<16xf32, #tpu.memory_space<smem>>
    %465 = vector.broadcast %464 : f32 to vector<12x128xf32>
    %466 = arith.select %454, %465, %452 : vector<12x128xi1>, vector<12x128xf32>
    %cst_149 = arith.constant 1.500000e+01 : f32
    %467 = vector.broadcast %cst_149 : f32 to vector<12x128xf32>
    %468 = arith.cmpf oeq, %261, %467 : vector<12x128xf32>
    %c15_150 = arith.constant 15 : index
    %469 = memref.load %arg3[%c15_150] : memref<16xf32, #tpu.memory_space<smem>>
    %470 = vector.broadcast %469 : f32 to vector<12x128xf32>
    %471 = arith.select %468, %470, %457 : vector<12x128xi1>, vector<12x128xf32>
    %c15_151 = arith.constant 15 : index
    %472 = memref.load %arg4[%c15_151] : memref<16xf32, #tpu.memory_space<smem>>
    %473 = vector.broadcast %472 : f32 to vector<12x128xf32>
    %474 = arith.select %468, %473, %460 : vector<12x128xi1>, vector<12x128xf32>
    %c15_152 = arith.constant 15 : index
    %475 = memref.load %arg5[%c15_152] : memref<16xf32, #tpu.memory_space<smem>>
    %476 = vector.broadcast %475 : f32 to vector<12x128xf32>
    %477 = arith.select %468, %476, %463 : vector<12x128xi1>, vector<12x128xf32>
    %c15_153 = arith.constant 15 : index
    %478 = memref.load %arg6[%c15_153] : memref<16xf32, #tpu.memory_space<smem>>
    %479 = vector.broadcast %478 : f32 to vector<12x128xf32>
    %480 = arith.select %468, %479, %466 : vector<12x128xi1>, vector<12x128xf32>
    %481 = arith.mulf %262, %474 : vector<12x128xf32>
    %482 = arith.addf %471, %481 : vector<12x128xf32>
    %483 = arith.mulf %262, %480 : vector<12x128xf32>
    %484 = arith.addf %477, %483 : vector<12x128xf32>
    %cst_154 = arith.constant 1.700000e+01 : f32
    %485 = vector.broadcast %cst_154 : f32 to vector<12x128xf32>
    %486 = arith.cmpf olt, %259, %485 : vector<12x128xf32>
    %cst_155 = arith.constant 0.000000e+00 : f32
    %487 = vector.broadcast %cst_155 : f32 to vector<12x128xf32>
    %488 = arith.select %486, %482, %487 : vector<12x128xi1>, vector<12x128xf32>
    %489 = math.cos %484 : vector<12x128xf32>
    %490 = math.sin %484 : vector<12x128xf32>
    %491 = arith.mulf %254, %490 : vector<12x128xf32>
    %492 = arith.addf %489, %491 : vector<12x128xf32>
    %493 = arith.mulf %488, %492 : vector<12x128xf32>
    %cst_156 = arith.constant 0.333333343 : f32
    %494 = vector.broadcast %cst_156 : f32 to vector<12x128xf32>
    %495 = arith.mulf %493, %494 : vector<12x128xf32>
    %496 = arith.addf %249, %495 : vector<12x128xf32>
    %497 = vector.broadcast %0 : f32 to vector<12x128xf32>
    %498 = arith.mulf %496, %497 : vector<12x128xf32>
    %499 = vector.broadcast %1 : f32 to vector<12x128xf32>
    %500 = arith.addf %498, %499 : vector<12x128xf32>
    %501 = math.tanh %500 : vector<12x128xf32>
    %cst_157 = arith.constant 1.000000e+00 : f32
    %502 = vector.broadcast %cst_157 : f32 to vector<12x128xf32>
    %503 = arith.addf %502, %501 : vector<12x128xf32>
    %cst_158 = arith.constant 8.500000e+00 : f32
    %504 = vector.broadcast %cst_158 : f32 to vector<12x128xf32>
    %505 = arith.mulf %503, %504 : vector<12x128xf32>
    %506 = math.floor %505 : vector<12x128xf32>
    %cst_159 = arith.constant 1.500000e+01 : f32
    %507 = vector.broadcast %cst_159 : f32 to vector<12x128xf32>
    %508 = arith.minimumf %506, %507 : vector<12x128xf32>
    %509 = arith.subf %505, %508 : vector<12x128xf32>
    %c0_160 = arith.constant 0 : index
    %510 = memref.load %arg3[%c0_160] : memref<16xf32, #tpu.memory_space<smem>>
    %c0_161 = arith.constant 0 : index
    %511 = memref.load %arg4[%c0_161] : memref<16xf32, #tpu.memory_space<smem>>
    %c0_162 = arith.constant 0 : index
    %512 = memref.load %arg5[%c0_162] : memref<16xf32, #tpu.memory_space<smem>>
    %c0_163 = arith.constant 0 : index
    %513 = memref.load %arg6[%c0_163] : memref<16xf32, #tpu.memory_space<smem>>
    %cst_164 = arith.constant 1.000000e+00 : f32
    %514 = vector.broadcast %cst_164 : f32 to vector<12x128xf32>
    %515 = arith.cmpf oeq, %508, %514 : vector<12x128xf32>
    %c1_165 = arith.constant 1 : index
    %516 = memref.load %arg3[%c1_165] : memref<16xf32, #tpu.memory_space<smem>>
    %517 = vector.broadcast %516 : f32 to vector<12x128xf32>
    %518 = vector.broadcast %510 : f32 to vector<12x128xf32>
    %519 = arith.select %515, %517, %518 : vector<12x128xi1>, vector<12x128xf32>
    %c1_166 = arith.constant 1 : index
    %520 = memref.load %arg4[%c1_166] : memref<16xf32, #tpu.memory_space<smem>>
    %521 = vector.broadcast %520 : f32 to vector<12x128xf32>
    %522 = vector.broadcast %511 : f32 to vector<12x128xf32>
    %523 = arith.select %515, %521, %522 : vector<12x128xi1>, vector<12x128xf32>
    %c1_167 = arith.constant 1 : index
    %524 = memref.load %arg5[%c1_167] : memref<16xf32, #tpu.memory_space<smem>>
    %525 = vector.broadcast %524 : f32 to vector<12x128xf32>
    %526 = vector.broadcast %512 : f32 to vector<12x128xf32>
    %527 = arith.select %515, %525, %526 : vector<12x128xi1>, vector<12x128xf32>
    %c1_168 = arith.constant 1 : index
    %528 = memref.load %arg6[%c1_168] : memref<16xf32, #tpu.memory_space<smem>>
    %529 = vector.broadcast %528 : f32 to vector<12x128xf32>
    %530 = vector.broadcast %513 : f32 to vector<12x128xf32>
    %531 = arith.select %515, %529, %530 : vector<12x128xi1>, vector<12x128xf32>
    %cst_169 = arith.constant 2.000000e+00 : f32
    %532 = vector.broadcast %cst_169 : f32 to vector<12x128xf32>
    %533 = arith.cmpf oeq, %508, %532 : vector<12x128xf32>
    %c2_170 = arith.constant 2 : index
    %534 = memref.load %arg3[%c2_170] : memref<16xf32, #tpu.memory_space<smem>>
    %535 = vector.broadcast %534 : f32 to vector<12x128xf32>
    %536 = arith.select %533, %535, %519 : vector<12x128xi1>, vector<12x128xf32>
    %c2_171 = arith.constant 2 : index
    %537 = memref.load %arg4[%c2_171] : memref<16xf32, #tpu.memory_space<smem>>
    %538 = vector.broadcast %537 : f32 to vector<12x128xf32>
    %539 = arith.select %533, %538, %523 : vector<12x128xi1>, vector<12x128xf32>
    %c2_172 = arith.constant 2 : index
    %540 = memref.load %arg5[%c2_172] : memref<16xf32, #tpu.memory_space<smem>>
    %541 = vector.broadcast %540 : f32 to vector<12x128xf32>
    %542 = arith.select %533, %541, %527 : vector<12x128xi1>, vector<12x128xf32>
    %c2_173 = arith.constant 2 : index
    %543 = memref.load %arg6[%c2_173] : memref<16xf32, #tpu.memory_space<smem>>
    %544 = vector.broadcast %543 : f32 to vector<12x128xf32>
    %545 = arith.select %533, %544, %531 : vector<12x128xi1>, vector<12x128xf32>
    %cst_174 = arith.constant 3.000000e+00 : f32
    %546 = vector.broadcast %cst_174 : f32 to vector<12x128xf32>
    %547 = arith.cmpf oeq, %508, %546 : vector<12x128xf32>
    %c3_175 = arith.constant 3 : index
    %548 = memref.load %arg3[%c3_175] : memref<16xf32, #tpu.memory_space<smem>>
    %549 = vector.broadcast %548 : f32 to vector<12x128xf32>
    %550 = arith.select %547, %549, %536 : vector<12x128xi1>, vector<12x128xf32>
    %c3_176 = arith.constant 3 : index
    %551 = memref.load %arg4[%c3_176] : memref<16xf32, #tpu.memory_space<smem>>
    %552 = vector.broadcast %551 : f32 to vector<12x128xf32>
    %553 = arith.select %547, %552, %539 : vector<12x128xi1>, vector<12x128xf32>
    %c3_177 = arith.constant 3 : index
    %554 = memref.load %arg5[%c3_177] : memref<16xf32, #tpu.memory_space<smem>>
    %555 = vector.broadcast %554 : f32 to vector<12x128xf32>
    %556 = arith.select %547, %555, %542 : vector<12x128xi1>, vector<12x128xf32>
    %c3_178 = arith.constant 3 : index
    %557 = memref.load %arg6[%c3_178] : memref<16xf32, #tpu.memory_space<smem>>
    %558 = vector.broadcast %557 : f32 to vector<12x128xf32>
    %559 = arith.select %547, %558, %545 : vector<12x128xi1>, vector<12x128xf32>
    %cst_179 = arith.constant 4.000000e+00 : f32
    %560 = vector.broadcast %cst_179 : f32 to vector<12x128xf32>
    %561 = arith.cmpf oeq, %508, %560 : vector<12x128xf32>
    %c4_180 = arith.constant 4 : index
    %562 = memref.load %arg3[%c4_180] : memref<16xf32, #tpu.memory_space<smem>>
    %563 = vector.broadcast %562 : f32 to vector<12x128xf32>
    %564 = arith.select %561, %563, %550 : vector<12x128xi1>, vector<12x128xf32>
    %c4_181 = arith.constant 4 : index
    %565 = memref.load %arg4[%c4_181] : memref<16xf32, #tpu.memory_space<smem>>
    %566 = vector.broadcast %565 : f32 to vector<12x128xf32>
    %567 = arith.select %561, %566, %553 : vector<12x128xi1>, vector<12x128xf32>
    %c4_182 = arith.constant 4 : index
    %568 = memref.load %arg5[%c4_182] : memref<16xf32, #tpu.memory_space<smem>>
    %569 = vector.broadcast %568 : f32 to vector<12x128xf32>
    %570 = arith.select %561, %569, %556 : vector<12x128xi1>, vector<12x128xf32>
    %c4_183 = arith.constant 4 : index
    %571 = memref.load %arg6[%c4_183] : memref<16xf32, #tpu.memory_space<smem>>
    %572 = vector.broadcast %571 : f32 to vector<12x128xf32>
    %573 = arith.select %561, %572, %559 : vector<12x128xi1>, vector<12x128xf32>
    %cst_184 = arith.constant 5.000000e+00 : f32
    %574 = vector.broadcast %cst_184 : f32 to vector<12x128xf32>
    %575 = arith.cmpf oeq, %508, %574 : vector<12x128xf32>
    %c5_185 = arith.constant 5 : index
    %576 = memref.load %arg3[%c5_185] : memref<16xf32, #tpu.memory_space<smem>>
    %577 = vector.broadcast %576 : f32 to vector<12x128xf32>
    %578 = arith.select %575, %577, %564 : vector<12x128xi1>, vector<12x128xf32>
    %c5_186 = arith.constant 5 : index
    %579 = memref.load %arg4[%c5_186] : memref<16xf32, #tpu.memory_space<smem>>
    %580 = vector.broadcast %579 : f32 to vector<12x128xf32>
    %581 = arith.select %575, %580, %567 : vector<12x128xi1>, vector<12x128xf32>
    %c5_187 = arith.constant 5 : index
    %582 = memref.load %arg5[%c5_187] : memref<16xf32, #tpu.memory_space<smem>>
    %583 = vector.broadcast %582 : f32 to vector<12x128xf32>
    %584 = arith.select %575, %583, %570 : vector<12x128xi1>, vector<12x128xf32>
    %c5_188 = arith.constant 5 : index
    %585 = memref.load %arg6[%c5_188] : memref<16xf32, #tpu.memory_space<smem>>
    %586 = vector.broadcast %585 : f32 to vector<12x128xf32>
    %587 = arith.select %575, %586, %573 : vector<12x128xi1>, vector<12x128xf32>
    %cst_189 = arith.constant 6.000000e+00 : f32
    %588 = vector.broadcast %cst_189 : f32 to vector<12x128xf32>
    %589 = arith.cmpf oeq, %508, %588 : vector<12x128xf32>
    %c6_190 = arith.constant 6 : index
    %590 = memref.load %arg3[%c6_190] : memref<16xf32, #tpu.memory_space<smem>>
    %591 = vector.broadcast %590 : f32 to vector<12x128xf32>
    %592 = arith.select %589, %591, %578 : vector<12x128xi1>, vector<12x128xf32>
    %c6_191 = arith.constant 6 : index
    %593 = memref.load %arg4[%c6_191] : memref<16xf32, #tpu.memory_space<smem>>
    %594 = vector.broadcast %593 : f32 to vector<12x128xf32>
    %595 = arith.select %589, %594, %581 : vector<12x128xi1>, vector<12x128xf32>
    %c6_192 = arith.constant 6 : index
    %596 = memref.load %arg5[%c6_192] : memref<16xf32, #tpu.memory_space<smem>>
    %597 = vector.broadcast %596 : f32 to vector<12x128xf32>
    %598 = arith.select %589, %597, %584 : vector<12x128xi1>, vector<12x128xf32>
    %c6_193 = arith.constant 6 : index
    %599 = memref.load %arg6[%c6_193] : memref<16xf32, #tpu.memory_space<smem>>
    %600 = vector.broadcast %599 : f32 to vector<12x128xf32>
    %601 = arith.select %589, %600, %587 : vector<12x128xi1>, vector<12x128xf32>
    %cst_194 = arith.constant 7.000000e+00 : f32
    %602 = vector.broadcast %cst_194 : f32 to vector<12x128xf32>
    %603 = arith.cmpf oeq, %508, %602 : vector<12x128xf32>
    %c7_195 = arith.constant 7 : index
    %604 = memref.load %arg3[%c7_195] : memref<16xf32, #tpu.memory_space<smem>>
    %605 = vector.broadcast %604 : f32 to vector<12x128xf32>
    %606 = arith.select %603, %605, %592 : vector<12x128xi1>, vector<12x128xf32>
    %c7_196 = arith.constant 7 : index
    %607 = memref.load %arg4[%c7_196] : memref<16xf32, #tpu.memory_space<smem>>
    %608 = vector.broadcast %607 : f32 to vector<12x128xf32>
    %609 = arith.select %603, %608, %595 : vector<12x128xi1>, vector<12x128xf32>
    %c7_197 = arith.constant 7 : index
    %610 = memref.load %arg5[%c7_197] : memref<16xf32, #tpu.memory_space<smem>>
    %611 = vector.broadcast %610 : f32 to vector<12x128xf32>
    %612 = arith.select %603, %611, %598 : vector<12x128xi1>, vector<12x128xf32>
    %c7_198 = arith.constant 7 : index
    %613 = memref.load %arg6[%c7_198] : memref<16xf32, #tpu.memory_space<smem>>
    %614 = vector.broadcast %613 : f32 to vector<12x128xf32>
    %615 = arith.select %603, %614, %601 : vector<12x128xi1>, vector<12x128xf32>
    %cst_199 = arith.constant 8.000000e+00 : f32
    %616 = vector.broadcast %cst_199 : f32 to vector<12x128xf32>
    %617 = arith.cmpf oeq, %508, %616 : vector<12x128xf32>
    %c8_200 = arith.constant 8 : index
    %618 = memref.load %arg3[%c8_200] : memref<16xf32, #tpu.memory_space<smem>>
    %619 = vector.broadcast %618 : f32 to vector<12x128xf32>
    %620 = arith.select %617, %619, %606 : vector<12x128xi1>, vector<12x128xf32>
    %c8_201 = arith.constant 8 : index
    %621 = memref.load %arg4[%c8_201] : memref<16xf32, #tpu.memory_space<smem>>
    %622 = vector.broadcast %621 : f32 to vector<12x128xf32>
    %623 = arith.select %617, %622, %609 : vector<12x128xi1>, vector<12x128xf32>
    %c8_202 = arith.constant 8 : index
    %624 = memref.load %arg5[%c8_202] : memref<16xf32, #tpu.memory_space<smem>>
    %625 = vector.broadcast %624 : f32 to vector<12x128xf32>
    %626 = arith.select %617, %625, %612 : vector<12x128xi1>, vector<12x128xf32>
    %c8_203 = arith.constant 8 : index
    %627 = memref.load %arg6[%c8_203] : memref<16xf32, #tpu.memory_space<smem>>
    %628 = vector.broadcast %627 : f32 to vector<12x128xf32>
    %629 = arith.select %617, %628, %615 : vector<12x128xi1>, vector<12x128xf32>
    %cst_204 = arith.constant 9.000000e+00 : f32
    %630 = vector.broadcast %cst_204 : f32 to vector<12x128xf32>
    %631 = arith.cmpf oeq, %508, %630 : vector<12x128xf32>
    %c9_205 = arith.constant 9 : index
    %632 = memref.load %arg3[%c9_205] : memref<16xf32, #tpu.memory_space<smem>>
    %633 = vector.broadcast %632 : f32 to vector<12x128xf32>
    %634 = arith.select %631, %633, %620 : vector<12x128xi1>, vector<12x128xf32>
    %c9_206 = arith.constant 9 : index
    %635 = memref.load %arg4[%c9_206] : memref<16xf32, #tpu.memory_space<smem>>
    %636 = vector.broadcast %635 : f32 to vector<12x128xf32>
    %637 = arith.select %631, %636, %623 : vector<12x128xi1>, vector<12x128xf32>
    %c9_207 = arith.constant 9 : index
    %638 = memref.load %arg5[%c9_207] : memref<16xf32, #tpu.memory_space<smem>>
    %639 = vector.broadcast %638 : f32 to vector<12x128xf32>
    %640 = arith.select %631, %639, %626 : vector<12x128xi1>, vector<12x128xf32>
    %c9_208 = arith.constant 9 : index
    %641 = memref.load %arg6[%c9_208] : memref<16xf32, #tpu.memory_space<smem>>
    %642 = vector.broadcast %641 : f32 to vector<12x128xf32>
    %643 = arith.select %631, %642, %629 : vector<12x128xi1>, vector<12x128xf32>
    %cst_209 = arith.constant 1.000000e+01 : f32
    %644 = vector.broadcast %cst_209 : f32 to vector<12x128xf32>
    %645 = arith.cmpf oeq, %508, %644 : vector<12x128xf32>
    %c10_210 = arith.constant 10 : index
    %646 = memref.load %arg3[%c10_210] : memref<16xf32, #tpu.memory_space<smem>>
    %647 = vector.broadcast %646 : f32 to vector<12x128xf32>
    %648 = arith.select %645, %647, %634 : vector<12x128xi1>, vector<12x128xf32>
    %c10_211 = arith.constant 10 : index
    %649 = memref.load %arg4[%c10_211] : memref<16xf32, #tpu.memory_space<smem>>
    %650 = vector.broadcast %649 : f32 to vector<12x128xf32>
    %651 = arith.select %645, %650, %637 : vector<12x128xi1>, vector<12x128xf32>
    %c10_212 = arith.constant 10 : index
    %652 = memref.load %arg5[%c10_212] : memref<16xf32, #tpu.memory_space<smem>>
    %653 = vector.broadcast %652 : f32 to vector<12x128xf32>
    %654 = arith.select %645, %653, %640 : vector<12x128xi1>, vector<12x128xf32>
    %c10_213 = arith.constant 10 : index
    %655 = memref.load %arg6[%c10_213] : memref<16xf32, #tpu.memory_space<smem>>
    %656 = vector.broadcast %655 : f32 to vector<12x128xf32>
    %657 = arith.select %645, %656, %643 : vector<12x128xi1>, vector<12x128xf32>
    %cst_214 = arith.constant 1.100000e+01 : f32
    %658 = vector.broadcast %cst_214 : f32 to vector<12x128xf32>
    %659 = arith.cmpf oeq, %508, %658 : vector<12x128xf32>
    %c11_215 = arith.constant 11 : index
    %660 = memref.load %arg3[%c11_215] : memref<16xf32, #tpu.memory_space<smem>>
    %661 = vector.broadcast %660 : f32 to vector<12x128xf32>
    %662 = arith.select %659, %661, %648 : vector<12x128xi1>, vector<12x128xf32>
    %c11_216 = arith.constant 11 : index
    %663 = memref.load %arg4[%c11_216] : memref<16xf32, #tpu.memory_space<smem>>
    %664 = vector.broadcast %663 : f32 to vector<12x128xf32>
    %665 = arith.select %659, %664, %651 : vector<12x128xi1>, vector<12x128xf32>
    %c11_217 = arith.constant 11 : index
    %666 = memref.load %arg5[%c11_217] : memref<16xf32, #tpu.memory_space<smem>>
    %667 = vector.broadcast %666 : f32 to vector<12x128xf32>
    %668 = arith.select %659, %667, %654 : vector<12x128xi1>, vector<12x128xf32>
    %c11_218 = arith.constant 11 : index
    %669 = memref.load %arg6[%c11_218] : memref<16xf32, #tpu.memory_space<smem>>
    %670 = vector.broadcast %669 : f32 to vector<12x128xf32>
    %671 = arith.select %659, %670, %657 : vector<12x128xi1>, vector<12x128xf32>
    %cst_219 = arith.constant 1.200000e+01 : f32
    %672 = vector.broadcast %cst_219 : f32 to vector<12x128xf32>
    %673 = arith.cmpf oeq, %508, %672 : vector<12x128xf32>
    %c12_220 = arith.constant 12 : index
    %674 = memref.load %arg3[%c12_220] : memref<16xf32, #tpu.memory_space<smem>>
    %675 = vector.broadcast %674 : f32 to vector<12x128xf32>
    %676 = arith.select %673, %675, %662 : vector<12x128xi1>, vector<12x128xf32>
    %c12_221 = arith.constant 12 : index
    %677 = memref.load %arg4[%c12_221] : memref<16xf32, #tpu.memory_space<smem>>
    %678 = vector.broadcast %677 : f32 to vector<12x128xf32>
    %679 = arith.select %673, %678, %665 : vector<12x128xi1>, vector<12x128xf32>
    %c12_222 = arith.constant 12 : index
    %680 = memref.load %arg5[%c12_222] : memref<16xf32, #tpu.memory_space<smem>>
    %681 = vector.broadcast %680 : f32 to vector<12x128xf32>
    %682 = arith.select %673, %681, %668 : vector<12x128xi1>, vector<12x128xf32>
    %c12_223 = arith.constant 12 : index
    %683 = memref.load %arg6[%c12_223] : memref<16xf32, #tpu.memory_space<smem>>
    %684 = vector.broadcast %683 : f32 to vector<12x128xf32>
    %685 = arith.select %673, %684, %671 : vector<12x128xi1>, vector<12x128xf32>
    %cst_224 = arith.constant 1.300000e+01 : f32
    %686 = vector.broadcast %cst_224 : f32 to vector<12x128xf32>
    %687 = arith.cmpf oeq, %508, %686 : vector<12x128xf32>
    %c13_225 = arith.constant 13 : index
    %688 = memref.load %arg3[%c13_225] : memref<16xf32, #tpu.memory_space<smem>>
    %689 = vector.broadcast %688 : f32 to vector<12x128xf32>
    %690 = arith.select %687, %689, %676 : vector<12x128xi1>, vector<12x128xf32>
    %c13_226 = arith.constant 13 : index
    %691 = memref.load %arg4[%c13_226] : memref<16xf32, #tpu.memory_space<smem>>
    %692 = vector.broadcast %691 : f32 to vector<12x128xf32>
    %693 = arith.select %687, %692, %679 : vector<12x128xi1>, vector<12x128xf32>
    %c13_227 = arith.constant 13 : index
    %694 = memref.load %arg5[%c13_227] : memref<16xf32, #tpu.memory_space<smem>>
    %695 = vector.broadcast %694 : f32 to vector<12x128xf32>
    %696 = arith.select %687, %695, %682 : vector<12x128xi1>, vector<12x128xf32>
    %c13_228 = arith.constant 13 : index
    %697 = memref.load %arg6[%c13_228] : memref<16xf32, #tpu.memory_space<smem>>
    %698 = vector.broadcast %697 : f32 to vector<12x128xf32>
    %699 = arith.select %687, %698, %685 : vector<12x128xi1>, vector<12x128xf32>
    %cst_229 = arith.constant 1.400000e+01 : f32
    %700 = vector.broadcast %cst_229 : f32 to vector<12x128xf32>
    %701 = arith.cmpf oeq, %508, %700 : vector<12x128xf32>
    %c14_230 = arith.constant 14 : index
    %702 = memref.load %arg3[%c14_230] : memref<16xf32, #tpu.memory_space<smem>>
    %703 = vector.broadcast %702 : f32 to vector<12x128xf32>
    %704 = arith.select %701, %703, %690 : vector<12x128xi1>, vector<12x128xf32>
    %c14_231 = arith.constant 14 : index
    %705 = memref.load %arg4[%c14_231] : memref<16xf32, #tpu.memory_space<smem>>
    %706 = vector.broadcast %705 : f32 to vector<12x128xf32>
    %707 = arith.select %701, %706, %693 : vector<12x128xi1>, vector<12x128xf32>
    %c14_232 = arith.constant 14 : index
    %708 = memref.load %arg5[%c14_232] : memref<16xf32, #tpu.memory_space<smem>>
    %709 = vector.broadcast %708 : f32 to vector<12x128xf32>
    %710 = arith.select %701, %709, %696 : vector<12x128xi1>, vector<12x128xf32>
    %c14_233 = arith.constant 14 : index
    %711 = memref.load %arg6[%c14_233] : memref<16xf32, #tpu.memory_space<smem>>
    %712 = vector.broadcast %711 : f32 to vector<12x128xf32>
    %713 = arith.select %701, %712, %699 : vector<12x128xi1>, vector<12x128xf32>
    %cst_234 = arith.constant 1.500000e+01 : f32
    %714 = vector.broadcast %cst_234 : f32 to vector<12x128xf32>
    %715 = arith.cmpf oeq, %508, %714 : vector<12x128xf32>
    %c15_235 = arith.constant 15 : index
    %716 = memref.load %arg3[%c15_235] : memref<16xf32, #tpu.memory_space<smem>>
    %717 = vector.broadcast %716 : f32 to vector<12x128xf32>
    %718 = arith.select %715, %717, %704 : vector<12x128xi1>, vector<12x128xf32>
    %c15_236 = arith.constant 15 : index
    %719 = memref.load %arg4[%c15_236] : memref<16xf32, #tpu.memory_space<smem>>
    %720 = vector.broadcast %719 : f32 to vector<12x128xf32>
    %721 = arith.select %715, %720, %707 : vector<12x128xi1>, vector<12x128xf32>
    %c15_237 = arith.constant 15 : index
    %722 = memref.load %arg5[%c15_237] : memref<16xf32, #tpu.memory_space<smem>>
    %723 = vector.broadcast %722 : f32 to vector<12x128xf32>
    %724 = arith.select %715, %723, %710 : vector<12x128xi1>, vector<12x128xf32>
    %c15_238 = arith.constant 15 : index
    %725 = memref.load %arg6[%c15_238] : memref<16xf32, #tpu.memory_space<smem>>
    %726 = vector.broadcast %725 : f32 to vector<12x128xf32>
    %727 = arith.select %715, %726, %713 : vector<12x128xi1>, vector<12x128xf32>
    %728 = arith.mulf %509, %721 : vector<12x128xf32>
    %729 = arith.addf %718, %728 : vector<12x128xf32>
    %730 = arith.mulf %509, %727 : vector<12x128xf32>
    %731 = arith.addf %724, %730 : vector<12x128xf32>
    %cst_239 = arith.constant 1.700000e+01 : f32
    %732 = vector.broadcast %cst_239 : f32 to vector<12x128xf32>
    %733 = arith.cmpf olt, %506, %732 : vector<12x128xf32>
    %cst_240 = arith.constant 0.000000e+00 : f32
    %734 = vector.broadcast %cst_240 : f32 to vector<12x128xf32>
    %735 = arith.select %733, %729, %734 : vector<12x128xi1>, vector<12x128xf32>
    %736 = math.cos %731 : vector<12x128xf32>
    %737 = math.sin %731 : vector<12x128xf32>
    %738 = arith.mulf %501, %737 : vector<12x128xf32>
    %739 = arith.addf %736, %738 : vector<12x128xf32>
    %740 = arith.mulf %735, %739 : vector<12x128xf32>
    %cst_241 = arith.constant 0.333333343 : f32
    %741 = vector.broadcast %cst_241 : f32 to vector<12x128xf32>
    %742 = arith.mulf %740, %741 : vector<12x128xf32>
    %743 = arith.addf %496, %742 : vector<12x128xf32>
    %c0_242 = arith.constant 0 : index
    %c0_243 = arith.constant 0 : index
    %744 = vector.load %arg8[%c0_242, %c0_243] : memref<24x12xf32, #tpu.memory_space<vmem>>, vector<24x12xf32>
    %cst_244 = arith.constant dense<0.000000e+00> : vector<24x128xf32>
    %745 = tpu.matmul %744, %743, %cst_244 {dimension_numbers = #tpu.dot_dimension_numbers<[1], [0], [0], [1], [0, 0, 1, 1], [], []>} : vector<24x12xf32>, vector<12x128xf32>, vector<24x128xf32> -> vector<24x128xf32>
    %c0_245 = arith.constant 0 : index
    %c0_246 = arith.constant 0 : index
    %746 = vector.load %arg9[%c0_245, %c0_246] : memref<24x128xf32, #tpu.memory_space<vmem>>, vector<24x128xf32>
    tpu.vector_store %arg9[%c0_245, %c0_246], %745 {strides = array<i32>} : memref<24x128xf32, #tpu.memory_space<vmem>>, vector<24x128xf32>,
    return
  }
  func.func @transform_0(%arg0: i32) -> i32 {
    %c0_i32 = arith.constant 0 : i32
    %c0_i32_0 = arith.constant 0 : i32
    return %c0_i32 : i32
  }
  func.func @transform_1(%arg0: i32) -> i32 {
    %c0_i32 = arith.constant 0 : i32
    %c0_i32_0 = arith.constant 0 : i32
    return %c0_i32 : i32
  }
  func.func @transform_2(%arg0: i32) -> i32 {
    %c0_i32 = arith.constant 0 : i32
    %c0_i32_0 = arith.constant 0 : i32
    return %c0_i32 : i32
  }
  func.func @transform_3(%arg0: i32) -> i32 {
    %c0_i32 = arith.constant 0 : i32
    %c0_i32_0 = arith.constant 0 : i32
    return %c0_i32 : i32
  }
  func.func @transform_4(%arg0: i32) -> i32 {
    %c0_i32 = arith.constant 0 : i32
    %c0_i32_0 = arith.constant 0 : i32
    return %c0_i32 : i32
  }
  func.func @transform_5(%arg0: i32) -> i32 {
    %c0_i32 = arith.constant 0 : i32
    %c0_i32_0 = arith.constant 0 : i32
    return %c0_i32 : i32
  }
  func.func @transform_6(%arg0: i32) -> (i32, i32) {
    %c0_i32 = arith.constant 0 : i32
    %c0_i32_0 = arith.constant 0 : i32
    return %c0_i32, %arg0 : i32, i32
  }
  func.func @transform_7(%arg0: i32) -> (i32, i32) {
    %c0_i32 = arith.constant 0 : i32
    %c0_i32_0 = arith.constant 0 : i32
    %c0_i32_1 = arith.constant 0 : i32
    return %c0_i32, %c0_i32_0 : i32, i32
  }
  func.func @transform_8(%arg0: i32) -> (i32, i32) {
    %c0_i32 = arith.constant 0 : i32
    %c0_i32_0 = arith.constant 0 : i32
    return %c0_i32, %arg0 : i32, i32
  }
}

</mosaic_0001>

<llo_original>
// kernel: tpu_custom_call.1
$region0: #{tpu_custom_call.1}
  #allocation0 [shape = 'u32[]', space=smem, size = 0x4, offset = 0x4, fixed_abs, tag = 'smem constant byte address 0x4 - core index']
  #allocation1 [shape = 'u32[72,128]{1,0:T(1,128)}', space=vmem, size = 0x9000, scoped, tag = 'internal scratch']
  #allocation2 [shape = 'f32[1]{0:T(128)S(6)}', space=smem, size = 0x200, scoped, tag = 'scoped memory for tpu_custom_call.1']
  #allocation3 [shape = 'f32[1]{0:T(128)S(6)}', space=smem, size = 0x200, scoped, tag = 'scoped memory for tpu_custom_call.1']
  %s0 = inlined_call_operand.<no memory space> [shape: f32[1], index: 0, kind: input, shape index: {}]
  %s1 = inlined_call_operand.<no memory space> [shape: f32[1], index: 1, kind: input, shape index: {}]
  %s2 = inlined_call_operand.vmem [shape: f32[16], index: 2, kind: input, shape index: {}]
  %s3 = inlined_call_operand.vmem [shape: f32[16], index: 3, kind: input, shape index: {}]
  %s4 = inlined_call_operand.vmem [shape: f32[16], index: 4, kind: input, shape index: {}]
  %s5 = inlined_call_operand.vmem [shape: f32[16], index: 5, kind: input, shape index: {}]
  %s6 = inlined_call_operand.vmem [shape: f32[12,128], index: 6, kind: input, shape index: {}]
  %s7 = inlined_call_operand.vmem [shape: f32[24,12], index: 7, kind: input, shape index: {}]
  %s8 = inlined_call_operand.hbm [shape: f32[24,128], index: 8, kind: output, shape index: {}]
  %s9 = sld [smem:[#allocation0]]
  $region58: #{tpu_custom_call.1} parent=0
    _
  %s11 = ssub.s32 1, %s9
  %s12 = scalar_select 0, %s11, %s9
  %13 = sst [smem:[#allocation2]] %s0
  %14 = sst [smem:[#allocation3]] %s1
  $region1: #{tpu_custom_call.1} parent=0
    #allocation4 [shape = 'u8[512]{0}', space=smem, size = 0x200, scoped, tag = 'input window, operand 2, single buffered']
    #allocation5 [shape = 's32[1]{0}', space=sflag, size = 0x4, scoped, tag = 'scoped memory for tpu_custom_call.1']
    #allocation6 [shape = 's32[1]{0}', space=sflag, size = 0x4, scoped, tag = 'scoped memory for tpu_custom_call.1']
    #allocation7 [shape = 'u8[512]{0}', space=smem, size = 0x200, scoped, tag = 'input window, operand 3, single buffered']
    #allocation8 [shape = 's32[1]{0}', space=sflag, size = 0x4, scoped, tag = 'scoped memory for tpu_custom_call.1']
    #allocation9 [shape = 'u8[512]{0}', space=smem, size = 0x200, scoped, tag = 'input window, operand 4, single buffered']
    #allocation10 [shape = 'u8[512]{0}', space=smem, size = 0x200, scoped, tag = 'input window, operand 5, single buffered']
    #allocation11 [shape = 's32[1]{0}', space=sflag, size = 0x4, scoped, tag = 'scoped memory for tpu_custom_call.1']
    #allocation12 [shape = 'u8[12288]{0}', space=vmem, size = 0x3000, scoped, tag = 'output window, operand 0, single buffered']
    %15 = vsyncpa [#allocation6], 0
    %16 = vsyncpa [#allocation8], 0
    %17 = vsyncpa [#allocation11], 0
    %18 = vsyncpa [#allocation5], 0
    // Predicated region
    $region2: #{tpu_custom_call.1} parent=1 // pred_check
      _
    $region3: #{tpu_custom_call.1} parent=1 // pred_check_branch
      %20 = sbr.rel (0) target = $region5
    $region4: #{tpu_custom_call.1} parent=1 // pred_region
      _
    $region5: #{tpu_custom_call.1} parent=1 // pred_fallthru
      _
    // Predicated region
    $region6: #{tpu_custom_call.1} parent=1 // pred_check
      _
    $region7: #{tpu_custom_call.1} parent=1 // pred_check_branch
      %22 = sbr.rel (0) target = $region9
    $region8: #{tpu_custom_call.1} parent=1 // pred_region
      _
    $region9: #{tpu_custom_call.1} parent=1 // pred_fallthru
      _
    // Predicated region
    $region10: #{tpu_custom_call.1} parent=1 // pred_check
      _
    $region11: #{tpu_custom_call.1} parent=1 // pred_check_branch
      %24 = sbr.rel (0) target = $region13
    $region12: #{tpu_custom_call.1} parent=1 // pred_region
      %26 = vsyncadd [#allocation6], 0
      %s28 = sshll.u32 %s2, 4
      %s29 = int_to_ptr.vmem [resolvable:$true] %s28
      %31 = dma.vmem_to_smem %s29, 16, [#allocation4], [#allocation6]
    $region13: #{tpu_custom_call.1} parent=1 // pred_fallthru
      _
    // Predicated region
    $region14: #{tpu_custom_call.1} parent=1 // pred_check
      _
    $region15: #{tpu_custom_call.1} parent=1 // pred_check_branch
      %33 = sbr.rel (0) target = $region17
    $region16: #{tpu_custom_call.1} parent=1 // pred_region
      %35 = vsyncadd [#allocation8], 0
      %s37 = sshll.u32 %s3, 4
      %s38 = int_to_ptr.vmem [resolvable:$true] %s37
      %40 = dma.vmem_to_smem %s38, 16, [#allocation7], [#allocation8]
    $region17: #{tpu_custom_call.1} parent=1 // pred_fallthru
      _
    // Predicated region
    $region18: #{tpu_custom_call.1} parent=1 // pred_check
      _
    $region19: #{tpu_custom_call.1} parent=1 // pred_check_branch
      %42 = sbr.rel (0) target = $region21
    $region20: #{tpu_custom_call.1} parent=1 // pred_region
      %44 = vsyncadd [#allocation8], 0
      %s46 = sshll.u32 %s4, 4
      %s47 = int_to_ptr.vmem [resolvable:$true] %s46
      %49 = dma.vmem_to_smem %s47, 16, [#allocation9], [#allocation8]
    $region21: #{tpu_custom_call.1} parent=1 // pred_fallthru
      _
    // Predicated region
    $region22: #{tpu_custom_call.1} parent=1 // pred_check
      _
    $region23: #{tpu_custom_call.1} parent=1 // pred_check_branch
      %51 = sbr.rel (0) target = $region25
    $region24: #{tpu_custom_call.1} parent=1 // pred_region
      %53 = vsyncadd [#allocation11], 0
      %s55 = sshll.u32 %s5, 4
      %s56 = int_to_ptr.vmem [resolvable:$true] %s55
      %58 = dma.vmem_to_smem %s56, 16, [#allocation10], [#allocation11]
    $region25: #{tpu_custom_call.1} parent=1 // pred_fallthru
      _
    // Predicated region
    $region26: #{tpu_custom_call.1} parent=1 // pred_check
      _
    $region27: #{tpu_custom_call.1} parent=1 // pred_check_branch
      %60 = sbr.rel (0) target = $region29
    $region28: #{tpu_custom_call.1} parent=1 // pred_region
      _
    $region29: #{tpu_custom_call.1} parent=1 // pred_fallthru
      _
    // Predicated region
    $region30: #{tpu_custom_call.1} parent=1 // pred_check
      _
    $region31: #{tpu_custom_call.1} parent=1 // pred_check_branch
      %62 = sbr.rel (0) target = $region33
    $region32: #{tpu_custom_call.1} parent=1 // pred_region
      _
    $region33: #{tpu_custom_call.1} parent=1 // pred_fallthru
      _
    // Predicated region
    $region34: #{tpu_custom_call.1} parent=1 // pred_check
      _
    $region35: #{tpu_custom_call.1} parent=1 // pred_check_branch
      %64 = sbr.rel (0) target = $region37
    $region36: #{tpu_custom_call.1} parent=1 // pred_region
      %66 = dma.done [#allocation6], 16
    $region37: #{tpu_custom_call.1} parent=1 // pred_fallthru
      _
    // Predicated region
    $region38: #{tpu_custom_call.1} parent=1 // pred_check
      _
    $region39: #{tpu_custom_call.1} parent=1 // pred_check_branch
      %68 = sbr.rel (0) target = $region41
    $region40: #{tpu_custom_call.1} parent=1 // pred_region
      %70 = dma.done [#allocation8], 16
    $region41: #{tpu_custom_call.1} parent=1 // pred_fallthru
      _
    // Predicated region
    $region42: #{tpu_custom_call.1} parent=1 // pred_check
      _
    $region43: #{tpu_custom_call.1} parent=1 // pred_check_branch
      %72 = sbr.rel (0) target = $region45
    $region44: #{tpu_custom_call.1} parent=1 // pred_region
      %74 = dma.done [#allocation8], 16
    $region45: #{tpu_custom_call.1} parent=1 // pred_fallthru
      _
    // Predicated region
    $region46: #{tpu_custom_call.1} parent=1 // pred_check
      _
    $region47: #{tpu_custom_call.1} parent=1 // pred_check_branch
      %76 = sbr.rel (0) target = $region49
    $region48: #{tpu_custom_call.1} parent=1 // pred_region
      %78 = dma.done [#allocation11], 16
    $region49: #{tpu_custom_call.1} parent=1 // pred_fallthru
      _
    %79 = sfence
    %s80 = sld [smem:[#allocation2]]
    %s81 = sld [smem:[#allocation3]]
    %v82 = vld [vmem:[%s6] sm:$0xff]
    %v83 = vld [vmem:[%s6 + $0x8] sm:$0xf]
    %v84 = vstv %s80
    %v85 = vmul.f32 %v82, %v84
    %v86 = vmul.f32 %v83, %v84
    %v87 = vstv %s81
    %v88 = vadd.f32 %v85, %v87
    %v89 = vadd.f32 %v86, %v87
    %v90 = vtanh.pop %v88
    %v91 = vtanh.pop %v89
    %v92 = vadd.f32 %v90, 1.0
    %v93 = vadd.f32 %v91, 1.0
    %v94 = vmul.f32 %v92, 8.5
    %v95 = vmul.f32 %v93, 8.5
    %v96 = vfloor.f32 %v94
    %v97 = vfloor.f32 %v95
    %v98 = vmin.f32 %v96, 15.0
    %v99 = vmin.f32 %v97, 15.0
    %v100 = vsub.f32 %v94, %v98
    %v101 = vsub.f32 %v95, %v99
    %s102 = sld [smem:[#allocation4]]
    %s103 = sld [smem:[#allocation7]]
    %s104 = sld [smem:[#allocation9]]
    %s105 = sld [smem:[#allocation10]]
    %vm106 = vcmp.eq.f32.partialorder %v98, 1.0
    %vm107 = vcmp.eq.f32.partialorder %v99, 1.0
    %s108 = sld [smem:[#allocation4 + $0x1]]
    %v109 = vstv %s108
    %v110 = vstv %s102
    %v111 = vsel %vm106, %v109, %v110
    %v112 = vsel %vm107, %v109, %v110
    %s113 = sld [smem:[#allocation7 + $0x1]]
    %v114 = vstv %s113
    %v115 = vstv %s103
    %v116 = vsel %vm106, %v114, %v115
    %v117 = vsel %vm107, %v114, %v115
    %s118 = sld [smem:[#allocation9 + $0x1]]
    %v119 = vstv %s118
    %v120 = vstv %s104
    %v121 = vsel %vm106, %v119, %v120
    %v122 = vsel %vm107, %v119, %v120
    %s123 = sld [smem:[#allocation10 + $0x1]]
    %v124 = vstv %s123
    %v125 = vstv %s105
    %v126 = vsel %vm106, %v124, %v125
    %v127 = vsel %vm107, %v124, %v125
    %vm128 = vcmp.eq.f32.partialorder %v98, 2.0
    %vm129 = vcmp.eq.f32.partialorder %v99, 2.0
    %s130 = sld [smem:[#allocation4 + $0x2]]
    %v131 = vstv %s130
    %v132 = vsel %vm128, %v131, %v111
    %v133 = vsel %vm129, %v131, %v112
    %s134 = sld [smem:[#allocation7 + $0x2]]
    %v135 = vstv %s134
    %v136 = vsel %vm128, %v135, %v116
    %v137 = vsel %vm129, %v135, %v117
    %s138 = sld [smem:[#allocation9 + $0x2]]
    %v139 = vstv %s138
    %v140 = vsel %vm128, %v139, %v121
    %v141 = vsel %vm129, %v139, %v122
    %s142 = sld [smem:[#allocation10 + $0x2]]
    %v143 = vstv %s142
    %v144 = vsel %vm128, %v143, %v126
    %v145 = vsel %vm129, %v143, %v127
    %vm146 = vcmp.eq.f32.partialorder %v98, 3.0
    %vm147 = vcmp.eq.f32.partialorder %v99, 3.0
    %s148 = sld [smem:[#allocation4 + $0x3]]
    %v149 = vstv %s148
    %v150 = vsel %vm146, %v149, %v132
    %v151 = vsel %vm147, %v149, %v133
    %s152 = sld [smem:[#allocation7 + $0x3]]
    %v153 = vstv %s152
    %v154 = vsel %vm146, %v153, %v136
    %v155 = vsel %vm147, %v153, %v137
    %s156 = sld [smem:[#allocation9 + $0x3]]
    %v157 = vstv %s156
    %v158 = vsel %vm146, %v157, %v140
    %v159 = vsel %vm147, %v157, %v141
    %s160 = sld [smem:[#allocation10 + $0x3]]
    %v161 = vstv %s160
    %v162 = vsel %vm146, %v161, %v144
    %v163 = vsel %vm147, %v161, %v145
    %vm164 = vcmp.eq.f32.partialorder %v98, 4.0
    %vm165 = vcmp.eq.f32.partialorder %v99, 4.0
    %s166 = sld [smem:[#allocation4 + $0x4]]
    %v167 = vstv %s166
    %v168 = vsel %vm164, %v167, %v150
    %v169 = vsel %vm165, %v167, %v151
    %s170 = sld [smem:[#allocation7 + $0x4]]
    %v171 = vstv %s170
    %v172 = vsel %vm164, %v171, %v154
    %v173 = vsel %vm165, %v171, %v155
    %s174 = sld [smem:[#allocation9 + $0x4]]
    %v175 = vstv %s174
    %v176 = vsel %vm164, %v175, %v158
    %v177 = vsel %vm165, %v175, %v159
    %s178 = sld [smem:[#allocation10 + $0x4]]
    %v179 = vstv %s178
    %v180 = vsel %vm164, %v179, %v162
    %v181 = vsel %vm165, %v179, %v163
    %vm182 = vcmp.eq.f32.partialorder %v98, 5.0
    %vm183 = vcmp.eq.f32.partialorder %v99, 5.0
    %s184 = sld [smem:[#allocation4 + $0x5]]
    %v185 = vstv %s184
    %v186 = vsel %vm182, %v185, %v168
    %v187 = vsel %vm183, %v185, %v169
    %s188 = sld [smem:[#allocation7 + $0x5]]
    %v189 = vstv %s188
    %v190 = vsel %vm182, %v189, %v172
    %v191 = vsel %vm183, %v189, %v173
    %s192 = sld [smem:[#allocation9 + $0x5]]
    %v193 = vstv %s192
    %v194 = vsel %vm182, %v193, %v176
    %v195 = vsel %vm183, %v193, %v177
    %s196 = sld [smem:[#allocation10 + $0x5]]
    %v197 = vstv %s196
    %v198 = vsel %vm182, %v197, %v180
    %v199 = vsel %vm183, %v197, %v181
    %vm200 = vcmp.eq.f32.partialorder %v98, 6.0
    %vm201 = vcmp.eq.f32.partialorder %v99, 6.0
    %s202 = sld [smem:[#allocation4 + $0x6]]
    %v203 = vstv %s202
    %v204 = vsel %vm200, %v203, %v186
    %v205 = vsel %vm201, %v203, %v187
    %s206 = sld [smem:[#allocation7 + $0x6]]
    %v207 = vstv %s206
    %v208 = vsel %vm200, %v207, %v190
    %v209 = vsel %vm201, %v207, %v191
    %s210 = sld [smem:[#allocation9 + $0x6]]
    %v211 = vstv %s210
    %v212 = vsel %vm200, %v211, %v194
    %v213 = vsel %vm201, %v211, %v195
    %s214 = sld [smem:[#allocation10 + $0x6]]
    %v215 = vstv %s214
    %v216 = vsel %vm200, %v215, %v198
    %v217 = vsel %vm201, %v215, %v199
    %vm218 = vcmp.eq.f32.partialorder %v98, 7.0
    %vm219 = vcmp.eq.f32.partialorder %v99, 7.0
    %s220 = sld [smem:[#allocation4 + $0x7]]
    %v221 = vstv %s220
    %v222 = vsel %vm218, %v221, %v204
    %v223 = vsel %vm219, %v221, %v205
    %s224 = sld [smem:[#allocation7 + $0x7]]
    %v225 = vstv %s224
    %v226 = vsel %vm218, %v225, %v208
    %v227 = vsel %vm219, %v225, %v209
    %s228 = sld [smem:[#allocation9 + $0x7]]
    %v229 = vstv %s228
    %v230 = vsel %vm218, %v229, %v212
    %v231 = vsel %vm219, %v229, %v213
    %s232 = sld [smem:[#allocation10 + $0x7]]
    %v233 = vstv %s232
    %v234 = vsel %vm218, %v233, %v216
    %v235 = vsel %vm219, %v233, %v217
    %vm236 = vcmp.eq.f32.partialorder %v98, 8.0
    %vm237 = vcmp.eq.f32.partialorder %v99, 8.0
    %s238 = sld [smem:[#allocation4 + $0x8]]
    %v239 = vstv %s238
    %v240 = vsel %vm236, %v239, %v222
    %v241 = vsel %vm237, %v239, %v223
    %s242 = sld [smem:[#allocation7 + $0x8]]
    %v243 = vstv %s242
    %v244 = vsel %vm236, %v243, %v226
    %v245 = vsel %vm237, %v243, %v227
    %s246 = sld [smem:[#allocation9 + $0x8]]
    %v247 = vstv %s246
    %v248 = vsel %vm236, %v247, %v230
    %v249 = vsel %vm237, %v247, %v231
    %s250 = sld [smem:[#allocation10 + $0x8]]
    %v251 = vstv %s250
    %v252 = vsel %vm236, %v251, %v234
    %v253 = vsel %vm237, %v251, %v235
    %vm254 = vcmp.eq.f32.partialorder %v98, 9.0
    %vm255 = vcmp.eq.f32.partialorder %v99, 9.0
    %s256 = sld [smem:[#allocation4 + $0x9]]
    %v257 = vstv %s256
    %v258 = vsel %vm254, %v257, %v240
    %v259 = vsel %vm255, %v257, %v241
    %s260 = sld [smem:[#allocation7 + $0x9]]
    %v261 = vstv %s260
    %v262 = vsel %vm254, %v261, %v244
    %v263 = vsel %vm255, %v261, %v245
    %s264 = sld [smem:[#allocation9 + $0x9]]
    %v265 = vstv %s264
    %v266 = vsel %vm254, %v265, %v248
    %v267 = vsel %vm255, %v265, %v249
    %s268 = sld [smem:[#allocation10 + $0x9]]
    %v269 = vstv %s268
    %v270 = vsel %vm254, %v269, %v252
    %v271 = vsel %vm255, %v269, %v253
    %vm272 = vcmp.eq.f32.partialorder %v98, 10.0
    %vm273 = vcmp.eq.f32.partialorder %v99, 10.0
    %s274 = sld [smem:[#allocation4 + $0xa]]
    %v275 = vstv %s274
    %v276 = vsel %vm272, %v275, %v258
    %v277 = vsel %vm273, %v275, %v259
    %s278 = sld [smem:[#allocation7 + $0xa]]
    %v279 = vstv %s278
    %v280 = vsel %vm272, %v279, %v262
    %v281 = vsel %vm273, %v279, %v263
    %s282 = sld [smem:[#allocation9 + $0xa]]
    %v283 = vstv %s282
    %v284 = vsel %vm272, %v283, %v266
    %v285 = vsel %vm273, %v283, %v267
    %s286 = sld [smem:[#allocation10 + $0xa]]
    %v287 = vstv %s286
    %v288 = vsel %vm272, %v287, %v270
    %v289 = vsel %vm273, %v287, %v271
    %vm290 = vcmp.eq.f32.partialorder %v98, 11.0
    %vm291 = vcmp.eq.f32.partialorder %v99, 11.0
    %s292 = sld [smem:[#allocation4 + $0xb]]
    %v293 = vstv %s292
    %v294 = vsel %vm290, %v293, %v276
    %v295 = vsel %vm291, %v293, %v277
    %s296 = sld [smem:[#allocation7 + $0xb]]
    %v297 = vstv %s296
    %v298 = vsel %vm290, %v297, %v280
    %v299 = vsel %vm291, %v297, %v281
    %s300 = sld [smem:[#allocation9 + $0xb]]
    %v301 = vstv %s300
    %v302 = vsel %vm290, %v301, %v284
    %v303 = vsel %vm291, %v301, %v285
    %s304 = sld [smem:[#allocation10 + $0xb]]
    %v305 = vstv %s304
    %v306 = vsel %vm290, %v305, %v288
    %v307 = vsel %vm291, %v305, %v289
    %vm308 = vcmp.eq.f32.partialorder %v98, 12.0
    %vm309 = vcmp.eq.f32.partialorder %v99, 12.0
    %s310 = sld [smem:[#allocation4 + $0xc]]
    %v311 = vstv %s310
    %v312 = vsel %vm308, %v311, %v294
    %v313 = vsel %vm309, %v311, %v295
    %s314 = sld [smem:[#allocation7 + $0xc]]
    %v315 = vstv %s314
    %v316 = vsel %vm308, %v315, %v298
    %v317 = vsel %vm309, %v315, %v299
    %s318 = sld [smem:[#allocation9 + $0xc]]
    %v319 = vstv %s318
    %v320 = vsel %vm308, %v319, %v302
    %v321 = vsel %vm309, %v319, %v303
    %s322 = sld [smem:[#allocation10 + $0xc]]
    %v323 = vstv %s322
    %v324 = vsel %vm308, %v323, %v306
    %v325 = vsel %vm309, %v323, %v307
    %vm326 = vcmp.eq.f32.partialorder %v98, 13.0
    %vm327 = vcmp.eq.f32.partialorder %v99, 13.0
    %s328 = sld [smem:[#allocation4 + $0xd]]
    %v329 = vstv %s328
    %v330 = vsel %vm326, %v329, %v312
    %v331 = vsel %vm327, %v329, %v313
    %s332 = sld [smem:[#allocation7 + $0xd]]
    %v333 = vstv %s332
    %v334 = vsel %vm326, %v333, %v316
    %v335 = vsel %vm327, %v333, %v317
    %s336 = sld [smem:[#allocation9 + $0xd]]
    %v337 = vstv %s336
    %v338 = vsel %vm326, %v337, %v320
    %v339 = vsel %vm327, %v337, %v321
    %s340 = sld [smem:[#allocation10 + $0xd]]
    %v341 = vstv %s340
    %v342 = vsel %vm326, %v341, %v324
    %v343 = vsel %vm327, %v341, %v325
    %vm344 = vcmp.eq.f32.partialorder %v98, 14.0
    %vm345 = vcmp.eq.f32.partialorder %v99, 14.0
    %s346 = sld [smem:[#allocation4 + $0xe]]
    %v347 = vstv %s346
    %v348 = vsel %vm344, %v347, %v330
    %v349 = vsel %vm345, %v347, %v331
    %s350 = sld [smem:[#allocation7 + $0xe]]
    %v351 = vstv %s350
    %v352 = vsel %vm344, %v351, %v334
    %v353 = vsel %vm345, %v351, %v335
    %s354 = sld [smem:[#allocation9 + $0xe]]
    %v355 = vstv %s354
    %v356 = vsel %vm344, %v355, %v338
    %v357 = vsel %vm345, %v355, %v339
    %s358 = sld [smem:[#allocation10 + $0xe]]
    %v359 = vstv %s358
    %v360 = vsel %vm344, %v359, %v342
    %v361 = vsel %vm345, %v359, %v343
    %vm362 = vcmp.eq.f32.partialorder %v98, 15.0
    %vm363 = vcmp.eq.f32.partialorder %v99, 15.0
    %s364 = sld [smem:[#allocation4 + $0xf]]
    %v365 = vstv %s364
    %v366 = vsel %vm362, %v365, %v348
    %v367 = vsel %vm363, %v365, %v349
    %s368 = sld [smem:[#allocation7 + $0xf]]
    %v369 = vstv %s368
    %v370 = vsel %vm362, %v369, %v352
    %v371 = vsel %vm363, %v369, %v353
    %s372 = sld [smem:[#allocation9 + $0xf]]
    %v373 = vstv %s372
    %v374 = vsel %vm362, %v373, %v356
    %v375 = vsel %vm363, %v373, %v357
    %s376 = sld [smem:[#allocation10 + $0xf]]
    %v377 = vstv %s376
    %v378 = vsel %vm362, %v377, %v360
    %v379 = vsel %vm363, %v377, %v361
    %v380 = vmul.f32 %v100, %v370
    %v381 = vmul.f32 %v101, %v371
    %v382 = vadd.f32 %v366, %v380
    %v383 = vadd.f32 %v367, %v381
    %v384 = vmul.f32 %v100, %v378
    %v385 = vmul.f32 %v101, %v379
    %v386 = vadd.f32 %v374, %v384
    %v387 = vadd.f32 %v375, %v385
    %vm388 = vcmp.lt.f32.partialorder %v96, 17.0
    %vm389 = vcmp.lt.f32.partialorder %v97, 17.0
    %v390 = vsel %vm388, %v382, 0.0
    %v391 = vsel %vm389, %v383, 0.0
    %v392 = vand.u32 2147483647, %v386
    %vm393 = vcmp.le.f32.partialorder %v392, 0.7853982
    %vm394 = vcmp.lt.s32.totalorder %v386, 0
    %v395 = vand.u32 %v386, 2139095040
    %v396 = vshrl.u32 %v395, 23
    %v397 = vsub.s32 %v396, 127
    %v398 = vand.u32 2147483647, %v386
    %v399 = vand.u32 %v398, 8388607
    %v400 = vor.u32 %v399, 8388608
    %v401 = vsub.s32 0, %v400
    %v402 = vadd.s32 %v397, 1
    %vm403 = vcmp.gt.s32.totalorder %v402, 0
    %v404 = vsel %vm403, %v402, 0
    %v405 = vshrl.u32 %v404, 5
    %v406 = vand.u32 %v404, 31
    %v407 = vsub.s32 32, %v406
    %v408 = vshrl.u32 683565275, %v407
    %v409 = vshll.u32 683565275, %v406
    %v410 = vshrl.u32 2475754826, %v407
    %v411 = vor.u32 %v409, %v410
    %v412 = vshll.u32 2475754826, %v406
    %v413 = vshrl.u32 2131351028, %v407
    %v414 = vor.u32 %v412, %v413
    %v415 = vshll.u32 2131351028, %v406
    %v416 = vshrl.u32 2102212464, %v407
    %v417 = vor.u32 %v415, %v416
    %v418 = vshll.u32 2102212464, %v406
    %v419 = vshrl.u32 920167782, %v407
    %v420 = vor.u32 %v418, %v419
    %v421 = vshll.u32 920167782, %v406
    %v422 = vshrl.u32 1326507024, %v407
    %v423 = vor.u32 %v421, %v422
    %vm424 = vcmp.lt.s32.totalorder %v405, 1
    %vm425 = vcmp.lt.s32.totalorder %v405, 2
    %vm426 = vcmp.lt.s32.totalorder %v405, 3
    %vm427 = vcmp.lt.s32.totalorder %v405, 4
    %v428 = vsel %vm424, %v408, %v411
    %v429 = vsel %vm427, %v417, 2102212464
    %v430 = vsel %vm426, %v414, %v429
    %v431 = vsel %vm425, %v428, %v430
    %v432 = vsel %vm424, %v411, %v414
    %v433 = vsel %vm427, %v420, 920167782
    %v434 = vsel %vm426, %v417, %v433
    %v435 = vsel %vm425, %v432, %v434
    %v436 = vsel %vm424, %v414, %v417
    %v437 = vsel %vm427, %v423, 1326507024
    %v438 = vsel %vm426, %v420, %v437
    %v439 = vsel %vm425, %v436, %v438
    %v440 = vshll.u32 %v400, 8
    %v441 = vand.u32 %v440, 65535
    %v442 = vshrl.u32 %v440, 16
    %v443 = vand.u32 %v439, 65535
    %v444 = vshrl.u32 %v439, 16
    %v445 = vmul.u32 %v441, %v443
    %v446 = vmul.u32 %v441, %v444
    %v447 = vmul.u32 %v442, %v443
    %v448 = vmul.u32 %v442, %v444
    %v449 = vshll.u32 %v446, 16
    %v450 = vshrl.u32 %v446, 16
    %v451 = vshll.u32 %v447, 16
    %v452 = vshrl.u32 %v447, 16
    %vm453 = vc.u32 %v445, %v449
    %v454 = vsel %vm453, 1, 0
    %v455 = vadd.s32 %v445, %v449
    %v456 = vadd.s32 %v448, %v454
    %vm457 = vc.u32 %v455, %v451
    %v458 = vsel %vm457, 1, 0
    %v459 = vadd.s32 %v455, %v451
    %v460 = vadd.s32 %v456, %v458
    %v461 = vadd.s32 %v460, %v450
    %v462 = vadd.s32 %v461, %v452
    %v463 = vand.u32 %v440, 65535
    %v464 = vshrl.u32 %v440, 16
    %v465 = vand.u32 %v435, 65535
    %v466 = vshrl.u32 %v435, 16
    %v467 = vmul.u32 %v463, %v465
    %v468 = vmul.u32 %v463, %v466
    %v469 = vmul.u32 %v464, %v465
    %v470 = vmul.u32 %v464, %v466
    %v471 = vshll.u32 %v468, 16
    %v472 = vshrl.u32 %v468, 16
    %v473 = vshll.u32 %v469, 16
    %v474 = vshrl.u32 %v469, 16
    %vm475 = vc.u32 %v467, %v471
    %v476 = vsel %vm475, 1, 0
    %v477 = vadd.s32 %v467, %v471
    %v478 = vadd.s32 %v470, %v476
    %vm479 = vc.u32 %v477, %v473
    %v480 = vsel %vm479, 1, 0
    %v481 = vadd.s32 %v477, %v473
    %v482 = vadd.s32 %v478, %v480
    %v483 = vadd.s32 %v482, %v472
    %v484 = vadd.s32 %v483, %v474
    %v485 = vmul.u32 %v440, %v431
    %v486 = vadd.s32 %v462, %v481
    %vm487 = vc.u32 %v462, %v481
    %v488 = vadd.s32 %v484, 1
    %v489 = vsel %vm487, %v488, %v484
    %v490 = vadd.s32 %v485, %v489
    %v491 = vadd.s32 %v490, 536870912
    %v492 = vshrl.u32 %v491, 30
    %v493 = vshll.u32 %v492, 30
    %v494 = vsub.s32 %v490, %v493
    %vm495 = vcmp.lt.s32.totalorder %v494, 0
    %v496 = vsub.s32 0, %v494
    %v497 = vsel %vm495, %v496, %v494
    %v498 = vclz %v497
    %v499 = vsub.s32 %v498, 2
    %vm500 = vcmp.gt.s32.totalorder 0, %v499
    %v501 = vsel %vm500, 0, %v499
    %v502 = vsub.s32 32, %v501
    %v503 = vshll.u32 %v494, %v501
    %v504 = vshrl.u32 %v486, %v502
    %v505 = vor.u32 %v503, %v504
    %v506 = vsub.s32 4294967266, %v501
    %v507 = vadd.s32 %v506, 127
    %v508 = vshll.u32 %v507, 23
    %v509 = vor.u32 4788187, %v508
    %v510 = vand.u32 2147483647, %v509
    %v512 = vcvt.s32.f32 %v505
    %v513 = vmul.f32 %v512, %v510
    %v514 = vxor.u32 %v513, 2147483648
    %v515 = vsel %vm394, %v514, %v513
    %v516 = vsub.s32 4, %v492
    %v517 = vsel %vm394, %v516, %v492
    %v518 = vsel %vm393, %v386, %v515
    %v519 = vsel %vm393, 0, %v517
    %v520 = vmul.f32 %v518, %v518
    %v521 = vmul.f32 %v520, -0.001358992
    %v522 = vadd.f32 %v521, 0.041655596
    %v523 = vmul.f32 %v520, %v522
    %v524 = vadd.f32 %v523, -0.4999988
    %v525 = vmul.f32 %v520, %v524
    %v526 = vadd.f32 1.0, %v525
    %v527 = vmul.f32 %v518, %v518
    %v528 = vmul.f32 %v527, -0.00019511016
    %v529 = vadd.f32 %v528, 0.008332121
    %v530 = vmul.f32 %v527, %v529
    %v531 = vadd.f32 %v530, -0.16666654
    %v532 = vmul.f32 %v527, %v531
    %v533 = vadd.f32 %v532, 1.0
    %v534 = vmul.f32 %v533, %v518
    %vm535 = vweird.f32 %v386
    %v536 = vand.u32 %v519, 3
    %vm537 = vcmp.lt.s32.totalorder %v536, 2
    %vm538 = vcmp.eq.s32.totalorder %v536, 0
    %v539 = vxor.u32 %v534, 2147483648
    %v540 = vsel %vm538, %v526, %v539
    %vm541 = vcmp.eq.s32.totalorder %v536, 2
    %v542 = vxor.u32 %v526, 2147483648
    %v543 = vsel %vm541, %v542, %v534
    %v544 = vsel %vm537, %v540, %v543
    %v545 = vsel %vm535, nan, %v544
    %v546 = vand.u32 2147483647, %v387
    %vm547 = vcmp.le.f32.partialorder %v546, 0.7853982
    %vm548 = vcmp.lt.s32.totalorder %v387, 0
    %v549 = vand.u32 %v387, 2139095040
    %v550 = vshrl.u32 %v549, 23
    %v551 = vsub.s32 %v550, 127
    %v552 = vand.u32 2147483647, %v387
    %v553 = vand.u32 %v552, 8388607
    %v554 = vor.u32 %v553, 8388608
    %v555 = vsub.s32 0, %v554
    %v556 = vadd.s32 %v551, 1
    %vm557 = vcmp.gt.s32.totalorder %v556, 0
    %v558 = vsel %vm557, %v556, 0
    %v559 = vshrl.u32 %v558, 5
    %v560 = vand.u32 %v558, 31
    %v561 = vsub.s32 32, %v560
    %v562 = vshrl.u32 683565275, %v561
    %v563 = vshll.u32 683565275, %v560
    %v564 = vshrl.u32 2475754826, %v561
    %v565 = vor.u32 %v563, %v564
    %v566 = vshll.u32 2475754826, %v560
    %v567 = vshrl.u32 2131351028, %v561
    %v568 = vor.u32 %v566, %v567
    %v569 = vshll.u32 2131351028, %v560
    %v570 = vshrl.u32 2102212464, %v561
    %v571 = vor.u32 %v569, %v570
    %v572 = vshll.u32 2102212464, %v560
    %v573 = vshrl.u32 920167782, %v561
    %v574 = vor.u32 %v572, %v573
    %v575 = vshll.u32 920167782, %v560
    %v576 = vshrl.u32 1326507024, %v561
    %v577 = vor.u32 %v575, %v576
    %vm578 = vcmp.lt.s32.totalorder %v559, 1
    %vm579 = vcmp.lt.s32.totalorder %v559, 2
    %vm580 = vcmp.lt.s32.totalorder %v559, 3
    %vm581 = vcmp.lt.s32.totalorder %v559, 4
    %v582 = vsel %vm578, %v562, %v565
    %v583 = vsel %vm581, %v571, 2102212464
    %v584 = vsel %vm580, %v568, %v583
    %v585 = vsel %vm579, %v582, %v584
    %v586 = vsel %vm578, %v565, %v568
    %v587 = vsel %vm581, %v574, 920167782
    %v588 = vsel %vm580, %v571, %v587
    %v589 = vsel %vm579, %v586, %v588
    %v590 = vsel %vm578, %v568, %v571
    %v591 = vsel %vm581, %v577, 1326507024
    %v592 = vsel %vm580, %v574, %v591
    %v593 = vsel %vm579, %v590, %v592
    %v594 = vshll.u32 %v554, 8
    %v595 = vand.u32 %v594, 65535
    %v596 = vshrl.u32 %v594, 16
    %v597 = vand.u32 %v593, 65535
    %v598 = vshrl.u32 %v593, 16
    %v599 = vmul.u32 %v595, %v597
    %v600 = vmul.u32 %v595, %v598
    %v601 = vmul.u32 %v596, %v597
    %v602 = vmul.u32 %v596, %v598
    %v603 = vshll.u32 %v600, 16
    %v604 = vshrl.u32 %v600, 16
    %v605 = vshll.u32 %v601, 16
    %v606 = vshrl.u32 %v601, 16
    %vm607 = vc.u32 %v599, %v603
    %v608 = vsel %vm607, 1, 0
    %v609 = vadd.s32 %v599, %v603
    %v610 = vadd.s32 %v602, %v608
    %vm611 = vc.u32 %v609, %v605
    %v612 = vsel %vm611, 1, 0
    %v613 = vadd.s32 %v609, %v605
    %v614 = vadd.s32 %v610, %v612
    %v615 = vadd.s32 %v614, %v604
    %v616 = vadd.s32 %v615, %v606
    %v617 = vand.u32 %v594, 65535
    %v618 = vshrl.u32 %v594, 16
    %v619 = vand.u32 %v589, 65535
    %v620 = vshrl.u32 %v589, 16
    %v621 = vmul.u32 %v617, %v619
    %v622 = vmul.u32 %v617, %v620
    %v623 = vmul.u32 %v618, %v619
    %v624 = vmul.u32 %v618, %v620
    %v625 = vshll.u32 %v622, 16
    %v626 = vshrl.u32 %v622, 16
    %v627 = vshll.u32 %v623, 16
    %v628 = vshrl.u32 %v623, 16
    %vm629 = vc.u32 %v621, %v625
    %v630 = vsel %vm629, 1, 0
    %v631 = vadd.s32 %v621, %v625
    %v632 = vadd.s32 %v624, %v630
    %vm633 = vc.u32 %v631, %v627
    %v634 = vsel %vm633, 1, 0
    %v635 = vadd.s32 %v631, %v627
    %v636 = vadd.s32 %v632, %v634
    %v637 = vadd.s32 %v636, %v626
    %v638 = vadd.s32 %v637, %v628
    %v639 = vmul.u32 %v594, %v585
    %v640 = vadd.s32 %v616, %v635
    %vm641 = vc.u32 %v616, %v635
    %v642 = vadd.s32 %v638, 1
    %v643 = vsel %vm641, %v642, %v638
    %v644 = vadd.s32 %v639, %v643
    %v645 = vadd.s32 %v644, 536870912
    %v646 = vshrl.u32 %v645, 30
    %v647 = vshll.u32 %v646, 30
    %v648 = vsub.s32 %v644, %v647
    %vm649 = vcmp.lt.s32.totalorder %v648, 0
    %v650 = vsub.s32 0, %v648
    %v651 = vsel %vm649, %v650, %v648
    %v652 = vclz %v651
    %v653 = vsub.s32 %v652, 2
    %vm654 = vcmp.gt.s32.totalorder 0, %v653
    %v655 = vsel %vm654, 0, %v653
    %v656 = vsub.s32 32, %v655
    %v657 = vshll.u32 %v648, %v655
    %v658 = vshrl.u32 %v640, %v656
    %v659 = vor.u32 %v657, %v658
    %v660 = vsub.s32 4294967266, %v655
    %v661 = vadd.s32 %v660, 127
    %v662 = vshll.u32 %v661, 23
    %v663 = vor.u32 4788187, %v662
    %v664 = vand.u32 2147483647, %v663
    %v666 = vcvt.s32.f32 %v659
    %v667 = vmul.f32 %v666, %v664
    %v668 = vxor.u32 %v667, 2147483648
    %v669 = vsel %vm548, %v668, %v667
    %v670 = vsub.s32 4, %v646
    %v671 = vsel %vm548, %v670, %v646
    %v672 = vsel %vm547, %v387, %v669
    %v673 = vsel %vm547, 0, %v671
    %v674 = vmul.f32 %v672, %v672
    %v675 = vmul.f32 %v674, -0.001358992
    %v676 = vadd.f32 %v675, 0.041655596
    %v677 = vmul.f32 %v674, %v676
    %v678 = vadd.f32 %v677, -0.4999988
    %v679 = vmul.f32 %v674, %v678
    %v680 = vadd.f32 1.0, %v679
    %v681 = vmul.f32 %v672, %v672
    %v682 = vmul.f32 %v681, -0.00019511016
    %v683 = vadd.f32 %v682, 0.008332121
    %v684 = vmul.f32 %v681, %v683
    %v685 = vadd.f32 %v684, -0.16666654
    %v686 = vmul.f32 %v681, %v685
    %v687 = vadd.f32 %v686, 1.0
    %v688 = vmul.f32 %v687, %v672
    %vm689 = vweird.f32 %v387
    %v690 = vand.u32 %v673, 3
    %vm691 = vcmp.lt.s32.totalorder %v690, 2
    %vm692 = vcmp.eq.s32.totalorder %v690, 0
    %v693 = vxor.u32 %v688, 2147483648
    %v694 = vsel %vm692, %v680, %v693
    %vm695 = vcmp.eq.s32.totalorder %v690, 2
    %v696 = vxor.u32 %v680, 2147483648
    %v697 = vsel %vm695, %v696, %v688
    %v698 = vsel %vm691, %v694, %v697
    %v699 = vsel %vm689, nan, %v698
    %v700 = vand.u32 2147483647, %v386
    %vm701 = vcmp.le.f32.partialorder %v700, 0.7853982
    %vm702 = vcmp.lt.s32.totalorder %v386, 0
    %v703 = vand.u32 %v386, 2139095040
    %v704 = vshrl.u32 %v703, 23
    %v705 = vsub.s32 %v704, 127
    %v706 = vand.u32 2147483647, %v386
    %v707 = vand.u32 %v706, 8388607
    %v708 = vor.u32 %v707, 8388608
    %v709 = vsub.s32 0, %v708
    %v710 = vadd.s32 %v705, 1
    %vm711 = vcmp.gt.s32.totalorder %v710, 0
    %v712 = vsel %vm711, %v710, 0
    %v713 = vshrl.u32 %v712, 5
    %v714 = vand.u32 %v712, 31
    %v715 = vsub.s32 32, %v714
    %v716 = vshrl.u32 683565275, %v715
    %v717 = vshll.u32 683565275, %v714
    %v718 = vshrl.u32 2475754826, %v715
    %v719 = vor.u32 %v717, %v718
    %v720 = vshll.u32 2475754826, %v714
    %v721 = vshrl.u32 2131351028, %v715
    %v722 = vor.u32 %v720, %v721
    %v723 = vshll.u32 2131351028, %v714
    %v724 = vshrl.u32 2102212464, %v715
    %v725 = vor.u32 %v723, %v724
    %v726 = vshll.u32 2102212464, %v714
    %v727 = vshrl.u32 920167782, %v715
    %v728 = vor.u32 %v726, %v727
    %v729 = vshll.u32 920167782, %v714
    %v730 = vshrl.u32 1326507024, %v715
    %v731 = vor.u32 %v729, %v730
    %vm732 = vcmp.lt.s32.totalorder %v713, 1
    %vm733 = vcmp.lt.s32.totalorder %v713, 2
    %vm734 = vcmp.lt.s32.totalorder %v713, 3
    %vm735 = vcmp.lt.s32.totalorder %v713, 4
    %v736 = vsel %vm732, %v716, %v719
    %v737 = vsel %vm735, %v725, 2102212464
    %v738 = vsel %vm734, %v722, %v737
    %v739 = vsel %vm733, %v736, %v738
    %v740 = vsel %vm732, %v719, %v722
    %v741 = vsel %vm735, %v728, 920167782
    %v742 = vsel %vm734, %v725, %v741
    %v743 = vsel %vm733, %v740, %v742
    %v744 = vsel %vm732, %v722, %v725
    %v745 = vsel %vm735, %v731, 1326507024
    %v746 = vsel %vm734, %v728, %v745
    %v747 = vsel %vm733, %v744, %v746
    %v748 = vshll.u32 %v708, 8
    %v749 = vand.u32 %v748, 65535
    %v750 = vshrl.u32 %v748, 16
    %v751 = vand.u32 %v747, 65535
    %v752 = vshrl.u32 %v747, 16
    %v753 = vmul.u32 %v749, %v751
    %v754 = vmul.u32 %v749, %v752
    %v755 = vmul.u32 %v750, %v751
    %v756 = vmul.u32 %v750, %v752
    %v757 = vshll.u32 %v754, 16
    %v758 = vshrl.u32 %v754, 16
    %v759 = vshll.u32 %v755, 16
    %v760 = vshrl.u32 %v755, 16
    %vm761 = vc.u32 %v753, %v757
    %v762 = vsel %vm761, 1, 0
    %v763 = vadd.s32 %v753, %v757
    %v764 = vadd.s32 %v756, %v762
    %vm765 = vc.u32 %v763, %v759
    %v766 = vsel %vm765, 1, 0
    %v767 = vadd.s32 %v763, %v759
    %v768 = vadd.s32 %v764, %v766
    %v769 = vadd.s32 %v768, %v758
    %v770 = vadd.s32 %v769, %v760
    %v771 = vand.u32 %v748, 65535
    %v772 = vshrl.u32 %v748, 16
    %v773 = vand.u32 %v743, 65535
    %v774 = vshrl.u32 %v743, 16
    %v775 = vmul.u32 %v771, %v773
    %v776 = vmul.u32 %v771, %v774
    %v777 = vmul.u32 %v772, %v773
    %v778 = vmul.u32 %v772, %v774
    %v779 = vshll.u32 %v776, 16
    %v780 = vshrl.u32 %v776, 16
    %v781 = vshll.u32 %v777, 16
    %v782 = vshrl.u32 %v777, 16
    %vm783 = vc.u32 %v775, %v779
    %v784 = vsel %vm783, 1, 0
    %v785 = vadd.s32 %v775, %v779
    %v786 = vadd.s32 %v778, %v784
    %vm787 = vc.u32 %v785, %v781
    %v788 = vsel %vm787, 1, 0
    %v789 = vadd.s32 %v785, %v781
    %v790 = vadd.s32 %v786, %v788
    %v791 = vadd.s32 %v790, %v780
    %v792 = vadd.s32 %v791, %v782
    %v793 = vmul.u32 %v748, %v739
    %v794 = vadd.s32 %v770, %v789
    %vm795 = vc.u32 %v770, %v789
    %v796 = vadd.s32 %v792, 1
    %v797 = vsel %vm795, %v796, %v792
    %v798 = vadd.s32 %v793, %v797
    %v799 = vadd.s32 %v798, 536870912
    %v800 = vshrl.u32 %v799, 30
    %v801 = vshll.u32 %v800, 30
    %v802 = vsub.s32 %v798, %v801
    %vm803 = vcmp.lt.s32.totalorder %v802, 0
    %v804 = vsub.s32 0, %v802
    %v805 = vsel %vm803, %v804, %v802
    %v806 = vclz %v805
    %v807 = vsub.s32 %v806, 2
    %vm808 = vcmp.gt.s32.totalorder 0, %v807
    %v809 = vsel %vm808, 0, %v807
    %v810 = vsub.s32 32, %v809
    %v811 = vshll.u32 %v802, %v809
    %v812 = vshrl.u32 %v794, %v810
    %v813 = vor.u32 %v811, %v812
    %v814 = vsub.s32 4294967266, %v809
    %v815 = vadd.s32 %v814, 127
    %v816 = vshll.u32 %v815, 23
    %v817 = vor.u32 4788187, %v816
    %v818 = vand.u32 2147483647, %v817
    %v820 = vcvt.s32.f32 %v813
    %v821 = vmul.f32 %v820, %v818
    %v822 = vxor.u32 %v821, 2147483648
    %v823 = vsel %vm702, %v822, %v821
    %v824 = vsub.s32 4, %v800
    %v825 = vsel %vm702, %v824, %v800
    %v826 = vsel %vm701, %v386, %v823
    %v827 = vsel %vm701, 0, %v825
    %v828 = vmul.f32 %v826, %v826
    %v829 = vmul.f32 %v828, -0.001358992
    %v830 = vadd.f32 %v829, 0.041655596
    %v831 = vmul.f32 %v828, %v830
    %v832 = vadd.f32 %v831, -0.4999988
    %v833 = vmul.f32 %v828, %v832
    %v834 = vadd.f32 1.0, %v833
    %v835 = vmul.f32 %v826, %v826
    %v836 = vmul.f32 %v835, -0.00019511016
    %v837 = vadd.f32 %v836, 0.008332121
    %v838 = vmul.f32 %v835, %v837
    %v839 = vadd.f32 %v838, -0.16666654
    %v840 = vmul.f32 %v835, %v839
    %v841 = vadd.f32 %v840, 1.0
    %v842 = vmul.f32 %v841, %v826
    %vm843 = vweird.f32 %v386
    %v844 = vadd.s32 %v827, 3
    %v845 = vand.u32 %v844, 3
    %vm846 = vcmp.lt.s32.totalorder %v845, 2
    %vm847 = vcmp.eq.s32.totalorder %v845, 0
    %v848 = vxor.u32 %v842, 2147483648
    %v849 = vsel %vm847, %v834, %v848
    %vm850 = vcmp.eq.s32.totalorder %v845, 2
    %v851 = vxor.u32 %v834, 2147483648
    %v852 = vsel %vm850, %v851, %v842
    %v853 = vsel %vm846, %v849, %v852
    %v854 = vsel %vm843, nan, %v853
    %v855 = vand.u32 2147483647, %v387
    %vm856 = vcmp.le.f32.partialorder %v855, 0.7853982
    %vm857 = vcmp.lt.s32.totalorder %v387, 0
    %v858 = vand.u32 %v387, 2139095040
    %v859 = vshrl.u32 %v858, 23
    %v860 = vsub.s32 %v859, 127
    %v861 = vand.u32 2147483647, %v387
    %v862 = vand.u32 %v861, 8388607
    %v863 = vor.u32 %v862, 8388608
    %v864 = vsub.s32 0, %v863
    %v865 = vadd.s32 %v860, 1
    %vm866 = vcmp.gt.s32.totalorder %v865, 0
    %v867 = vsel %vm866, %v865, 0
    %v868 = vshrl.u32 %v867, 5
    %v869 = vand.u32 %v867, 31
    %v870 = vsub.s32 32, %v869
    %v871 = vshrl.u32 683565275, %v870
    %v872 = vshll.u32 683565275, %v869
    %v873 = vshrl.u32 2475754826, %v870
    %v874 = vor.u32 %v872, %v873
    %v875 = vshll.u32 2475754826, %v869
    %v876 = vshrl.u32 2131351028, %v870
    %v877 = vor.u32 %v875, %v876
    %v878 = vshll.u32 2131351028, %v869
    %v879 = vshrl.u32 2102212464, %v870
    %v880 = vor.u32 %v878, %v879
    %v881 = vshll.u32 2102212464, %v869
    %v882 = vshrl.u32 920167782, %v870
    %v883 = vor.u32 %v881, %v882
    %v884 = vshll.u32 920167782, %v869
    %v885 = vshrl.u32 1326507024, %v870
    %v886 = vor.u32 %v884, %v885
    %vm887 = vcmp.lt.s32.totalorder %v868, 1
    %vm888 = vcmp.lt.s32.totalorder %v868, 2
    %vm889 = vcmp.lt.s32.totalorder %v868, 3
    %vm890 = vcmp.lt.s32.totalorder %v868, 4
    %v891 = vsel %vm887, %v871, %v874
    %v892 = vsel %vm890, %v880, 2102212464
    %v893 = vsel %vm889, %v877, %v892
    %v894 = vsel %vm888, %v891, %v893
    %v895 = vsel %vm887, %v874, %v877
    %v896 = vsel %vm890, %v883, 920167782
    %v897 = vsel %vm889, %v880, %v896
    %v898 = vsel %vm888, %v895, %v897
    %v899 = vsel %vm887, %v877, %v880
    %v900 = vsel %vm890, %v886, 1326507024
    %v901 = vsel %vm889, %v883, %v900
    %v902 = vsel %vm888, %v899, %v901
    %v903 = vshll.u32 %v863, 8
    %v904 = vand.u32 %v903, 65535
    %v905 = vshrl.u32 %v903, 16
    %v906 = vand.u32 %v902, 65535
    %v907 = vshrl.u32 %v902, 16
    %v908 = vmul.u32 %v904, %v906
    %v909 = vmul.u32 %v904, %v907
    %v910 = vmul.u32 %v905, %v906
    %v911 = vmul.u32 %v905, %v907
    %v912 = vshll.u32 %v909, 16
    %v913 = vshrl.u32 %v909, 16
    %v914 = vshll.u32 %v910, 16
    %v915 = vshrl.u32 %v910, 16
    %vm916 = vc.u32 %v908, %v912
    %v917 = vsel %vm916, 1, 0
    %v918 = vadd.s32 %v908, %v912
    %v919 = vadd.s32 %v911, %v917
    %vm920 = vc.u32 %v918, %v914
    %v921 = vsel %vm920, 1, 0
    %v922 = vadd.s32 %v918, %v914
    %v923 = vadd.s32 %v919, %v921
    %v924 = vadd.s32 %v923, %v913
    %v925 = vadd.s32 %v924, %v915
    %v926 = vand.u32 %v903, 65535
    %v927 = vshrl.u32 %v903, 16
    %v928 = vand.u32 %v898, 65535
    %v929 = vshrl.u32 %v898, 16
    %v930 = vmul.u32 %v926, %v928
    %v931 = vmul.u32 %v926, %v929
    %v932 = vmul.u32 %v927, %v928
    %v933 = vmul.u32 %v927, %v929
    %v934 = vshll.u32 %v931, 16
    %v935 = vshrl.u32 %v931, 16
    %v936 = vshll.u32 %v932, 16
    %v937 = vshrl.u32 %v932, 16
    %vm938 = vc.u32 %v930, %v934
    %v939 = vsel %vm938, 1, 0
    %v940 = vadd.s32 %v930, %v934
    %v941 = vadd.s32 %v933, %v939
    %vm942 = vc.u32 %v940, %v936
    %v943 = vsel %vm942, 1, 0
    %v944 = vadd.s32 %v940, %v936
    %v945 = vadd.s32 %v941, %v943
    %v946 = vadd.s32 %v945, %v935
    %v947 = vadd.s32 %v946, %v937
    %v948 = vmul.u32 %v903, %v894
    %v949 = vadd.s32 %v925, %v944
    %vm950 = vc.u32 %v925, %v944
    %v951 = vadd.s32 %v947, 1
    %v952 = vsel %vm950, %v951, %v947
    %v953 = vadd.s32 %v948, %v952
    %v954 = vadd.s32 %v953, 536870912
    %v955 = vshrl.u32 %v954, 30
    %v956 = vshll.u32 %v955, 30
    %v957 = vsub.s32 %v953, %v956
    %vm958 = vcmp.lt.s32.totalorder %v957, 0
    %v959 = vsub.s32 0, %v957
    %v960 = vsel %vm958, %v959, %v957
    %v961 = vclz %v960
    %v962 = vsub.s32 %v961, 2
    %vm963 = vcmp.gt.s32.totalorder 0, %v962
    %v964 = vsel %vm963, 0, %v962
    %v965 = vsub.s32 32, %v964
    %v966 = vshll.u32 %v957, %v964
    %v967 = vshrl.u32 %v949, %v965
    %v968 = vor.u32 %v966, %v967
    %v969 = vsub.s32 4294967266, %v964
    %v970 = vadd.s32 %v969, 127
    %v971 = vshll.u32 %v970, 23
    %v972 = vor.u32 4788187, %v971
    %v973 = vand.u32 2147483647, %v972
    %v975 = vcvt.s32.f32 %v968
    %v976 = vmul.f32 %v975, %v973
    %v977 = vxor.u32 %v976, 2147483648
    %v978 = vsel %vm857, %v977, %v976
    %v979 = vsub.s32 4, %v955
    %v980 = vsel %vm857, %v979, %v955
    %v981 = vsel %vm856, %v387, %v978
    %v982 = vsel %vm856, 0, %v980
    %v983 = vmul.f32 %v981, %v981
    %v984 = vmul.f32 %v983, -0.001358992
    %v985 = vadd.f32 %v984, 0.041655596
    %v986 = vmul.f32 %v983, %v985
    %v987 = vadd.f32 %v986, -0.4999988
    %v988 = vmul.f32 %v983, %v987
    %v989 = vadd.f32 1.0, %v988
    %v990 = vmul.f32 %v981, %v981
    %v991 = vmul.f32 %v990, -0.00019511016
    %v992 = vadd.f32 %v991, 0.008332121
    %v993 = vmul.f32 %v990, %v992
    %v994 = vadd.f32 %v993, -0.16666654
    %v995 = vmul.f32 %v990, %v994
    %v996 = vadd.f32 %v995, 1.0
    %v997 = vmul.f32 %v996, %v981
    %vm998 = vweird.f32 %v387
    %v999 = vadd.s32 %v982, 3
    %v1000 = vand.u32 %v999, 3
    %vm1001 = vcmp.lt.s32.totalorder %v1000, 2
    %vm1002 = vcmp.eq.s32.totalorder %v1000, 0
    %v1003 = vxor.u32 %v997, 2147483648
    %v1004 = vsel %vm1002, %v989, %v1003
    %vm1005 = vcmp.eq.s32.totalorder %v1000, 2
    %v1006 = vxor.u32 %v989, 2147483648
    %v1007 = vsel %vm1005, %v1006, %v997
    %v1008 = vsel %vm1001, %v1004, %v1007
    %v1009 = vsel %vm998, nan, %v1008
    %v1010 = vmul.f32 %v90, %v854
    %v1011 = vmul.f32 %v91, %v1009
    %v1012 = vadd.f32 %v545, %v1010
    %v1013 = vadd.f32 %v699, %v1011
    %v1014 = vmul.f32 %v390, %v1012
    %v1015 = vmul.f32 %v391, %v1013
    %v1016 = vmul.f32 %v1014, 0.33333334
    %v1017 = vmul.f32 %v1015, 0.33333334
    %v1018 = vadd.f32 %v82, %v1016
    %v1019 = vadd.f32 %v83, %v1017
    %v1020 = vmul.f32 %v1018, %v84
    %v1021 = vmul.f32 %v1019, %v84
    %v1022 = vadd.f32 %v1020, %v87
    %v1023 = vadd.f32 %v1021, %v87
    %v1024 = vtanh.pop %v1022
    %v1025 = vtanh.pop %v1023
    %v1026 = vadd.f32 %v1024, 1.0
    %v1027 = vadd.f32 %v1025, 1.0
    %v1028 = vmul.f32 %v1026, 8.5
    %v1029 = vmul.f32 %v1027, 8.5
    %v1030 = vfloor.f32 %v1028
    %v1031 = vfloor.f32 %v1029
    %v1032 = vmin.f32 %v1030, 15.0
    %v1033 = vmin.f32 %v1031, 15.0
    %v1034 = vsub.f32 %v1028, %v1032
    %v1035 = vsub.f32 %v1029, %v1033
    %vm1036 = vcmp.eq.f32.partialorder %v1032, 1.0
    %vm1037 = vcmp.eq.f32.partialorder %v1033, 1.0
    %v1038 = vsel %vm1036, %v109, %v110
    %v1039 = vsel %vm1037, %v109, %v110
    %v1040 = vsel %vm1036, %v114, %v115
    %v1041 = vsel %vm1037, %v114, %v115
    %v1042 = vsel %vm1036, %v119, %v120
    %v1043 = vsel %vm1037, %v119, %v120
    %v1044 = vsel %vm1036, %v124, %v125
    %v1045 = vsel %vm1037, %v124, %v125
    %vm1046 = vcmp.eq.f32.partialorder %v1032, 2.0
    %vm1047 = vcmp.eq.f32.partialorder %v1033, 2.0
    %v1048 = vsel %vm1046, %v131, %v1038
    %v1049 = vsel %vm1047, %v131, %v1039
    %v1050 = vsel %vm1046, %v135, %v1040
    %v1051 = vsel %vm1047, %v135, %v1041
    %v1052 = vsel %vm1046, %v139, %v1042
    %v1053 = vsel %vm1047, %v139, %v1043
    %v1054 = vsel %vm1046, %v143, %v1044
    %v1055 = vsel %vm1047, %v143, %v1045
    %vm1056 = vcmp.eq.f32.partialorder %v1032, 3.0
    %vm1057 = vcmp.eq.f32.partialorder %v1033, 3.0
    %v1058 = vsel %vm1056, %v149, %v1048
    %v1059 = vsel %vm1057, %v149, %v1049
    %v1060 = vsel %vm1056, %v153, %v1050
    %v1061 = vsel %vm1057, %v153, %v1051
    %v1062 = vsel %vm1056, %v157, %v1052
    %v1063 = vsel %vm1057, %v157, %v1053
    %v1064 = vsel %vm1056, %v161, %v1054
    %v1065 = vsel %vm1057, %v161, %v1055
    %vm1066 = vcmp.eq.f32.partialorder %v1032, 4.0
    %vm1067 = vcmp.eq.f32.partialorder %v1033, 4.0
    %v1068 = vsel %vm1066, %v167, %v1058
    %v1069 = vsel %vm1067, %v167, %v1059
    %v1070 = vsel %vm1066, %v171, %v1060
    %v1071 = vsel %vm1067, %v171, %v1061
    %v1072 = vsel %vm1066, %v175, %v1062
    %v1073 = vsel %vm1067, %v175, %v1063
    %v1074 = vsel %vm1066, %v179, %v1064
    %v1075 = vsel %vm1067, %v179, %v1065
    %vm1076 = vcmp.eq.f32.partialorder %v1032, 5.0
    %vm1077 = vcmp.eq.f32.partialorder %v1033, 5.0
    %v1078 = vsel %vm1076, %v185, %v1068
    %v1079 = vsel %vm1077, %v185, %v1069
    %v1080 = vsel %vm1076, %v189, %v1070
    %v1081 = vsel %vm1077, %v189, %v1071
    %v1082 = vsel %vm1076, %v193, %v1072
    %v1083 = vsel %vm1077, %v193, %v1073
    %v1084 = vsel %vm1076, %v197, %v1074
    %v1085 = vsel %vm1077, %v197, %v1075
    %vm1086 = vcmp.eq.f32.partialorder %v1032, 6.0
    %vm1087 = vcmp.eq.f32.partialorder %v1033, 6.0
    %v1088 = vsel %vm1086, %v203, %v1078
    %v1089 = vsel %vm1087, %v203, %v1079
    %v1090 = vsel %vm1086, %v207, %v1080
    %v1091 = vsel %vm1087, %v207, %v1081
    %v1092 = vsel %vm1086, %v211, %v1082
    %v1093 = vsel %vm1087, %v211, %v1083
    %v1094 = vsel %vm1086, %v215, %v1084
    %v1095 = vsel %vm1087, %v215, %v1085
    %vm1096 = vcmp.eq.f32.partialorder %v1032, 7.0
    %vm1097 = vcmp.eq.f32.partialorder %v1033, 7.0
    %v1098 = vsel %vm1096, %v221, %v1088
    %v1099 = vsel %vm1097, %v221, %v1089
    %v1100 = vsel %vm1096, %v225, %v1090
    %v1101 = vsel %vm1097, %v225, %v1091
    %v1102 = vsel %vm1096, %v229, %v1092
    %v1103 = vsel %vm1097, %v229, %v1093
    %v1104 = vsel %vm1096, %v233, %v1094
    %v1105 = vsel %vm1097, %v233, %v1095
    %vm1106 = vcmp.eq.f32.partialorder %v1032, 8.0
    %vm1107 = vcmp.eq.f32.partialorder %v1033, 8.0
    %v1108 = vsel %vm1106, %v239, %v1098
    %v1109 = vsel %vm1107, %v239, %v1099
    %v1110 = vsel %vm1106, %v243, %v1100
    %v1111 = vsel %vm1107, %v243, %v1101
    %v1112 = vsel %vm1106, %v247, %v1102
    %v1113 = vsel %vm1107, %v247, %v1103
    %v1114 = vsel %vm1106, %v251, %v1104
    %v1115 = vsel %vm1107, %v251, %v1105
    %vm1116 = vcmp.eq.f32.partialorder %v1032, 9.0
    %vm1117 = vcmp.eq.f32.partialorder %v1033, 9.0
    %v1118 = vsel %vm1116, %v257, %v1108
    %v1119 = vsel %vm1117, %v257, %v1109
    %v1120 = vsel %vm1116, %v261, %v1110
    %v1121 = vsel %vm1117, %v261, %v1111
    %v1122 = vsel %vm1116, %v265, %v1112
    %v1123 = vsel %vm1117, %v265, %v1113
    %v1124 = vsel %vm1116, %v269, %v1114
    %v1125 = vsel %vm1117, %v269, %v1115
    %vm1126 = vcmp.eq.f32.partialorder %v1032, 10.0
    %vm1127 = vcmp.eq.f32.partialorder %v1033, 10.0
    %v1128 = vsel %vm1126, %v275, %v1118
    %v1129 = vsel %vm1127, %v275, %v1119
    %v1130 = vsel %vm1126, %v279, %v1120
    %v1131 = vsel %vm1127, %v279, %v1121
    %v1132 = vsel %vm1126, %v283, %v1122
    %v1133 = vsel %vm1127, %v283, %v1123
    %v1134 = vsel %vm1126, %v287, %v1124
    %v1135 = vsel %vm1127, %v287, %v1125
    %vm1136 = vcmp.eq.f32.partialorder %v1032, 11.0
    %vm1137 = vcmp.eq.f32.partialorder %v1033, 11.0
    %v1138 = vsel %vm1136, %v293, %v1128
    %v1139 = vsel %vm1137, %v293, %v1129
    %v1140 = vsel %vm1136, %v297, %v1130
    %v1141 = vsel %vm1137, %v297, %v1131
    %v1142 = vsel %vm1136, %v301, %v1132
    %v1143 = vsel %vm1137, %v301, %v1133
    %v1144 = vsel %vm1136, %v305, %v1134
    %v1145 = vsel %vm1137, %v305, %v1135
    %vm1146 = vcmp.eq.f32.partialorder %v1032, 12.0
    %vm1147 = vcmp.eq.f32.partialorder %v1033, 12.0
    %v1148 = vsel %vm1146, %v311, %v1138
    %v1149 = vsel %vm1147, %v311, %v1139
    %v1150 = vsel %vm1146, %v315, %v1140
    %v1151 = vsel %vm1147, %v315, %v1141
    %v1152 = vsel %vm1146, %v319, %v1142
    %v1153 = vsel %vm1147, %v319, %v1143
    %v1154 = vsel %vm1146, %v323, %v1144
    %v1155 = vsel %vm1147, %v323, %v1145
    %vm1156 = vcmp.eq.f32.partialorder %v1032, 13.0
    %vm1157 = vcmp.eq.f32.partialorder %v1033, 13.0
    %v1158 = vsel %vm1156, %v329, %v1148
    %v1159 = vsel %vm1157, %v329, %v1149
    %v1160 = vsel %vm1156, %v333, %v1150
    %v1161 = vsel %vm1157, %v333, %v1151
    %v1162 = vsel %vm1156, %v337, %v1152
    %v1163 = vsel %vm1157, %v337, %v1153
    %v1164 = vsel %vm1156, %v341, %v1154
    %v1165 = vsel %vm1157, %v341, %v1155
    %vm1166 = vcmp.eq.f32.partialorder %v1032, 14.0
    %vm1167 = vcmp.eq.f32.partialorder %v1033, 14.0
    %v1168 = vsel %vm1166, %v347, %v1158
    %v1169 = vsel %vm1167, %v347, %v1159
    %v1170 = vsel %vm1166, %v351, %v1160
    %v1171 = vsel %vm1167, %v351, %v1161
    %v1172 = vsel %vm1166, %v355, %v1162
    %v1173 = vsel %vm1167, %v355, %v1163
    %v1174 = vsel %vm1166, %v359, %v1164
    %v1175 = vsel %vm1167, %v359, %v1165
    %vm1176 = vcmp.eq.f32.partialorder %v1032, 15.0
    %vm1177 = vcmp.eq.f32.partialorder %v1033, 15.0
    %v1178 = vsel %vm1176, %v365, %v1168
    %v1179 = vsel %vm1177, %v365, %v1169
    %v1180 = vsel %vm1176, %v369, %v1170
    %v1181 = vsel %vm1177, %v369, %v1171
    %v1182 = vsel %vm1176, %v373, %v1172
    %v1183 = vsel %vm1177, %v373, %v1173
    %v1184 = vsel %vm1176, %v377, %v1174
    %v1185 = vsel %vm1177, %v377, %v1175
    %v1186 = vmul.f32 %v1034, %v1180
    %v1187 = vmul.f32 %v1035, %v1181
    %v1188 = vadd.f32 %v1178, %v1186
    %v1189 = vadd.f32 %v1179, %v1187
    %v1190 = vmul.f32 %v1034, %v1184
    %v1191 = vmul.f32 %v1035, %v1185
    %v1192 = vadd.f32 %v1182, %v1190
    %v1193 = vadd.f32 %v1183, %v1191
    %vm1194 = vcmp.lt.f32.partialorder %v1030, 17.0
    %vm1195 = vcmp.lt.f32.partialorder %v1031, 17.0
    %v1196 = vsel %vm1194, %v1188, 0.0
    %v1197 = vsel %vm1195, %v1189, 0.0
    %v1198 = vand.u32 2147483647, %v1192
    %vm1199 = vcmp.le.f32.partialorder %v1198, 0.7853982
    %vm1200 = vcmp.lt.s32.totalorder %v1192, 0
    %v1201 = vand.u32 %v1192, 2139095040
    %v1202 = vshrl.u32 %v1201, 23
    %v1203 = vsub.s32 %v1202, 127
    %v1204 = vand.u32 2147483647, %v1192
    %v1205 = vand.u32 %v1204, 8388607
    %v1206 = vor.u32 %v1205, 8388608
    %v1207 = vsub.s32 0, %v1206
    %v1208 = vadd.s32 %v1203, 1
    %vm1209 = vcmp.gt.s32.totalorder %v1208, 0
    %v1210 = vsel %vm1209, %v1208, 0
    %v1211 = vshrl.u32 %v1210, 5
    %v1212 = vand.u32 %v1210, 31
    %v1213 = vsub.s32 32, %v1212
    %v1214 = vshrl.u32 683565275, %v1213
    %v1215 = vshll.u32 683565275, %v1212
    %v1216 = vshrl.u32 2475754826, %v1213
    %v1217 = vor.u32 %v1215, %v1216
    %v1218 = vshll.u32 2475754826, %v1212
    %v1219 = vshrl.u32 2131351028, %v1213
    %v1220 = vor.u32 %v1218, %v1219
    %v1221 = vshll.u32 2131351028, %v1212
    %v1222 = vshrl.u32 2102212464, %v1213
    %v1223 = vor.u32 %v1221, %v1222
    %v1224 = vshll.u32 2102212464, %v1212
    %v1225 = vshrl.u32 920167782, %v1213
    %v1226 = vor.u32 %v1224, %v1225
    %v1227 = vshll.u32 920167782, %v1212
    %v1228 = vshrl.u32 1326507024, %v1213
    %v1229 = vor.u32 %v1227, %v1228
    %vm1230 = vcmp.lt.s32.totalorder %v1211, 1
    %vm1231 = vcmp.lt.s32.totalorder %v1211, 2
    %vm1232 = vcmp.lt.s32.totalorder %v1211, 3
    %vm1233 = vcmp.lt.s32.totalorder %v1211, 4
    %v1234 = vsel %vm1230, %v1214, %v1217
    %v1235 = vsel %vm1233, %v1223, 2102212464
    %v1236 = vsel %vm1232, %v1220, %v1235
    %v1237 = vsel %vm1231, %v1234, %v1236
    %v1238 = vsel %vm1230, %v1217, %v1220
    %v1239 = vsel %vm1233, %v1226, 920167782
    %v1240 = vsel %vm1232, %v1223, %v1239
    %v1241 = vsel %vm1231, %v1238, %v1240
    %v1242 = vsel %vm1230, %v1220, %v1223
    %v1243 = vsel %vm1233, %v1229, 1326507024
    %v1244 = vsel %vm1232, %v1226, %v1243
    %v1245 = vsel %vm1231, %v1242, %v1244
    %v1246 = vshll.u32 %v1206, 8
    %v1247 = vand.u32 %v1246, 65535
    %v1248 = vshrl.u32 %v1246, 16
    %v1249 = vand.u32 %v1245, 65535
    %v1250 = vshrl.u32 %v1245, 16
    %v1251 = vmul.u32 %v1247, %v1249
    %v1252 = vmul.u32 %v1247, %v1250
    %v1253 = vmul.u32 %v1248, %v1249
    %v1254 = vmul.u32 %v1248, %v1250
    %v1255 = vshll.u32 %v1252, 16
    %v1256 = vshrl.u32 %v1252, 16
    %v1257 = vshll.u32 %v1253, 16
    %v1258 = vshrl.u32 %v1253, 16
    %vm1259 = vc.u32 %v1251, %v1255
    %v1260 = vsel %vm1259, 1, 0
    %v1261 = vadd.s32 %v1251, %v1255
    %v1262 = vadd.s32 %v1254, %v1260
    %vm1263 = vc.u32 %v1261, %v1257
    %v1264 = vsel %vm1263, 1, 0
    %v1265 = vadd.s32 %v1261, %v1257
    %v1266 = vadd.s32 %v1262, %v1264
    %v1267 = vadd.s32 %v1266, %v1256
    %v1268 = vadd.s32 %v1267, %v1258
    %v1269 = vand.u32 %v1246, 65535
    %v1270 = vshrl.u32 %v1246, 16
    %v1271 = vand.u32 %v1241, 65535
    %v1272 = vshrl.u32 %v1241, 16
    %v1273 = vmul.u32 %v1269, %v1271
    %v1274 = vmul.u32 %v1269, %v1272
    %v1275 = vmul.u32 %v1270, %v1271
    %v1276 = vmul.u32 %v1270, %v1272
    %v1277 = vshll.u32 %v1274, 16
    %v1278 = vshrl.u32 %v1274, 16
    %v1279 = vshll.u32 %v1275, 16
    %v1280 = vshrl.u32 %v1275, 16
    %vm1281 = vc.u32 %v1273, %v1277
    %v1282 = vsel %vm1281, 1, 0
    %v1283 = vadd.s32 %v1273, %v1277
    %v1284 = vadd.s32 %v1276, %v1282
    %vm1285 = vc.u32 %v1283, %v1279
    %v1286 = vsel %vm1285, 1, 0
    %v1287 = vadd.s32 %v1283, %v1279
    %v1288 = vadd.s32 %v1284, %v1286
    %v1289 = vadd.s32 %v1288, %v1278
    %v1290 = vadd.s32 %v1289, %v1280
    %v1291 = vmul.u32 %v1246, %v1237
    %v1292 = vadd.s32 %v1268, %v1287
    %vm1293 = vc.u32 %v1268, %v1287
    %v1294 = vadd.s32 %v1290, 1
    %v1295 = vsel %vm1293, %v1294, %v1290
    %v1296 = vadd.s32 %v1291, %v1295
    %v1297 = vadd.s32 %v1296, 536870912
    %v1298 = vshrl.u32 %v1297, 30
    %v1299 = vshll.u32 %v1298, 30
    %v1300 = vsub.s32 %v1296, %v1299
    %vm1301 = vcmp.lt.s32.totalorder %v1300, 0
    %v1302 = vsub.s32 0, %v1300
    %v1303 = vsel %vm1301, %v1302, %v1300
    %v1304 = vclz %v1303
    %v1305 = vsub.s32 %v1304, 2
    %vm1306 = vcmp.gt.s32.totalorder 0, %v1305
    %v1307 = vsel %vm1306, 0, %v1305
    %v1308 = vsub.s32 32, %v1307
    %v1309 = vshll.u32 %v1300, %v1307
    %v1310 = vshrl.u32 %v1292, %v1308
    %v1311 = vor.u32 %v1309, %v1310
    %v1312 = vsub.s32 4294967266, %v1307
    %v1313 = vadd.s32 %v1312, 127
    %v1314 = vshll.u32 %v1313, 23
    %v1315 = vor.u32 4788187, %v1314
    %v1316 = vand.u32 2147483647, %v1315
    %v1318 = vcvt.s32.f32 %v1311
    %v1319 = vmul.f32 %v1318, %v1316
    %v1320 = vxor.u32 %v1319, 2147483648
    %v1321 = vsel %vm1200, %v1320, %v1319
    %v1322 = vsub.s32 4, %v1298
    %v1323 = vsel %vm1200, %v1322, %v1298
    %v1324 = vsel %vm1199, %v1192, %v1321
    %v1325 = vsel %vm1199, 0, %v1323
    %v1326 = vmul.f32 %v1324, %v1324
    %v1327 = vmul.f32 %v1326, -0.001358992
    %v1328 = vadd.f32 %v1327, 0.041655596
    %v1329 = vmul.f32 %v1326, %v1328
    %v1330 = vadd.f32 %v1329, -0.4999988
    %v1331 = vmul.f32 %v1326, %v1330
    %v1332 = vadd.f32 1.0, %v1331
    %v1333 = vmul.f32 %v1324, %v1324
    %v1334 = vmul.f32 %v1333, -0.00019511016
    %v1335 = vadd.f32 %v1334, 0.008332121
    %v1336 = vmul.f32 %v1333, %v1335
    %v1337 = vadd.f32 %v1336, -0.16666654
    %v1338 = vmul.f32 %v1333, %v1337
    %v1339 = vadd.f32 %v1338, 1.0
    %v1340 = vmul.f32 %v1339, %v1324
    %vm1341 = vweird.f32 %v1192
    %v1342 = vand.u32 %v1325, 3
    %vm1343 = vcmp.lt.s32.totalorder %v1342, 2
    %vm1344 = vcmp.eq.s32.totalorder %v1342, 0
    %v1345 = vxor.u32 %v1340, 2147483648
    %v1346 = vsel %vm1344, %v1332, %v1345
    %vm1347 = vcmp.eq.s32.totalorder %v1342, 2
    %v1348 = vxor.u32 %v1332, 2147483648
    %v1349 = vsel %vm1347, %v1348, %v1340
    %v1350 = vsel %vm1343, %v1346, %v1349
    %v1351 = vsel %vm1341, nan, %v1350
    %v1352 = vand.u32 2147483647, %v1193
    %vm1353 = vcmp.le.f32.partialorder %v1352, 0.7853982
    %vm1354 = vcmp.lt.s32.totalorder %v1193, 0
    %v1355 = vand.u32 %v1193, 2139095040
    %v1356 = vshrl.u32 %v1355, 23
    %v1357 = vsub.s32 %v1356, 127
    %v1358 = vand.u32 2147483647, %v1193
    %v1359 = vand.u32 %v1358, 8388607
    %v1360 = vor.u32 %v1359, 8388608
    %v1361 = vsub.s32 0, %v1360
    %v1362 = vadd.s32 %v1357, 1
    %vm1363 = vcmp.gt.s32.totalorder %v1362, 0
    %v1364 = vsel %vm1363, %v1362, 0
    %v1365 = vshrl.u32 %v1364, 5
    %v1366 = vand.u32 %v1364, 31
    %v1367 = vsub.s32 32, %v1366
    %v1368 = vshrl.u32 683565275, %v1367
    %v1369 = vshll.u32 683565275, %v1366
    %v1370 = vshrl.u32 2475754826, %v1367
    %v1371 = vor.u32 %v1369, %v1370
    %v1372 = vshll.u32 2475754826, %v1366
    %v1373 = vshrl.u32 2131351028, %v1367
    %v1374 = vor.u32 %v1372, %v1373
    %v1375 = vshll.u32 2131351028, %v1366
    %v1376 = vshrl.u32 2102212464, %v1367
    %v1377 = vor.u32 %v1375, %v1376
    %v1378 = vshll.u32 2102212464, %v1366
    %v1379 = vshrl.u32 920167782, %v1367
    %v1380 = vor.u32 %v1378, %v1379
    %v1381 = vshll.u32 920167782, %v1366
    %v1382 = vshrl.u32 1326507024, %v1367
    %v1383 = vor.u32 %v1381, %v1382
    %vm1384 = vcmp.lt.s32.totalorder %v1365, 1
    %vm1385 = vcmp.lt.s32.totalorder %v1365, 2
    %vm1386 = vcmp.lt.s32.totalorder %v1365, 3
    %vm1387 = vcmp.lt.s32.totalorder %v1365, 4
    %v1388 = vsel %vm1384, %v1368, %v1371
    %v1389 = vsel %vm1387, %v1377, 2102212464
    %v1390 = vsel %vm1386, %v1374, %v1389
    %v1391 = vsel %vm1385, %v1388, %v1390
    %v1392 = vsel %vm1384, %v1371, %v1374
    %v1393 = vsel %vm1387, %v1380, 920167782
    %v1394 = vsel %vm1386, %v1377, %v1393
    %v1395 = vsel %vm1385, %v1392, %v1394
    %v1396 = vsel %vm1384, %v1374, %v1377
    %v1397 = vsel %vm1387, %v1383, 1326507024
    %v1398 = vsel %vm1386, %v1380, %v1397
    %v1399 = vsel %vm1385, %v1396, %v1398
    %v1400 = vshll.u32 %v1360, 8
    %v1401 = vand.u32 %v1400, 65535
    %v1402 = vshrl.u32 %v1400, 16
    %v1403 = vand.u32 %v1399, 65535
    %v1404 = vshrl.u32 %v1399, 16
    %v1405 = vmul.u32 %v1401, %v1403
    %v1406 = vmul.u32 %v1401, %v1404
    %v1407 = vmul.u32 %v1402, %v1403
    %v1408 = vmul.u32 %v1402, %v1404
    %v1409 = vshll.u32 %v1406, 16
    %v1410 = vshrl.u32 %v1406, 16
    %v1411 = vshll.u32 %v1407, 16
    %v1412 = vshrl.u32 %v1407, 16
    %vm1413 = vc.u32 %v1405, %v1409
    %v1414 = vsel %vm1413, 1, 0
    %v1415 = vadd.s32 %v1405, %v1409
    %v1416 = vadd.s32 %v1408, %v1414
    %vm1417 = vc.u32 %v1415, %v1411
    %v1418 = vsel %vm1417, 1, 0
    %v1419 = vadd.s32 %v1415, %v1411
    %v1420 = vadd.s32 %v1416, %v1418
    %v1421 = vadd.s32 %v1420, %v1410
    %v1422 = vadd.s32 %v1421, %v1412
    %v1423 = vand.u32 %v1400, 65535
    %v1424 = vshrl.u32 %v1400, 16
    %v1425 = vand.u32 %v1395, 65535
    %v1426 = vshrl.u32 %v1395, 16
    %v1427 = vmul.u32 %v1423, %v1425
    %v1428 = vmul.u32 %v1423, %v1426
    %v1429 = vmul.u32 %v1424, %v1425
    %v1430 = vmul.u32 %v1424, %v1426
    %v1431 = vshll.u32 %v1428, 16
    %v1432 = vshrl.u32 %v1428, 16
    %v1433 = vshll.u32 %v1429, 16
    %v1434 = vshrl.u32 %v1429, 16
    %vm1435 = vc.u32 %v1427, %v1431
    %v1436 = vsel %vm1435, 1, 0
    %v1437 = vadd.s32 %v1427, %v1431
    %v1438 = vadd.s32 %v1430, %v1436
    %vm1439 = vc.u32 %v1437, %v1433
    %v1440 = vsel %vm1439, 1, 0
    %v1441 = vadd.s32 %v1437, %v1433
    %v1442 = vadd.s32 %v1438, %v1440
    %v1443 = vadd.s32 %v1442, %v1432
    %v1444 = vadd.s32 %v1443, %v1434
    %v1445 = vmul.u32 %v1400, %v1391
    %v1446 = vadd.s32 %v1422, %v1441
    %vm1447 = vc.u32 %v1422, %v1441
    %v1448 = vadd.s32 %v1444, 1
    %v1449 = vsel %vm1447, %v1448, %v1444
    %v1450 = vadd.s32 %v1445, %v1449
    %v1451 = vadd.s32 %v1450, 536870912
    %v1452 = vshrl.u32 %v1451, 30
    %v1453 = vshll.u32 %v1452, 30
    %v1454 = vsub.s32 %v1450, %v1453
    %vm1455 = vcmp.lt.s32.totalorder %v1454, 0
    %v1456 = vsub.s32 0, %v1454
    %v1457 = vsel %vm1455, %v1456, %v1454
    %v1458 = vclz %v1457
    %v1459 = vsub.s32 %v1458, 2
    %vm1460 = vcmp.gt.s32.totalorder 0, %v1459
    %v1461 = vsel %vm1460, 0, %v1459
    %v1462 = vsub.s32 32, %v1461
    %v1463 = vshll.u32 %v1454, %v1461
    %v1464 = vshrl.u32 %v1446, %v1462
    %v1465 = vor.u32 %v1463, %v1464
    %v1466 = vsub.s32 4294967266, %v1461
    %v1467 = vadd.s32 %v1466, 127
    %v1468 = vshll.u32 %v1467, 23
    %v1469 = vor.u32 4788187, %v1468
    %v1470 = vand.u32 2147483647, %v1469
    %v1472 = vcvt.s32.f32 %v1465
    %v1473 = vmul.f32 %v1472, %v1470
    %v1474 = vxor.u32 %v1473, 2147483648
    %v1475 = vsel %vm1354, %v1474, %v1473
    %v1476 = vsub.s32 4, %v1452
    %v1477 = vsel %vm1354, %v1476, %v1452
    %v1478 = vsel %vm1353, %v1193, %v1475
    %v1479 = vsel %vm1353, 0, %v1477
    %v1480 = vmul.f32 %v1478, %v1478
    %v1481 = vmul.f32 %v1480, -0.001358992
    %v1482 = vadd.f32 %v1481, 0.041655596
    %v1483 = vmul.f32 %v1480, %v1482
    %v1484 = vadd.f32 %v1483, -0.4999988
    %v1485 = vmul.f32 %v1480, %v1484
    %v1486 = vadd.f32 1.0, %v1485
    %v1487 = vmul.f32 %v1478, %v1478
    %v1488 = vmul.f32 %v1487, -0.00019511016
    %v1489 = vadd.f32 %v1488, 0.008332121
    %v1490 = vmul.f32 %v1487, %v1489
    %v1491 = vadd.f32 %v1490, -0.16666654
    %v1492 = vmul.f32 %v1487, %v1491
    %v1493 = vadd.f32 %v1492, 1.0
    %v1494 = vmul.f32 %v1493, %v1478
    %vm1495 = vweird.f32 %v1193
    %v1496 = vand.u32 %v1479, 3
    %vm1497 = vcmp.lt.s32.totalorder %v1496, 2
    %vm1498 = vcmp.eq.s32.totalorder %v1496, 0
    %v1499 = vxor.u32 %v1494, 2147483648
    %v1500 = vsel %vm1498, %v1486, %v1499
    %vm1501 = vcmp.eq.s32.totalorder %v1496, 2
    %v1502 = vxor.u32 %v1486, 2147483648
    %v1503 = vsel %vm1501, %v1502, %v1494
    %v1504 = vsel %vm1497, %v1500, %v1503
    %v1505 = vsel %vm1495, nan, %v1504
    %v1506 = vand.u32 2147483647, %v1192
    %vm1507 = vcmp.le.f32.partialorder %v1506, 0.7853982
    %vm1508 = vcmp.lt.s32.totalorder %v1192, 0
    %v1509 = vand.u32 %v1192, 2139095040
    %v1510 = vshrl.u32 %v1509, 23
    %v1511 = vsub.s32 %v1510, 127
    %v1512 = vand.u32 2147483647, %v1192
    %v1513 = vand.u32 %v1512, 8388607
    %v1514 = vor.u32 %v1513, 8388608
    %v1515 = vsub.s32 0, %v1514
    %v1516 = vadd.s32 %v1511, 1
    %vm1517 = vcmp.gt.s32.totalorder %v1516, 0
    %v1518 = vsel %vm1517, %v1516, 0
    %v1519 = vshrl.u32 %v1518, 5
    %v1520 = vand.u32 %v1518, 31
    %v1521 = vsub.s32 32, %v1520
    %v1522 = vshrl.u32 683565275, %v1521
    %v1523 = vshll.u32 683565275, %v1520
    %v1524 = vshrl.u32 2475754826, %v1521
    %v1525 = vor.u32 %v1523, %v1524
    %v1526 = vshll.u32 2475754826, %v1520
    %v1527 = vshrl.u32 2131351028, %v1521
    %v1528 = vor.u32 %v1526, %v1527
    %v1529 = vshll.u32 2131351028, %v1520
    %v1530 = vshrl.u32 2102212464, %v1521
    %v1531 = vor.u32 %v1529, %v1530
    %v1532 = vshll.u32 2102212464, %v1520
    %v1533 = vshrl.u32 920167782, %v1521
    %v1534 = vor.u32 %v1532, %v1533
    %v1535 = vshll.u32 920167782, %v1520
    %v1536 = vshrl.u32 1326507024, %v1521
    %v1537 = vor.u32 %v1535, %v1536
    %vm1538 = vcmp.lt.s32.totalorder %v1519, 1
    %vm1539 = vcmp.lt.s32.totalorder %v1519, 2
    %vm1540 = vcmp.lt.s32.totalorder %v1519, 3
    %vm1541 = vcmp.lt.s32.totalorder %v1519, 4
    %v1542 = vsel %vm1538, %v1522, %v1525
    %v1543 = vsel %vm1541, %v1531, 2102212464
    %v1544 = vsel %vm1540, %v1528, %v1543
    %v1545 = vsel %vm1539, %v1542, %v1544
    %v1546 = vsel %vm1538, %v1525, %v1528
    %v1547 = vsel %vm1541, %v1534, 920167782
    %v1548 = vsel %vm1540, %v1531, %v1547
    %v1549 = vsel %vm1539, %v1546, %v1548
    %v1550 = vsel %vm1538, %v1528, %v1531
    %v1551 = vsel %vm1541, %v1537, 1326507024
    %v1552 = vsel %vm1540, %v1534, %v1551
    %v1553 = vsel %vm1539, %v1550, %v1552
    %v1554 = vshll.u32 %v1514, 8
    %v1555 = vand.u32 %v1554, 65535
    %v1556 = vshrl.u32 %v1554, 16
    %v1557 = vand.u32 %v1553, 65535
    %v1558 = vshrl.u32 %v1553, 16
    %v1559 = vmul.u32 %v1555, %v1557
    %v1560 = vmul.u32 %v1555, %v1558
    %v1561 = vmul.u32 %v1556, %v1557
    %v1562 = vmul.u32 %v1556, %v1558
    %v1563 = vshll.u32 %v1560, 16
    %v1564 = vshrl.u32 %v1560, 16
    %v1565 = vshll.u32 %v1561, 16
    %v1566 = vshrl.u32 %v1561, 16
    %vm1567 = vc.u32 %v1559, %v1563
    %v1568 = vsel %vm1567, 1, 0
    %v1569 = vadd.s32 %v1559, %v1563
    %v1570 = vadd.s32 %v1562, %v1568
    %vm1571 = vc.u32 %v1569, %v1565
    %v1572 = vsel %vm1571, 1, 0
    %v1573 = vadd.s32 %v1569, %v1565
    %v1574 = vadd.s32 %v1570, %v1572
    %v1575 = vadd.s32 %v1574, %v1564
    %v1576 = vadd.s32 %v1575, %v1566
    %v1577 = vand.u32 %v1554, 65535
    %v1578 = vshrl.u32 %v1554, 16
    %v1579 = vand.u32 %v1549, 65535
    %v1580 = vshrl.u32 %v1549, 16
    %v1581 = vmul.u32 %v1577, %v1579
    %v1582 = vmul.u32 %v1577, %v1580
    %v1583 = vmul.u32 %v1578, %v1579
    %v1584 = vmul.u32 %v1578, %v1580
    %v1585 = vshll.u32 %v1582, 16
    %v1586 = vshrl.u32 %v1582, 16
    %v1587 = vshll.u32 %v1583, 16
    %v1588 = vshrl.u32 %v1583, 16
    %vm1589 = vc.u32 %v1581, %v1585
    %v1590 = vsel %vm1589, 1, 0
    %v1591 = vadd.s32 %v1581, %v1585
    %v1592 = vadd.s32 %v1584, %v1590
    %vm1593 = vc.u32 %v1591, %v1587
    %v1594 = vsel %vm1593, 1, 0
    %v1595 = vadd.s32 %v1591, %v1587
    %v1596 = vadd.s32 %v1592, %v1594
    %v1597 = vadd.s32 %v1596, %v1586
    %v1598 = vadd.s32 %v1597, %v1588
    %v1599 = vmul.u32 %v1554, %v1545
    %v1600 = vadd.s32 %v1576, %v1595
    %vm1601 = vc.u32 %v1576, %v1595
    %v1602 = vadd.s32 %v1598, 1
    %v1603 = vsel %vm1601, %v1602, %v1598
    %v1604 = vadd.s32 %v1599, %v1603
    %v1605 = vadd.s32 %v1604, 536870912
    %v1606 = vshrl.u32 %v1605, 30
    %v1607 = vshll.u32 %v1606, 30
    %v1608 = vsub.s32 %v1604, %v1607
    %vm1609 = vcmp.lt.s32.totalorder %v1608, 0
    %v1610 = vsub.s32 0, %v1608
    %v1611 = vsel %vm1609, %v1610, %v1608
    %v1612 = vclz %v1611
    %v1613 = vsub.s32 %v1612, 2
    %vm1614 = vcmp.gt.s32.totalorder 0, %v1613
    %v1615 = vsel %vm1614, 0, %v1613
    %v1616 = vsub.s32 32, %v1615
    %v1617 = vshll.u32 %v1608, %v1615
    %v1618 = vshrl.u32 %v1600, %v1616
    %v1619 = vor.u32 %v1617, %v1618
    %v1620 = vsub.s32 4294967266, %v1615
    %v1621 = vadd.s32 %v1620, 127
    %v1622 = vshll.u32 %v1621, 23
    %v1623 = vor.u32 4788187, %v1622
    %v1624 = vand.u32 2147483647, %v1623
    %v1626 = vcvt.s32.f32 %v1619
    %v1627 = vmul.f32 %v1626, %v1624
    %v1628 = vxor.u32 %v1627, 2147483648
    %v1629 = vsel %vm1508, %v1628, %v1627
    %v1630 = vsub.s32 4, %v1606
    %v1631 = vsel %vm1508, %v1630, %v1606
    %v1632 = vsel %vm1507, %v1192, %v1629
    %v1633 = vsel %vm1507, 0, %v1631
    %v1634 = vmul.f32 %v1632, %v1632
    %v1635 = vmul.f32 %v1634, -0.001358992
    %v1636 = vadd.f32 %v1635, 0.041655596
    %v1637 = vmul.f32 %v1634, %v1636
    %v1638 = vadd.f32 %v1637, -0.4999988
    %v1639 = vmul.f32 %v1634, %v1638
    %v1640 = vadd.f32 1.0, %v1639
    %v1641 = vmul.f32 %v1632, %v1632
    %v1642 = vmul.f32 %v1641, -0.00019511016
    %v1643 = vadd.f32 %v1642, 0.008332121
    %v1644 = vmul.f32 %v1641, %v1643
    %v1645 = vadd.f32 %v1644, -0.16666654
    %v1646 = vmul.f32 %v1641, %v1645
    %v1647 = vadd.f32 %v1646, 1.0
    %v1648 = vmul.f32 %v1647, %v1632
    %vm1649 = vweird.f32 %v1192
    %v1650 = vadd.s32 %v1633, 3
    %v1651 = vand.u32 %v1650, 3
    %vm1652 = vcmp.lt.s32.totalorder %v1651, 2
    %vm1653 = vcmp.eq.s32.totalorder %v1651, 0
    %v1654 = vxor.u32 %v1648, 2147483648
    %v1655 = vsel %vm1653, %v1640, %v1654
    %vm1656 = vcmp.eq.s32.totalorder %v1651, 2
    %v1657 = vxor.u32 %v1640, 2147483648
    %v1658 = vsel %vm1656, %v1657, %v1648
    %v1659 = vsel %vm1652, %v1655, %v1658
    %v1660 = vsel %vm1649, nan, %v1659
    %v1661 = vand.u32 2147483647, %v1193
    %vm1662 = vcmp.le.f32.partialorder %v1661, 0.7853982
    %vm1663 = vcmp.lt.s32.totalorder %v1193, 0
    %v1664 = vand.u32 %v1193, 2139095040
    %v1665 = vshrl.u32 %v1664, 23
    %v1666 = vsub.s32 %v1665, 127
    %v1667 = vand.u32 2147483647, %v1193
    %v1668 = vand.u32 %v1667, 8388607
    %v1669 = vor.u32 %v1668, 8388608
    %v1670 = vsub.s32 0, %v1669
    %v1671 = vadd.s32 %v1666, 1
    %vm1672 = vcmp.gt.s32.totalorder %v1671, 0
    %v1673 = vsel %vm1672, %v1671, 0
    %v1674 = vshrl.u32 %v1673, 5
    %v1675 = vand.u32 %v1673, 31
    %v1676 = vsub.s32 32, %v1675
    %v1677 = vshrl.u32 683565275, %v1676
    %v1678 = vshll.u32 683565275, %v1675
    %v1679 = vshrl.u32 2475754826, %v1676
    %v1680 = vor.u32 %v1678, %v1679
    %v1681 = vshll.u32 2475754826, %v1675
    %v1682 = vshrl.u32 2131351028, %v1676
    %v1683 = vor.u32 %v1681, %v1682
    %v1684 = vshll.u32 2131351028, %v1675
    %v1685 = vshrl.u32 2102212464, %v1676
    %v1686 = vor.u32 %v1684, %v1685
    %v1687 = vshll.u32 2102212464, %v1675
    %v1688 = vshrl.u32 920167782, %v1676
    %v1689 = vor.u32 %v1687, %v1688
    %v1690 = vshll.u32 920167782, %v1675
    %v1691 = vshrl.u32 1326507024, %v1676
    %v1692 = vor.u32 %v1690, %v1691
    %vm1693 = vcmp.lt.s32.totalorder %v1674, 1
    %vm1694 = vcmp.lt.s32.totalorder %v1674, 2
    %vm1695 = vcmp.lt.s32.totalorder %v1674, 3
    %vm1696 = vcmp.lt.s32.totalorder %v1674, 4
    %v1697 = vsel %vm1693, %v1677, %v1680
    %v1698 = vsel %vm1696, %v1686, 2102212464
    %v1699 = vsel %vm1695, %v1683, %v1698
    %v1700 = vsel %vm1694, %v1697, %v1699
    %v1701 = vsel %vm1693, %v1680, %v1683
    %v1702 = vsel %vm1696, %v1689, 920167782
    %v1703 = vsel %vm1695, %v1686, %v1702
    %v1704 = vsel %vm1694, %v1701, %v1703
    %v1705 = vsel %vm1693, %v1683, %v1686
    %v1706 = vsel %vm1696, %v1692, 1326507024
    %v1707 = vsel %vm1695, %v1689, %v1706
    %v1708 = vsel %vm1694, %v1705, %v1707
    %v1709 = vshll.u32 %v1669, 8
    %v1710 = vand.u32 %v1709, 65535
    %v1711 = vshrl.u32 %v1709, 16
    %v1712 = vand.u32 %v1708, 65535
    %v1713 = vshrl.u32 %v1708, 16
    %v1714 = vmul.u32 %v1710, %v1712
    %v1715 = vmul.u32 %v1710, %v1713
    %v1716 = vmul.u32 %v1711, %v1712
    %v1717 = vmul.u32 %v1711, %v1713
    %v1718 = vshll.u32 %v1715, 16
    %v1719 = vshrl.u32 %v1715, 16
    %v1720 = vshll.u32 %v1716, 16
    %v1721 = vshrl.u32 %v1716, 16
    %vm1722 = vc.u32 %v1714, %v1718
    %v1723 = vsel %vm1722, 1, 0
    %v1724 = vadd.s32 %v1714, %v1718
    %v1725 = vadd.s32 %v1717, %v1723
    %vm1726 = vc.u32 %v1724, %v1720
    %v1727 = vsel %vm1726, 1, 0
    %v1728 = vadd.s32 %v1724, %v1720
    %v1729 = vadd.s32 %v1725, %v1727
    %v1730 = vadd.s32 %v1729, %v1719
    %v1731 = vadd.s32 %v1730, %v1721
    %v1732 = vand.u32 %v1709, 65535
    %v1733 = vshrl.u32 %v1709, 16
    %v1734 = vand.u32 %v1704, 65535
    %v1735 = vshrl.u32 %v1704, 16
    %v1736 = vmul.u32 %v1732, %v1734
    %v1737 = vmul.u32 %v1732, %v1735
    %v1738 = vmul.u32 %v1733, %v1734
    %v1739 = vmul.u32 %v1733, %v1735
    %v1740 = vshll.u32 %v1737, 16
    %v1741 = vshrl.u32 %v1737, 16
    %v1742 = vshll.u32 %v1738, 16
    %v1743 = vshrl.u32 %v1738, 16
    %vm1744 = vc.u32 %v1736, %v1740
    %v1745 = vsel %vm1744, 1, 0
    %v1746 = vadd.s32 %v1736, %v1740
    %v1747 = vadd.s32 %v1739, %v1745
    %vm1748 = vc.u32 %v1746, %v1742
    %v1749 = vsel %vm1748, 1, 0
    %v1750 = vadd.s32 %v1746, %v1742
    %v1751 = vadd.s32 %v1747, %v1749
    %v1752 = vadd.s32 %v1751, %v1741
    %v1753 = vadd.s32 %v1752, %v1743
    %v1754 = vmul.u32 %v1709, %v1700
    %v1755 = vadd.s32 %v1731, %v1750
    %vm1756 = vc.u32 %v1731, %v1750
    %v1757 = vadd.s32 %v1753, 1
    %v1758 = vsel %vm1756, %v1757, %v1753
    %v1759 = vadd.s32 %v1754, %v1758
    %v1760 = vadd.s32 %v1759, 536870912
    %v1761 = vshrl.u32 %v1760, 30
    %v1762 = vshll.u32 %v1761, 30
    %v1763 = vsub.s32 %v1759, %v1762
    %vm1764 = vcmp.lt.s32.totalorder %v1763, 0
    %v1765 = vsub.s32 0, %v1763
    %v1766 = vsel %vm1764, %v1765, %v1763
    %v1767 = vclz %v1766
    %v1768 = vsub.s32 %v1767, 2
    %vm1769 = vcmp.gt.s32.totalorder 0, %v1768
    %v1770 = vsel %vm1769, 0, %v1768
    %v1771 = vsub.s32 32, %v1770
    %v1772 = vshll.u32 %v1763, %v1770
    %v1773 = vshrl.u32 %v1755, %v1771
    %v1774 = vor.u32 %v1772, %v1773
    %v1775 = vsub.s32 4294967266, %v1770
    %v1776 = vadd.s32 %v1775, 127
    %v1777 = vshll.u32 %v1776, 23
    %v1778 = vor.u32 4788187, %v1777
    %v1779 = vand.u32 2147483647, %v1778
    %v1781 = vcvt.s32.f32 %v1774
    %v1782 = vmul.f32 %v1781, %v1779
    %v1783 = vxor.u32 %v1782, 2147483648
    %v1784 = vsel %vm1663, %v1783, %v1782
    %v1785 = vsub.s32 4, %v1761
    %v1786 = vsel %vm1663, %v1785, %v1761
    %v1787 = vsel %vm1662, %v1193, %v1784
    %v1788 = vsel %vm1662, 0, %v1786
    %v1789 = vmul.f32 %v1787, %v1787
    %v1790 = vmul.f32 %v1789, -0.001358992
    %v1791 = vadd.f32 %v1790, 0.041655596
    %v1792 = vmul.f32 %v1789, %v1791
    %v1793 = vadd.f32 %v1792, -0.4999988
    %v1794 = vmul.f32 %v1789, %v1793
    %v1795 = vadd.f32 1.0, %v1794
    %v1796 = vmul.f32 %v1787, %v1787
    %v1797 = vmul.f32 %v1796, -0.00019511016
    %v1798 = vadd.f32 %v1797, 0.008332121
    %v1799 = vmul.f32 %v1796, %v1798
    %v1800 = vadd.f32 %v1799, -0.16666654
    %v1801 = vmul.f32 %v1796, %v1800
    %v1802 = vadd.f32 %v1801, 1.0
    %v1803 = vmul.f32 %v1802, %v1787
    %vm1804 = vweird.f32 %v1193
    %v1805 = vadd.s32 %v1788, 3
    %v1806 = vand.u32 %v1805, 3
    %vm1807 = vcmp.lt.s32.totalorder %v1806, 2
    %vm1808 = vcmp.eq.s32.totalorder %v1806, 0
    %v1809 = vxor.u32 %v1803, 2147483648
    %v1810 = vsel %vm1808, %v1795, %v1809
    %vm1811 = vcmp.eq.s32.totalorder %v1806, 2
    %v1812 = vxor.u32 %v1795, 2147483648
    %v1813 = vsel %vm1811, %v1812, %v1803
    %v1814 = vsel %vm1807, %v1810, %v1813
    %v1815 = vsel %vm1804, nan, %v1814
    %v1816 = vmul.f32 %v1024, %v1660
    %v1817 = vmul.f32 %v1025, %v1815
    %v1818 = vadd.f32 %v1351, %v1816
    %v1819 = vadd.f32 %v1505, %v1817
    %v1820 = vmul.f32 %v1196, %v1818
    %v1821 = vmul.f32 %v1197, %v1819
    %v1822 = vmul.f32 %v1820, 0.33333334
    %v1823 = vmul.f32 %v1821, 0.33333334
    %v1824 = vadd.f32 %v1018, %v1822
    %v1825 = vadd.f32 %v1019, %v1823
    %v1826 = vmul.f32 %v1824, %v84
    %v1827 = vmul.f32 %v1825, %v84
    %v1828 = vadd.f32 %v1826, %v87
    %v1829 = vadd.f32 %v1827, %v87
    %v1830 = vtanh.pop %v1828
    %v1831 = vtanh.pop %v1829
    %v1832 = vadd.f32 %v1830, 1.0
    %v1833 = vadd.f32 %v1831, 1.0
    %v1834 = vmul.f32 %v1832, 8.5
    %v1835 = vmul.f32 %v1833, 8.5
    %v1836 = vfloor.f32 %v1834
    %v1837 = vfloor.f32 %v1835
    %v1838 = vmin.f32 %v1836, 15.0
    %v1839 = vmin.f32 %v1837, 15.0
    %v1840 = vsub.f32 %v1834, %v1838
    %v1841 = vsub.f32 %v1835, %v1839
    %vm1842 = vcmp.eq.f32.partialorder %v1838, 1.0
    %vm1843 = vcmp.eq.f32.partialorder %v1839, 1.0
    %v1844 = vsel %vm1842, %v109, %v110
    %v1845 = vsel %vm1843, %v109, %v110
    %v1846 = vsel %vm1842, %v114, %v115
    %v1847 = vsel %vm1843, %v114, %v115
    %v1848 = vsel %vm1842, %v119, %v120
    %v1849 = vsel %vm1843, %v119, %v120
    %v1850 = vsel %vm1842, %v124, %v125
    %v1851 = vsel %vm1843, %v124, %v125
    %vm1852 = vcmp.eq.f32.partialorder %v1838, 2.0
    %vm1853 = vcmp.eq.f32.partialorder %v1839, 2.0
    %v1854 = vsel %vm1852, %v131, %v1844
    %v1855 = vsel %vm1853, %v131, %v1845
    %v1856 = vsel %vm1852, %v135, %v1846
    %v1857 = vsel %vm1853, %v135, %v1847
    %v1858 = vsel %vm1852, %v139, %v1848
    %v1859 = vsel %vm1853, %v139, %v1849
    %v1860 = vsel %vm1852, %v143, %v1850
    %v1861 = vsel %vm1853, %v143, %v1851
    %vm1862 = vcmp.eq.f32.partialorder %v1838, 3.0
    %vm1863 = vcmp.eq.f32.partialorder %v1839, 3.0
    %v1864 = vsel %vm1862, %v149, %v1854
    %v1865 = vsel %vm1863, %v149, %v1855
    %v1866 = vsel %vm1862, %v153, %v1856
    %v1867 = vsel %vm1863, %v153, %v1857
    %v1868 = vsel %vm1862, %v157, %v1858
    %v1869 = vsel %vm1863, %v157, %v1859
    %v1870 = vsel %vm1862, %v161, %v1860
    %v1871 = vsel %vm1863, %v161, %v1861
    %vm1872 = vcmp.eq.f32.partialorder %v1838, 4.0
    %vm1873 = vcmp.eq.f32.partialorder %v1839, 4.0
    %v1874 = vsel %vm1872, %v167, %v1864
    %v1875 = vsel %vm1873, %v167, %v1865
    %v1876 = vsel %vm1872, %v171, %v1866
    %v1877 = vsel %vm1873, %v171, %v1867
    %v1878 = vsel %vm1872, %v175, %v1868
    %v1879 = vsel %vm1873, %v175, %v1869
    %v1880 = vsel %vm1872, %v179, %v1870
    %v1881 = vsel %vm1873, %v179, %v1871
    %vm1882 = vcmp.eq.f32.partialorder %v1838, 5.0
    %vm1883 = vcmp.eq.f32.partialorder %v1839, 5.0
    %v1884 = vsel %vm1882, %v185, %v1874
    %v1885 = vsel %vm1883, %v185, %v1875
    %v1886 = vsel %vm1882, %v189, %v1876
    %v1887 = vsel %vm1883, %v189, %v1877
    %v1888 = vsel %vm1882, %v193, %v1878
    %v1889 = vsel %vm1883, %v193, %v1879
    %v1890 = vsel %vm1882, %v197, %v1880
    %v1891 = vsel %vm1883, %v197, %v1881
    %vm1892 = vcmp.eq.f32.partialorder %v1838, 6.0
    %vm1893 = vcmp.eq.f32.partialorder %v1839, 6.0
    %v1894 = vsel %vm1892, %v203, %v1884
    %v1895 = vsel %vm1893, %v203, %v1885
    %v1896 = vsel %vm1892, %v207, %v1886
    %v1897 = vsel %vm1893, %v207, %v1887
    %v1898 = vsel %vm1892, %v211, %v1888
    %v1899 = vsel %vm1893, %v211, %v1889
    %v1900 = vsel %vm1892, %v215, %v1890
    %v1901 = vsel %vm1893, %v215, %v1891
    %vm1902 = vcmp.eq.f32.partialorder %v1838, 7.0
    %vm1903 = vcmp.eq.f32.partialorder %v1839, 7.0
    %v1904 = vsel %vm1902, %v221, %v1894
    %v1905 = vsel %vm1903, %v221, %v1895
    %v1906 = vsel %vm1902, %v225, %v1896
    %v1907 = vsel %vm1903, %v225, %v1897
    %v1908 = vsel %vm1902, %v229, %v1898
    %v1909 = vsel %vm1903, %v229, %v1899
    %v1910 = vsel %vm1902, %v233, %v1900
    %v1911 = vsel %vm1903, %v233, %v1901
    %vm1912 = vcmp.eq.f32.partialorder %v1838, 8.0
    %vm1913 = vcmp.eq.f32.partialorder %v1839, 8.0
    %v1914 = vsel %vm1912, %v239, %v1904
    %v1915 = vsel %vm1913, %v239, %v1905
    %v1916 = vsel %vm1912, %v243, %v1906
    %v1917 = vsel %vm1913, %v243, %v1907
    %v1918 = vsel %vm1912, %v247, %v1908
    %v1919 = vsel %vm1913, %v247, %v1909
    %v1920 = vsel %vm1912, %v251, %v1910
    %v1921 = vsel %vm1913, %v251, %v1911
    %vm1922 = vcmp.eq.f32.partialorder %v1838, 9.0
    %vm1923 = vcmp.eq.f32.partialorder %v1839, 9.0
    %v1924 = vsel %vm1922, %v257, %v1914
    %v1925 = vsel %vm1923, %v257, %v1915
    %v1926 = vsel %vm1922, %v261, %v1916
    %v1927 = vsel %vm1923, %v261, %v1917
    %v1928 = vsel %vm1922, %v265, %v1918
    %v1929 = vsel %vm1923, %v265, %v1919
    %v1930 = vsel %vm1922, %v269, %v1920
    %v1931 = vsel %vm1923, %v269, %v1921
    %vm1932 = vcmp.eq.f32.partialorder %v1838, 10.0
    %vm1933 = vcmp.eq.f32.partialorder %v1839, 10.0
    %v1934 = vsel %vm1932, %v275, %v1924
    %v1935 = vsel %vm1933, %v275, %v1925
    %v1936 = vsel %vm1932, %v279, %v1926
    %v1937 = vsel %vm1933, %v279, %v1927
    %v1938 = vsel %vm1932, %v283, %v1928
    %v1939 = vsel %vm1933, %v283, %v1929
    %v1940 = vsel %vm1932, %v287, %v1930
    %v1941 = vsel %vm1933, %v287, %v1931
    %vm1942 = vcmp.eq.f32.partialorder %v1838, 11.0
    %vm1943 = vcmp.eq.f32.partialorder %v1839, 11.0
    %v1944 = vsel %vm1942, %v293, %v1934
    %v1945 = vsel %vm1943, %v293, %v1935
    %v1946 = vsel %vm1942, %v297, %v1936
    %v1947 = vsel %vm1943, %v297, %v1937
    %v1948 = vsel %vm1942, %v301, %v1938
    %v1949 = vsel %vm1943, %v301, %v1939
    %v1950 = vsel %vm1942, %v305, %v1940
    %v1951 = vsel %vm1943, %v305, %v1941
    %vm1952 = vcmp.eq.f32.partialorder %v1838, 12.0
    %vm1953 = vcmp.eq.f32.partialorder %v1839, 12.0
    %v1954 = vsel %vm1952, %v311, %v1944
    %v1955 = vsel %vm1953, %v311, %v1945
    %v1956 = vsel %vm1952, %v315, %v1946
    %v1957 = vsel %vm1953, %v315, %v1947
    %v1958 = vsel %vm1952, %v319, %v1948
    %v1959 = vsel %vm1953, %v319, %v1949
    %v1960 = vsel %vm1952, %v323, %v1950
    %v1961 = vsel %vm1953, %v323, %v1951
    %vm1962 = vcmp.eq.f32.partialorder %v1838, 13.0
    %vm1963 = vcmp.eq.f32.partialorder %v1839, 13.0
    %v1964 = vsel %vm1962, %v329, %v1954
    %v1965 = vsel %vm1963, %v329, %v1955
    %v1966 = vsel %vm1962, %v333, %v1956
    %v1967 = vsel %vm1963, %v333, %v1957
    %v1968 = vsel %vm1962, %v337, %v1958
    %v1969 = vsel %vm1963, %v337, %v1959
    %v1970 = vsel %vm1962, %v341, %v1960
    %v1971 = vsel %vm1963, %v341, %v1961
    %vm1972 = vcmp.eq.f32.partialorder %v1838, 14.0
    %vm1973 = vcmp.eq.f32.partialorder %v1839, 14.0
    %v1974 = vsel %vm1972, %v347, %v1964
    %v1975 = vsel %vm1973, %v347, %v1965
    %v1976 = vsel %vm1972, %v351, %v1966
    %v1977 = vsel %vm1973, %v351, %v1967
    %v1978 = vsel %vm1972, %v355, %v1968
    %v1979 = vsel %vm1973, %v355, %v1969
    %v1980 = vsel %vm1972, %v359, %v1970
    %v1981 = vsel %vm1973, %v359, %v1971
    %vm1982 = vcmp.eq.f32.partialorder %v1838, 15.0
    %vm1983 = vcmp.eq.f32.partialorder %v1839, 15.0
    %v1984 = vsel %vm1982, %v365, %v1974
    %v1985 = vsel %vm1983, %v365, %v1975
    %v1986 = vsel %vm1982, %v369, %v1976
    %v1987 = vsel %vm1983, %v369, %v1977
    %v1988 = vsel %vm1982, %v373, %v1978
    %v1989 = vsel %vm1983, %v373, %v1979
    %v1990 = vsel %vm1982, %v377, %v1980
    %v1991 = vsel %vm1983, %v377, %v1981
    %v1992 = vmul.f32 %v1840, %v1986
    %v1993 = vmul.f32 %v1841, %v1987
    %v1994 = vadd.f32 %v1984, %v1992
    %v1995 = vadd.f32 %v1985, %v1993
    %v1996 = vmul.f32 %v1840, %v1990
    %v1997 = vmul.f32 %v1841, %v1991
    %v1998 = vadd.f32 %v1988, %v1996
    %v1999 = vadd.f32 %v1989, %v1997
    %vm2000 = vcmp.lt.f32.partialorder %v1836, 17.0
    %vm2001 = vcmp.lt.f32.partialorder %v1837, 17.0
    %v2002 = vsel %vm2000, %v1994, 0.0
    %v2003 = vsel %vm2001, %v1995, 0.0
    %v2004 = vand.u32 2147483647, %v1998
    %vm2005 = vcmp.le.f32.partialorder %v2004, 0.7853982
    %vm2006 = vcmp.lt.s32.totalorder %v1998, 0
    %v2007 = vand.u32 %v1998, 2139095040
    %v2008 = vshrl.u32 %v2007, 23
    %v2009 = vsub.s32 %v2008, 127
    %v2010 = vand.u32 2147483647, %v1998
    %v2011 = vand.u32 %v2010, 8388607
    %v2012 = vor.u32 %v2011, 8388608
    %v2013 = vsub.s32 0, %v2012
    %v2014 = vadd.s32 %v2009, 1
    %vm2015 = vcmp.gt.s32.totalorder %v2014, 0
    %v2016 = vsel %vm2015, %v2014, 0
    %v2017 = vshrl.u32 %v2016, 5
    %v2018 = vand.u32 %v2016, 31
    %v2019 = vsub.s32 32, %v2018
    %v2020 = vshrl.u32 683565275, %v2019
    %v2021 = vshll.u32 683565275, %v2018
    %v2022 = vshrl.u32 2475754826, %v2019
    %v2023 = vor.u32 %v2021, %v2022
    %v2024 = vshll.u32 2475754826, %v2018
    %v2025 = vshrl.u32 2131351028, %v2019
    %v2026 = vor.u32 %v2024, %v2025
    %v2027 = vshll.u32 2131351028, %v2018
    %v2028 = vshrl.u32 2102212464, %v2019
    %v2029 = vor.u32 %v2027, %v2028
    %v2030 = vshll.u32 2102212464, %v2018
    %v2031 = vshrl.u32 920167782, %v2019
    %v2032 = vor.u32 %v2030, %v2031
    %v2033 = vshll.u32 920167782, %v2018
    %v2034 = vshrl.u32 1326507024, %v2019
    %v2035 = vor.u32 %v2033, %v2034
    %vm2036 = vcmp.lt.s32.totalorder %v2017, 1
    %vm2037 = vcmp.lt.s32.totalorder %v2017, 2
    %vm2038 = vcmp.lt.s32.totalorder %v2017, 3
    %vm2039 = vcmp.lt.s32.totalorder %v2017, 4
    %v2040 = vsel %vm2036, %v2020, %v2023
    %v2041 = vsel %vm2039, %v2029, 2102212464
    %v2042 = vsel %vm2038, %v2026, %v2041
    %v2043 = vsel %vm2037, %v2040, %v2042
    %v2044 = vsel %vm2036, %v2023, %v2026
    %v2045 = vsel %vm2039, %v2032, 920167782
    %v2046 = vsel %vm2038, %v2029, %v2045
    %v2047 = vsel %vm2037, %v2044, %v2046
    %v2048 = vsel %vm2036, %v2026, %v2029
    %v2049 = vsel %vm2039, %v2035, 1326507024
    %v2050 = vsel %vm2038, %v2032, %v2049
    %v2051 = vsel %vm2037, %v2048, %v2050
    %v2052 = vshll.u32 %v2012, 8
    %v2053 = vand.u32 %v2052, 65535
    %v2054 = vshrl.u32 %v2052, 16
    %v2055 = vand.u32 %v2051, 65535
    %v2056 = vshrl.u32 %v2051, 16
    %v2057 = vmul.u32 %v2053, %v2055
    %v2058 = vmul.u32 %v2053, %v2056
    %v2059 = vmul.u32 %v2054, %v2055
    %v2060 = vmul.u32 %v2054, %v2056
    %v2061 = vshll.u32 %v2058, 16
    %v2062 = vshrl.u32 %v2058, 16
    %v2063 = vshll.u32 %v2059, 16
    %v2064 = vshrl.u32 %v2059, 16
    %vm2065 = vc.u32 %v2057, %v2061
    %v2066 = vsel %vm2065, 1, 0
    %v2067 = vadd.s32 %v2057, %v2061
    %v2068 = vadd.s32 %v2060, %v2066
    %vm2069 = vc.u32 %v2067, %v2063
    %v2070 = vsel %vm2069, 1, 0
    %v2071 = vadd.s32 %v2067, %v2063
    %v2072 = vadd.s32 %v2068, %v2070
    %v2073 = vadd.s32 %v2072, %v2062
    %v2074 = vadd.s32 %v2073, %v2064
    %v2075 = vand.u32 %v2052, 65535
    %v2076 = vshrl.u32 %v2052, 16
    %v2077 = vand.u32 %v2047, 65535
    %v2078 = vshrl.u32 %v2047, 16
    %v2079 = vmul.u32 %v2075, %v2077
    %v2080 = vmul.u32 %v2075, %v2078
    %v2081 = vmul.u32 %v2076, %v2077
    %v2082 = vmul.u32 %v2076, %v2078
    %v2083 = vshll.u32 %v2080, 16
    %v2084 = vshrl.u32 %v2080, 16
    %v2085 = vshll.u32 %v2081, 16
    %v2086 = vshrl.u32 %v2081, 16
    %vm2087 = vc.u32 %v2079, %v2083
    %v2088 = vsel %vm2087, 1, 0
    %v2089 = vadd.s32 %v2079, %v2083
    %v2090 = vadd.s32 %v2082, %v2088
    %vm2091 = vc.u32 %v2089, %v2085
    %v2092 = vsel %vm2091, 1, 0
    %v2093 = vadd.s32 %v2089, %v2085
    %v2094 = vadd.s32 %v2090, %v2092
    %v2095 = vadd.s32 %v2094, %v2084
    %v2096 = vadd.s32 %v2095, %v2086
    %v2097 = vmul.u32 %v2052, %v2043
    %v2098 = vadd.s32 %v2074, %v2093
    %vm2099 = vc.u32 %v2074, %v2093
    %v2100 = vadd.s32 %v2096, 1
    %v2101 = vsel %vm2099, %v2100, %v2096
    %v2102 = vadd.s32 %v2097, %v2101
    %v2103 = vadd.s32 %v2102, 536870912
    %v2104 = vshrl.u32 %v2103, 30
    %v2105 = vshll.u32 %v2104, 30
    %v2106 = vsub.s32 %v2102, %v2105
    %vm2107 = vcmp.lt.s32.totalorder %v2106, 0
    %v2108 = vsub.s32 0, %v2106
    %v2109 = vsel %vm2107, %v2108, %v2106
    %v2110 = vclz %v2109
    %v2111 = vsub.s32 %v2110, 2
    %vm2112 = vcmp.gt.s32.totalorder 0, %v2111
    %v2113 = vsel %vm2112, 0, %v2111
    %v2114 = vsub.s32 32, %v2113
    %v2115 = vshll.u32 %v2106, %v2113
    %v2116 = vshrl.u32 %v2098, %v2114
    %v2117 = vor.u32 %v2115, %v2116
    %v2118 = vsub.s32 4294967266, %v2113
    %v2119 = vadd.s32 %v2118, 127
    %v2120 = vshll.u32 %v2119, 23
    %v2121 = vor.u32 4788187, %v2120
    %v2122 = vand.u32 2147483647, %v2121
    %v2124 = vcvt.s32.f32 %v2117
    %v2125 = vmul.f32 %v2124, %v2122
    %v2126 = vxor.u32 %v2125, 2147483648
    %v2127 = vsel %vm2006, %v2126, %v2125
    %v2128 = vsub.s32 4, %v2104
    %v2129 = vsel %vm2006, %v2128, %v2104
    %v2130 = vsel %vm2005, %v1998, %v2127
    %v2131 = vsel %vm2005, 0, %v2129
    %v2132 = vmul.f32 %v2130, %v2130
    %v2133 = vmul.f32 %v2132, -0.001358992
    %v2134 = vadd.f32 %v2133, 0.041655596
    %v2135 = vmul.f32 %v2132, %v2134
    %v2136 = vadd.f32 %v2135, -0.4999988
    %v2137 = vmul.f32 %v2132, %v2136
    %v2138 = vadd.f32 1.0, %v2137
    %v2139 = vmul.f32 %v2130, %v2130
    %v2140 = vmul.f32 %v2139, -0.00019511016
    %v2141 = vadd.f32 %v2140, 0.008332121
    %v2142 = vmul.f32 %v2139, %v2141
    %v2143 = vadd.f32 %v2142, -0.16666654
    %v2144 = vmul.f32 %v2139, %v2143
    %v2145 = vadd.f32 %v2144, 1.0
    %v2146 = vmul.f32 %v2145, %v2130
    %vm2147 = vweird.f32 %v1998
    %v2148 = vand.u32 %v2131, 3
    %vm2149 = vcmp.lt.s32.totalorder %v2148, 2
    %vm2150 = vcmp.eq.s32.totalorder %v2148, 0
    %v2151 = vxor.u32 %v2146, 2147483648
    %v2152 = vsel %vm2150, %v2138, %v2151
    %vm2153 = vcmp.eq.s32.totalorder %v2148, 2
    %v2154 = vxor.u32 %v2138, 2147483648
    %v2155 = vsel %vm2153, %v2154, %v2146
    %v2156 = vsel %vm2149, %v2152, %v2155
    %v2157 = vsel %vm2147, nan, %v2156
    %v2158 = vand.u32 2147483647, %v1999
    %vm2159 = vcmp.le.f32.partialorder %v2158, 0.7853982
    %vm2160 = vcmp.lt.s32.totalorder %v1999, 0
    %v2161 = vand.u32 %v1999, 2139095040
    %v2162 = vshrl.u32 %v2161, 23
    %v2163 = vsub.s32 %v2162, 127
    %v2164 = vand.u32 2147483647, %v1999
    %v2165 = vand.u32 %v2164, 8388607
    %v2166 = vor.u32 %v2165, 8388608
    %v2167 = vsub.s32 0, %v2166
    %v2168 = vadd.s32 %v2163, 1
    %vm2169 = vcmp.gt.s32.totalorder %v2168, 0
    %v2170 = vsel %vm2169, %v2168, 0
    %v2171 = vshrl.u32 %v2170, 5
    %v2172 = vand.u32 %v2170, 31
    %v2173 = vsub.s32 32, %v2172
    %v2174 = vshrl.u32 683565275, %v2173
    %v2175 = vshll.u32 683565275, %v2172
    %v2176 = vshrl.u32 2475754826, %v2173
    %v2177 = vor.u32 %v2175, %v2176
    %v2178 = vshll.u32 2475754826, %v2172
    %v2179 = vshrl.u32 2131351028, %v2173
    %v2180 = vor.u32 %v2178, %v2179
    %v2181 = vshll.u32 2131351028, %v2172
    %v2182 = vshrl.u32 2102212464, %v2173
    %v2183 = vor.u32 %v2181, %v2182
    %v2184 = vshll.u32 2102212464, %v2172
    %v2185 = vshrl.u32 920167782, %v2173
    %v2186 = vor.u32 %v2184, %v2185
    %v2187 = vshll.u32 920167782, %v2172
    %v2188 = vshrl.u32 1326507024, %v2173
    %v2189 = vor.u32 %v2187, %v2188
    %vm2190 = vcmp.lt.s32.totalorder %v2171, 1
    %vm2191 = vcmp.lt.s32.totalorder %v2171, 2
    %vm2192 = vcmp.lt.s32.totalorder %v2171, 3
    %vm2193 = vcmp.lt.s32.totalorder %v2171, 4
    %v2194 = vsel %vm2190, %v2174, %v2177
    %v2195 = vsel %vm2193, %v2183, 2102212464
    %v2196 = vsel %vm2192, %v2180, %v2195
    %v2197 = vsel %vm2191, %v2194, %v2196
    %v2198 = vsel %vm2190, %v2177, %v2180
    %v2199 = vsel %vm2193, %v2186, 920167782
    %v2200 = vsel %vm2192, %v2183, %v2199
    %v2201 = vsel %vm2191, %v2198, %v2200
    %v2202 = vsel %vm2190, %v2180, %v2183
    %v2203 = vsel %vm2193, %v2189, 1326507024
    %v2204 = vsel %vm2192, %v2186, %v2203
    %v2205 = vsel %vm2191, %v2202, %v2204
    %v2206 = vshll.u32 %v2166, 8
    %v2207 = vand.u32 %v2206, 65535
    %v2208 = vshrl.u32 %v2206, 16
    %v2209 = vand.u32 %v2205, 65535
    %v2210 = vshrl.u32 %v2205, 16
    %v2211 = vmul.u32 %v2207, %v2209
    %v2212 = vmul.u32 %v2207, %v2210
    %v2213 = vmul.u32 %v2208, %v2209
    %v2214 = vmul.u32 %v2208, %v2210
    %v2215 = vshll.u32 %v2212, 16
    %v2216 = vshrl.u32 %v2212, 16
    %v2217 = vshll.u32 %v2213, 16
    %v2218 = vshrl.u32 %v2213, 16
    %vm2219 = vc.u32 %v2211, %v2215
    %v2220 = vsel %vm2219, 1, 0
    %v2221 = vadd.s32 %v2211, %v2215
    %v2222 = vadd.s32 %v2214, %v2220
    %vm2223 = vc.u32 %v2221, %v2217
    %v2224 = vsel %vm2223, 1, 0
    %v2225 = vadd.s32 %v2221, %v2217
    %v2226 = vadd.s32 %v2222, %v2224
    %v2227 = vadd.s32 %v2226, %v2216
    %v2228 = vadd.s32 %v2227, %v2218
    %v2229 = vand.u32 %v2206, 65535
    %v2230 = vshrl.u32 %v2206, 16
    %v2231 = vand.u32 %v2201, 65535
    %v2232 = vshrl.u32 %v2201, 16
    %v2233 = vmul.u32 %v2229, %v2231
    %v2234 = vmul.u32 %v2229, %v2232
    %v2235 = vmul.u32 %v2230, %v2231
    %v2236 = vmul.u32 %v2230, %v2232
    %v2237 = vshll.u32 %v2234, 16
    %v2238 = vshrl.u32 %v2234, 16
    %v2239 = vshll.u32 %v2235, 16
    %v2240 = vshrl.u32 %v2235, 16
    %vm2241 = vc.u32 %v2233, %v2237
    %v2242 = vsel %vm2241, 1, 0
    %v2243 = vadd.s32 %v2233, %v2237
    %v2244 = vadd.s32 %v2236, %v2242
    %vm2245 = vc.u32 %v2243, %v2239
    %v2246 = vsel %vm2245, 1, 0
    %v2247 = vadd.s32 %v2243, %v2239
    %v2248 = vadd.s32 %v2244, %v2246
    %v2249 = vadd.s32 %v2248, %v2238
    %v2250 = vadd.s32 %v2249, %v2240
    %v2251 = vmul.u32 %v2206, %v2197
    %v2252 = vadd.s32 %v2228, %v2247
    %vm2253 = vc.u32 %v2228, %v2247
    %v2254 = vadd.s32 %v2250, 1
    %v2255 = vsel %vm2253, %v2254, %v2250
    %v2256 = vadd.s32 %v2251, %v2255
    %v2257 = vadd.s32 %v2256, 536870912
    %v2258 = vshrl.u32 %v2257, 30
    %v2259 = vshll.u32 %v2258, 30
    %v2260 = vsub.s32 %v2256, %v2259
    %vm2261 = vcmp.lt.s32.totalorder %v2260, 0
    %v2262 = vsub.s32 0, %v2260
    %v2263 = vsel %vm2261, %v2262, %v2260
    %v2264 = vclz %v2263
    %v2265 = vsub.s32 %v2264, 2
    %vm2266 = vcmp.gt.s32.totalorder 0, %v2265
    %v2267 = vsel %vm2266, 0, %v2265
    %v2268 = vsub.s32 32, %v2267
    %v2269 = vshll.u32 %v2260, %v2267
    %v2270 = vshrl.u32 %v2252, %v2268
    %v2271 = vor.u32 %v2269, %v2270
    %v2272 = vsub.s32 4294967266, %v2267
    %v2273 = vadd.s32 %v2272, 127
    %v2274 = vshll.u32 %v2273, 23
    %v2275 = vor.u32 4788187, %v2274
    %v2276 = vand.u32 2147483647, %v2275
    %v2278 = vcvt.s32.f32 %v2271
    %v2279 = vmul.f32 %v2278, %v2276
    %v2280 = vxor.u32 %v2279, 2147483648
    %v2281 = vsel %vm2160, %v2280, %v2279
    %v2282 = vsub.s32 4, %v2258
    %v2283 = vsel %vm2160, %v2282, %v2258
    %v2284 = vsel %vm2159, %v1999, %v2281
    %v2285 = vsel %vm2159, 0, %v2283
    %v2286 = vmul.f32 %v2284, %v2284
    %v2287 = vmul.f32 %v2286, -0.001358992
    %v2288 = vadd.f32 %v2287, 0.041655596
    %v2289 = vmul.f32 %v2286, %v2288
    %v2290 = vadd.f32 %v2289, -0.4999988
    %v2291 = vmul.f32 %v2286, %v2290
    %v2292 = vadd.f32 1.0, %v2291
    %v2293 = vmul.f32 %v2284, %v2284
    %v2294 = vmul.f32 %v2293, -0.00019511016
    %v2295 = vadd.f32 %v2294, 0.008332121
    %v2296 = vmul.f32 %v2293, %v2295
    %v2297 = vadd.f32 %v2296, -0.16666654
    %v2298 = vmul.f32 %v2293, %v2297
    %v2299 = vadd.f32 %v2298, 1.0
    %v2300 = vmul.f32 %v2299, %v2284
    %vm2301 = vweird.f32 %v1999
    %v2302 = vand.u32 %v2285, 3
    %vm2303 = vcmp.lt.s32.totalorder %v2302, 2
    %vm2304 = vcmp.eq.s32.totalorder %v2302, 0
    %v2305 = vxor.u32 %v2300, 2147483648
    %v2306 = vsel %vm2304, %v2292, %v2305
    %vm2307 = vcmp.eq.s32.totalorder %v2302, 2
    %v2308 = vxor.u32 %v2292, 2147483648
    %v2309 = vsel %vm2307, %v2308, %v2300
    %v2310 = vsel %vm2303, %v2306, %v2309
    %v2311 = vsel %vm2301, nan, %v2310
    %v2312 = vand.u32 2147483647, %v1998
    %vm2313 = vcmp.le.f32.partialorder %v2312, 0.7853982
    %vm2314 = vcmp.lt.s32.totalorder %v1998, 0
    %v2315 = vand.u32 %v1998, 2139095040
    %v2316 = vshrl.u32 %v2315, 23
    %v2317 = vsub.s32 %v2316, 127
    %v2318 = vand.u32 2147483647, %v1998
    %v2319 = vand.u32 %v2318, 8388607
    %v2320 = vor.u32 %v2319, 8388608
    %v2321 = vsub.s32 0, %v2320
    %v2322 = vadd.s32 %v2317, 1
    %vm2323 = vcmp.gt.s32.totalorder %v2322, 0
    %v2324 = vsel %vm2323, %v2322, 0
    %v2325 = vshrl.u32 %v2324, 5
    %v2326 = vand.u32 %v2324, 31
    %v2327 = vsub.s32 32, %v2326
    %v2328 = vshrl.u32 683565275, %v2327
    %v2329 = vshll.u32 683565275, %v2326
    %v2330 = vshrl.u32 2475754826, %v2327
    %v2331 = vor.u32 %v2329, %v2330
    %v2332 = vshll.u32 2475754826, %v2326
    %v2333 = vshrl.u32 2131351028, %v2327
    %v2334 = vor.u32 %v2332, %v2333
    %v2335 = vshll.u32 2131351028, %v2326
    %v2336 = vshrl.u32 2102212464, %v2327
    %v2337 = vor.u32 %v2335, %v2336
    %v2338 = vshll.u32 2102212464, %v2326
    %v2339 = vshrl.u32 920167782, %v2327
    %v2340 = vor.u32 %v2338, %v2339
    %v2341 = vshll.u32 920167782, %v2326
    %v2342 = vshrl.u32 1326507024, %v2327
    %v2343 = vor.u32 %v2341, %v2342
    %vm2344 = vcmp.lt.s32.totalorder %v2325, 1
    %vm2345 = vcmp.lt.s32.totalorder %v2325, 2
    %vm2346 = vcmp.lt.s32.totalorder %v2325, 3
    %vm2347 = vcmp.lt.s32.totalorder %v2325, 4
    %v2348 = vsel %vm2344, %v2328, %v2331
    %v2349 = vsel %vm2347, %v2337, 2102212464
    %v2350 = vsel %vm2346, %v2334, %v2349
    %v2351 = vsel %vm2345, %v2348, %v2350
    %v2352 = vsel %vm2344, %v2331, %v2334
    %v2353 = vsel %vm2347, %v2340, 920167782
    %v2354 = vsel %vm2346, %v2337, %v2353
    %v2355 = vsel %vm2345, %v2352, %v2354
    %v2356 = vsel %vm2344, %v2334, %v2337
    %v2357 = vsel %vm2347, %v2343, 1326507024
    %v2358 = vsel %vm2346, %v2340, %v2357
    %v2359 = vsel %vm2345, %v2356, %v2358
    %v2360 = vshll.u32 %v2320, 8
    %v2361 = vand.u32 %v2360, 65535
    %v2362 = vshrl.u32 %v2360, 16
    %v2363 = vand.u32 %v2359, 65535
    %v2364 = vshrl.u32 %v2359, 16
    %v2365 = vmul.u32 %v2361, %v2363
    %v2366 = vmul.u32 %v2361, %v2364
    %v2367 = vmul.u32 %v2362, %v2363
    %v2368 = vmul.u32 %v2362, %v2364
    %v2369 = vshll.u32 %v2366, 16
    %v2370 = vshrl.u32 %v2366, 16
    %v2371 = vshll.u32 %v2367, 16
    %v2372 = vshrl.u32 %v2367, 16
    %vm2373 = vc.u32 %v2365, %v2369
    %v2374 = vsel %vm2373, 1, 0
    %v2375 = vadd.s32 %v2365, %v2369
    %v2376 = vadd.s32 %v2368, %v2374
    %vm2377 = vc.u32 %v2375, %v2371
    %v2378 = vsel %vm2377, 1, 0
    %v2379 = vadd.s32 %v2375, %v2371
    %v2380 = vadd.s32 %v2376, %v2378
    %v2381 = vadd.s32 %v2380, %v2370
    %v2382 = vadd.s32 %v2381, %v2372
    %v2383 = vand.u32 %v2360, 65535
    %v2384 = vshrl.u32 %v2360, 16
    %v2385 = vand.u32 %v2355, 65535
    %v2386 = vshrl.u32 %v2355, 16
    %v2387 = vmul.u32 %v2383, %v2385
    %v2388 = vmul.u32 %v2383, %v2386
    %v2389 = vmul.u32 %v2384, %v2385
    %v2390 = vmul.u32 %v2384, %v2386
    %v2391 = vshll.u32 %v2388, 16
    %v2392 = vshrl.u32 %v2388, 16
    %v2393 = vshll.u32 %v2389, 16
    %v2394 = vshrl.u32 %v2389, 16
    %vm2395 = vc.u32 %v2387, %v2391
    %v2396 = vsel %vm2395, 1, 0
    %v2397 = vadd.s32 %v2387, %v2391
    %v2398 = vadd.s32 %v2390, %v2396
    %vm2399 = vc.u32 %v2397, %v2393
    %v2400 = vsel %vm2399, 1, 0
    %v2401 = vadd.s32 %v2397, %v2393
    %v2402 = vadd.s32 %v2398, %v2400
    %v2403 = vadd.s32 %v2402, %v2392
    %v2404 = vadd.s32 %v2403, %v2394
    %v2405 = vmul.u32 %v2360, %v2351
    %v2406 = vadd.s32 %v2382, %v2401
    %vm2407 = vc.u32 %v2382, %v2401
    %v2408 = vadd.s32 %v2404, 1
    %v2409 = vsel %vm2407, %v2408, %v2404
    %v2410 = vadd.s32 %v2405, %v2409
    %v2411 = vadd.s32 %v2410, 536870912
    %v2412 = vshrl.u32 %v2411, 30
    %v2413 = vshll.u32 %v2412, 30
    %v2414 = vsub.s32 %v2410, %v2413
    %vm2415 = vcmp.lt.s32.totalorder %v2414, 0
    %v2416 = vsub.s32 0, %v2414
    %v2417 = vsel %vm2415, %v2416, %v2414
    %v2418 = vclz %v2417
    %v2419 = vsub.s32 %v2418, 2
    %vm2420 = vcmp.gt.s32.totalorder 0, %v2419
    %v2421 = vsel %vm2420, 0, %v2419
    %v2422 = vsub.s32 32, %v2421
    %v2423 = vshll.u32 %v2414, %v2421
    %v2424 = vshrl.u32 %v2406, %v2422
    %v2425 = vor.u32 %v2423, %v2424
    %v2426 = vsub.s32 4294967266, %v2421
    %v2427 = vadd.s32 %v2426, 127
    %v2428 = vshll.u32 %v2427, 23
    %v2429 = vor.u32 4788187, %v2428
    %v2430 = vand.u32 2147483647, %v2429
    %v2432 = vcvt.s32.f32 %v2425
    %v2433 = vmul.f32 %v2432, %v2430
    %v2434 = vxor.u32 %v2433, 2147483648
    %v2435 = vsel %vm2314, %v2434, %v2433
    %v2436 = vsub.s32 4, %v2412
    %v2437 = vsel %vm2314, %v2436, %v2412
    %v2438 = vsel %vm2313, %v1998, %v2435
    %v2439 = vsel %vm2313, 0, %v2437
    %v2440 = vmul.f32 %v2438, %v2438
    %v2441 = vmul.f32 %v2440, -0.001358992
    %v2442 = vadd.f32 %v2441, 0.041655596
    %v2443 = vmul.f32 %v2440, %v2442
    %v2444 = vadd.f32 %v2443, -0.4999988
    %v2445 = vmul.f32 %v2440, %v2444
    %v2446 = vadd.f32 1.0, %v2445
    %v2447 = vmul.f32 %v2438, %v2438
    %v2448 = vmul.f32 %v2447, -0.00019511016
    %v2449 = vadd.f32 %v2448, 0.008332121
    %v2450 = vmul.f32 %v2447, %v2449
    %v2451 = vadd.f32 %v2450, -0.16666654
    %v2452 = vmul.f32 %v2447, %v2451
    %v2453 = vadd.f32 %v2452, 1.0
    %v2454 = vmul.f32 %v2453, %v2438
    %vm2455 = vweird.f32 %v1998
    %v2456 = vadd.s32 %v2439, 3
    %v2457 = vand.u32 %v2456, 3
    %vm2458 = vcmp.lt.s32.totalorder %v2457, 2
    %vm2459 = vcmp.eq.s32.totalorder %v2457, 0
    %v2460 = vxor.u32 %v2454, 2147483648
    %v2461 = vsel %vm2459, %v2446, %v2460
    %vm2462 = vcmp.eq.s32.totalorder %v2457, 2
    %v2463 = vxor.u32 %v2446, 2147483648
    %v2464 = vsel %vm2462, %v2463, %v2454
    %v2465 = vsel %vm2458, %v2461, %v2464
    %v2466 = vsel %vm2455, nan, %v2465
    %v2467 = vand.u32 2147483647, %v1999
    %vm2468 = vcmp.le.f32.partialorder %v2467, 0.7853982
    %vm2469 = vcmp.lt.s32.totalorder %v1999, 0
    %v2470 = vand.u32 %v1999, 2139095040
    %v2471 = vshrl.u32 %v2470, 23
    %v2472 = vsub.s32 %v2471, 127
    %v2473 = vand.u32 2147483647, %v1999
    %v2474 = vand.u32 %v2473, 8388607
    %v2475 = vor.u32 %v2474, 8388608
    %v2476 = vsub.s32 0, %v2475
    %v2477 = vadd.s32 %v2472, 1
    %vm2478 = vcmp.gt.s32.totalorder %v2477, 0
    %v2479 = vsel %vm2478, %v2477, 0
    %v2480 = vshrl.u32 %v2479, 5
    %v2481 = vand.u32 %v2479, 31
    %v2482 = vsub.s32 32, %v2481
    %v2483 = vshrl.u32 683565275, %v2482
    %v2484 = vshll.u32 683565275, %v2481
    %v2485 = vshrl.u32 2475754826, %v2482
    %v2486 = vor.u32 %v2484, %v2485
    %v2487 = vshll.u32 2475754826, %v2481
    %v2488 = vshrl.u32 2131351028, %v2482
    %v2489 = vor.u32 %v2487, %v2488
    %v2490 = vshll.u32 2131351028, %v2481
    %v2491 = vshrl.u32 2102212464, %v2482
    %v2492 = vor.u32 %v2490, %v2491
    %v2493 = vshll.u32 2102212464, %v2481
    %v2494 = vshrl.u32 920167782, %v2482
    %v2495 = vor.u32 %v2493, %v2494
    %v2496 = vshll.u32 920167782, %v2481
    %v2497 = vshrl.u32 1326507024, %v2482
    %v2498 = vor.u32 %v2496, %v2497
    %vm2499 = vcmp.lt.s32.totalorder %v2480, 1
    %vm2500 = vcmp.lt.s32.totalorder %v2480, 2
    %vm2501 = vcmp.lt.s32.totalorder %v2480, 3
    %vm2502 = vcmp.lt.s32.totalorder %v2480, 4
    %v2503 = vsel %vm2499, %v2483, %v2486
    %v2504 = vsel %vm2502, %v2492, 2102212464
    %v2505 = vsel %vm2501, %v2489, %v2504
    %v2506 = vsel %vm2500, %v2503, %v2505
    %v2507 = vsel %vm2499, %v2486, %v2489
    %v2508 = vsel %vm2502, %v2495, 920167782
    %v2509 = vsel %vm2501, %v2492, %v2508
    %v2510 = vsel %vm2500, %v2507, %v2509
    %v2511 = vsel %vm2499, %v2489, %v2492
    %v2512 = vsel %vm2502, %v2498, 1326507024
    %v2513 = vsel %vm2501, %v2495, %v2512
    %v2514 = vsel %vm2500, %v2511, %v2513
    %v2515 = vshll.u32 %v2475, 8
    %v2516 = vand.u32 %v2515, 65535
    %v2517 = vshrl.u32 %v2515, 16
    %v2518 = vand.u32 %v2514, 65535
    %v2519 = vshrl.u32 %v2514, 16
    %v2520 = vmul.u32 %v2516, %v2518
    %v2521 = vmul.u32 %v2516, %v2519
    %v2522 = vmul.u32 %v2517, %v2518
    %v2523 = vmul.u32 %v2517, %v2519
    %v2524 = vshll.u32 %v2521, 16
    %v2525 = vshrl.u32 %v2521, 16
    %v2526 = vshll.u32 %v2522, 16
    %v2527 = vshrl.u32 %v2522, 16
    %vm2528 = vc.u32 %v2520, %v2524
    %v2529 = vsel %vm2528, 1, 0
    %v2530 = vadd.s32 %v2520, %v2524
    %v2531 = vadd.s32 %v2523, %v2529
    %vm2532 = vc.u32 %v2530, %v2526
    %v2533 = vsel %vm2532, 1, 0
    %v2534 = vadd.s32 %v2530, %v2526
    %v2535 = vadd.s32 %v2531, %v2533
    %v2536 = vadd.s32 %v2535, %v2525
    %v2537 = vadd.s32 %v2536, %v2527
    %v2538 = vand.u32 %v2515, 65535
    %v2539 = vshrl.u32 %v2515, 16
    %v2540 = vand.u32 %v2510, 65535
    %v2541 = vshrl.u32 %v2510, 16
    %v2542 = vmul.u32 %v2538, %v2540
    %v2543 = vmul.u32 %v2538, %v2541
    %v2544 = vmul.u32 %v2539, %v2540
    %v2545 = vmul.u32 %v2539, %v2541
    %v2546 = vshll.u32 %v2543, 16
    %v2547 = vshrl.u32 %v2543, 16
    %v2548 = vshll.u32 %v2544, 16
    %v2549 = vshrl.u32 %v2544, 16
    %vm2550 = vc.u32 %v2542, %v2546
    %v2551 = vsel %vm2550, 1, 0
    %v2552 = vadd.s32 %v2542, %v2546
    %v2553 = vadd.s32 %v2545, %v2551
    %vm2554 = vc.u32 %v2552, %v2548
    %v2555 = vsel %vm2554, 1, 0
    %v2556 = vadd.s32 %v2552, %v2548
    %v2557 = vadd.s32 %v2553, %v2555
    %v2558 = vadd.s32 %v2557, %v2547
    %v2559 = vadd.s32 %v2558, %v2549
    %v2560 = vmul.u32 %v2515, %v2506
    %v2561 = vadd.s32 %v2537, %v2556
    %vm2562 = vc.u32 %v2537, %v2556
    %v2563 = vadd.s32 %v2559, 1
    %v2564 = vsel %vm2562, %v2563, %v2559
    %v2565 = vadd.s32 %v2560, %v2564
    %v2566 = vadd.s32 %v2565, 536870912
    %v2567 = vshrl.u32 %v2566, 30
    %v2568 = vshll.u32 %v2567, 30
    %v2569 = vsub.s32 %v2565, %v2568
    %vm2570 = vcmp.lt.s32.totalorder %v2569, 0
    %v2571 = vsub.s32 0, %v2569
    %v2572 = vsel %vm2570, %v2571, %v2569
    %v2573 = vclz %v2572
    %v2574 = vsub.s32 %v2573, 2
    %vm2575 = vcmp.gt.s32.totalorder 0, %v2574
    %v2576 = vsel %vm2575, 0, %v2574
    %v2577 = vsub.s32 32, %v2576
    %v2578 = vshll.u32 %v2569, %v2576
    %v2579 = vshrl.u32 %v2561, %v2577
    %v2580 = vor.u32 %v2578, %v2579
    %v2581 = vsub.s32 4294967266, %v2576
    %v2582 = vadd.s32 %v2581, 127
    %v2583 = vshll.u32 %v2582, 23
    %v2584 = vor.u32 4788187, %v2583
    %v2585 = vand.u32 2147483647, %v2584
    %v2587 = vcvt.s32.f32 %v2580
    %v2588 = vmul.f32 %v2587, %v2585
    %v2589 = vxor.u32 %v2588, 2147483648
    %v2590 = vsel %vm2469, %v2589, %v2588
    %v2591 = vsub.s32 4, %v2567
    %v2592 = vsel %vm2469, %v2591, %v2567
    %v2593 = vsel %vm2468, %v1999, %v2590
    %v2594 = vsel %vm2468, 0, %v2592
    %v2595 = vmul.f32 %v2593, %v2593
    %v2596 = vmul.f32 %v2595, -0.001358992
    %v2597 = vadd.f32 %v2596, 0.041655596
    %v2598 = vmul.f32 %v2595, %v2597
    %v2599 = vadd.f32 %v2598, -0.4999988
    %v2600 = vmul.f32 %v2595, %v2599
    %v2601 = vadd.f32 1.0, %v2600
    %v2602 = vmul.f32 %v2593, %v2593
    %v2603 = vmul.f32 %v2602, -0.00019511016
    %v2604 = vadd.f32 %v2603, 0.008332121
    %v2605 = vmul.f32 %v2602, %v2604
    %v2606 = vadd.f32 %v2605, -0.16666654
    %v2607 = vmul.f32 %v2602, %v2606
    %v2608 = vadd.f32 %v2607, 1.0
    %v2609 = vmul.f32 %v2608, %v2593
    %vm2610 = vweird.f32 %v1999
    %v2611 = vadd.s32 %v2594, 3
    %v2612 = vand.u32 %v2611, 3
    %vm2613 = vcmp.lt.s32.totalorder %v2612, 2
    %vm2614 = vcmp.eq.s32.totalorder %v2612, 0
    %v2615 = vxor.u32 %v2609, 2147483648
    %v2616 = vsel %vm2614, %v2601, %v2615
    %vm2617 = vcmp.eq.s32.totalorder %v2612, 2
    %v2618 = vxor.u32 %v2601, 2147483648
    %v2619 = vsel %vm2617, %v2618, %v2609
    %v2620 = vsel %vm2613, %v2616, %v2619
    %v2621 = vsel %vm2610, nan, %v2620
    %v2622 = vmul.f32 %v1830, %v2466
    %v2623 = vmul.f32 %v1831, %v2621
    %v2624 = vadd.f32 %v2157, %v2622
    %v2625 = vadd.f32 %v2311, %v2623
    %v2626 = vmul.f32 %v2002, %v2624
    %v2627 = vmul.f32 %v2003, %v2625
    %v2628 = vmul.f32 %v2626, 0.33333334
    %v2629 = vmul.f32 %v2627, 0.33333334
    %v2630 = vadd.f32 %v1824, %v2628
    %v2631 = vadd.f32 %v1825, %v2629
    %v2632 = vld [vmem:[%s7] sm:$0xff]
    %v2633 = vld [vmem:[%s7 + $0x8] sm:$0xff]
    %v2634 = vld [vmem:[%s7 + $0x10] sm:$0xff]
    %vm2635 = vcmask 97280
    %v2637 = vsel %vm2635, %v2632, 0
    %v2640 = vsel %vm2635, %v2633, 0
    %v2643 = vsel %vm2635, %v2634, 0
    %vm2645 = vcmask 1043456
    %v2647 = vsel %vm2645, %v2631, 0
    %2649 = vmatpush.msra.mxu0 0.0
    %2650 = vmatpush.msra.mxu0 0.0
    %2651 = vmatpush.msra.mxu0 0.0
    %2652 = vmatpush.msra.mxu0 0.0
    %2653 = vmatpush.msra.mxu0 0.0
    %2654 = vmatpush.msra.mxu0 0.0
    %2655 = vmatpush.msra.mxu0 0.0
    %2656 = vmatpush.msra.mxu0 0.0
    %2657 = vmatpush.msra.mxu0 0.0
    %2658 = vmatpush.msra.mxu0 0.0
    %2659 = vmatpush.msra.mxu0 0.0
    %2660 = vmatpush.msra.mxu0 0.0
    %2661 = vmatpush.msra.mxu0 0.0
    %2662 = vmatpush.msra.mxu0 0.0
    %2663 = vmatpush.msra.mxu0 %v2647
    %2664 = vmatpush.msra.mxu0 %v2630
    %2665 = vmatmul.f32.gmra.mxu0 %v2637
    %v2666 = vpop.f32.mrf.mxu0
    %v2667 = vadd.f32 0.0, %v2666
    %2668 = vmatmul.f32.gmra.mxu0 %v2640
    %v2669 = vpop.f32.mrf.mxu0
    %v2670 = vadd.f32 0.0, %v2669
    %2671 = vmatmul.f32.gmra.mxu0 %v2643
    %v2672 = vpop.f32.mrf.mxu0
    %v2673 = vadd.f32 0.0, %v2672
    %2674 = vdwg.mxu0
    %2675 = vst [vmem:[#allocation12] sm:$0xff] %v2667
    %2676 = vst [vmem:[#allocation12 + $0x8] sm:$0xff] %v2670
    %2677 = vst [vmem:[#allocation12 + $0x10] sm:$0xff] %v2673
    // Predicated region
    $region50: #{tpu_custom_call.1} parent=1 // pred_check
      _
    $region51: #{tpu_custom_call.1} parent=1 // pred_check_branch
      %2679 = sbr.rel (0) target = $region53
    $region52: #{tpu_custom_call.1} parent=1 // pred_region
      %2681 = vsyncadd [#allocation5], 0
      %s2682 = sshll.u32 [#allocation12], 4
      %s2683 = int_to_ptr.vmem [resolvable:$true] %s2682
      %s2684 = sshll.u32 %s8, 4
      %s2685 = int_to_ptr.hbm [resolvable:$true] %s2684
      %2690 = dma.vmem_to_hbm [thread:$0]  %s2683, 384, %s2685, [#allocation5], 128, 128, 8
    $region53: #{tpu_custom_call.1} parent=1 // pred_fallthru
      _
    // Predicated region
    $region54: #{tpu_custom_call.1} parent=1 // pred_check
      _
    $region55: #{tpu_custom_call.1} parent=1 // pred_check_branch
      %2692 = sbr.rel (0) target = $region57
    $region56: #{tpu_custom_call.1} parent=1 // pred_region
      %2694 = dma.done [#allocation5], 384
    $region57: #{tpu_custom_call.1} parent=1 // pred_fallthru
      _
    %2695 = vsyncpa [#allocation5], 1
    %2696 = vsyncpa [#allocation6], 1
    %2697 = vsyncpa [#allocation8], 1
    %2698 = vsyncpa [#allocation11], 1

</llo_original>
